<compile_context>
chip_gen: v5e
topology: v5e:2x2
jax: 0.10.0
libtpu: 0.0.40
codegen_flags: <defaults>
</compile_context>

<pallas_src>
import jax
import jax.numpy as jnp
from jax.experimental import pallas as pl
from jax.experimental.pallas import tpu as pltpu


# ---------------------------------------------------------------------------
# Pallas kernel: fused 2-layer LSTM over the full sequence, one invocation.
# ---------------------------------------------------------------------------
def _lstm2_kernel(x_ref, h0_ref, c0_ref,
                  wih0_ref, whh0_ref, b0_ref,
                  wih1_ref, whh1_ref, b1_ref,
                  out_ref, g_sc, y1_sc):
    """All refs are whole-array VMEM blocks (no grid).

      x_ref   : (T*B, I)    time-major flattened input rows
      h0_ref  : (2, B, H)   initial hidden state per layer
      c0_ref  : (2, B, H)   initial cell state per layer
      wih*    : (in, 4H)    input->gates weights, pre-transposed
      whh*    : (H, 4H)     hidden->gates weights, pre-transposed
      b*      : (1, 4H)     combined bias (b_ih + b_hh)
      out_ref : (T*B, H)    layer-2 hidden-state sequence
      g_sc    : (T*B, 4H)   scratch: hoisted input projections (reused)
      y1_sc   : (T*B, H)    scratch: layer-1 output sequence (stays in VMEM)
    """
    TB = x_ref.shape[0]
    _, B, H = h0_ref.shape
    T = TB // B

    def run_layer(whh, h, c, y_ref):
        # Serial recurrence over T static steps, fully unrolled.  Only the
        # small (B,H)@(H,4H) recurrent matmul sits on the serial critical
        # path; the input projection was hoisted below.
        for t in range(T):
            rows = pl.ds(t * B, B)                           # static ref slice
            gates = g_sc[rows, :] + jnp.dot(
                h, whh, preferred_element_type=jnp.float32)  # (B, 4H)
            sg = jax.nn.sigmoid(gates)   # whole-vreg sigmoid: 1 EUP pass
            tg = jnp.tanh(gates)         # whole-vreg tanh:    1 EUP pass
            i_g = sg[:, 0 * H:1 * H]     # PyTorch gate order: i, f, g, o
            f_g = sg[:, 1 * H:2 * H]
            g_g = tg[:, 2 * H:3 * H]
            o_g = sg[:, 3 * H:4 * H]
            c = f_g * c + i_g * g_g
            h = o_g * jnp.tanh(c)
            y_ref[rows, :] = h
        return h, c

    # ---- layer 0: hoisted input projection = ONE (T*B,I)@(I,4H) MXU op ----
    g_sc[...] = jnp.dot(x_ref[...], wih0_ref[...],
                        preferred_element_type=jnp.float32) + b0_ref[...]
    run_layer(whh0_ref[...], h0_ref[0], c0_ref[0], y1_sc)

    # ---- layer 1: hoisted input projection over the layer-0 sequence ----
    g_sc[...] = jnp.dot(y1_sc[...], wih1_ref[...],
                        preferred_element_type=jnp.float32) + b1_ref[...]
    run_layer(whh1_ref[...], h0_ref[1], c0_ref[1], out_ref)


# ---------------------------------------------------------------------------
# Full module forward (layout glue in plain JAX, recurrence in Pallas).
# ---------------------------------------------------------------------------
def lstm_model_forward(x, params, h0, c0):
    """x: (batch, 1, seq_length, num_node) -> (batch, num_node, output_size)."""
    assert len(params) == 2, "fused kernel implements the module default num_layers=2"
    (wih0, whh0, b0), (wih1, whh1, b1) = params

    x = jnp.squeeze(x, axis=1)              # (B, seq_length, num_node)
    x = jnp.transpose(x, (0, 2, 1))         # (B, T=num_node, I=seq_length) == permute(0,2,1)
    B, T, I = x.shape
    H = h0.shape[-1]
    x_flat = jnp.transpose(x, (1, 0, 2)).reshape(T * B, I)   # time-major rows

    out_flat = pl.pallas_call(
        _lstm2_kernel,
        out_shape=jax.ShapeDtypeStruct((T * B, H), jnp.float32),
        # No grid: the whole (tiny) problem lives in VMEM for a single
        # invocation, so there is no per-step pipeline overhead and exactly
        # one HBM writeback of the output.
        scratch_shapes=[
            pltpu.VMEM((T * B, 4 * H), jnp.float32),   # hoisted gate projections
            pltpu.VMEM((T * B, H), jnp.float32),       # layer-1 output sequence
        ],
    )(x_flat, h0, c0, wih0, whh0, b0, wih1, whh1, b1)

    return jnp.transpose(out_flat.reshape(T, B, H), (1, 0, 2))   # (B, num_node, H)


# ---------------------------------------------------------------------------
# Pure-JAX reference (for correctness check).
# ---------------------------------------------------------------------------
def _lstm_layer_ref(x_tbi, h0, c0, wih, whh, b):
    H = h0.shape[1]

    def step(carry, x_t):
        h, c = carry
        gates = x_t @ wih + h @ whh + b
        i = jax.nn.sigmoid(gates[:, 0 * H:1 * H])
        f = jax.nn.sigmoid(gates[:, 1 * H:2 * H])
        g = jnp.tanh(gates[:, 2 * H:3 * H])
        o = jax.nn.sigmoid(gates[:, 3 * H:4 * H])
        c = f * c + i * g
        h = o * jnp.tanh(c)
        return (h, c), h

    _, ys = jax.lax.scan(step, (h0, c0), x_tbi)
    return ys


def lstm_model_ref(x, params, h0, c0):
    x = jnp.squeeze(x, axis=1)
    x = jnp.transpose(x, (0, 2, 1))
    x_tbi = jnp.transpose(x, (1, 0, 2))
    for layer, (wih, whh, b) in enumerate(params):
        x_tbi = _lstm_layer_ref(x_tbi, h0[layer], c0[layer], wih, whh, b)
    return jnp.transpose(x_tbi, (1, 0, 2))


# ---------------------------------------------------------------------------
# Deterministic parameter initialization (PyTorch-style uniform(-k, k)).
# ---------------------------------------------------------------------------
def init_params(key, seq_length, output_size, num_layers):
    params = []
    H = output_size
    k = 1.0 / jnp.sqrt(jnp.float32(H))
    for layer in range(num_layers):
        in_size = seq_length if layer == 0 else H
        key, k1, k2, k3, k4 = jax.random.split(key, 5)
        # stored pre-transposed: (in, 4H) and (H, 4H); bias = b_ih + b_hh as (1, 4H)
        wih = jax.random.uniform(k1, (in_size, 4 * H), jnp.float32, -k, k)
        whh = jax.random.uniform(k2, (H, 4 * H), jnp.float32, -k, k)
        b_ih = jax.random.uniform(k3, (4 * H,), jnp.float32, -k, k)
        b_hh = jax.random.uniform(k4, (4 * H,), jnp.float32, -k, k)
        params.append((wih, whh, (b_ih + b_hh)[None, :]))
    return params, key


if __name__ == "__main__":
    # Shapes implied by the module: x = (batch, in_channels=1, seq_length, num_node)
    batch, in_channels, seq_length, num_node = 2, 1, 8, 16
    output_size, num_layers = 32, 2

    key = jax.random.PRNGKey(0)
    key, kx, kh, kc = jax.random.split(key, 4)
    x = jax.random.normal(kx, (batch, in_channels, seq_length, num_node), jnp.float32)

    params, key = init_params(key, seq_length, output_size, num_layers)

    # The reference forward draws random h_0 / c_0 each call (torch.randn);
    # here they are drawn deterministically from the fixed PRNG key.
    h0 = jax.random.normal(kh, (num_layers, batch, output_size), jnp.float32)
    c0 = jax.random.normal(kc, (num_layers, batch, output_size), jnp.float32)

    out = lstm_model_forward(x, params, h0, c0)
    out = jax.block_until_ready(out)

    ref = lstm_model_ref(x, params, h0, c0)
    assert out.shape == (batch, num_node, output_size)
    assert jnp.allclose(out, ref, atol=1e-5, rtol=1e-5), "Pallas LSTM mismatch vs reference"

    print("KERNEL_OK")
</pallas_src>

<mosaic_0001>
module attributes {stable_mosaic.version = 11 : i64} {
  func.func @_lstm2_kernel(%arg0: memref<32x8xf32, #tpu.memory_space<vmem>>, %arg1: memref<2x2x32xf32, #tpu.memory_space<vmem>>, %arg2: memref<2x2x32xf32, #tpu.memory_space<vmem>>, %arg3: memref<8x128xf32, #tpu.memory_space<vmem>>, %arg4: memref<32x128xf32, #tpu.memory_space<vmem>>, %arg5: memref<1x128xf32, #tpu.memory_space<vmem>>, %arg6: memref<32x128xf32, #tpu.memory_space<vmem>>, %arg7: memref<32x128xf32, #tpu.memory_space<vmem>>, %arg8: memref<1x128xf32, #tpu.memory_space<vmem>>, %arg9: memref<32x32xf32, #tpu.memory_space<vmem>>, %arg10: memref<32x128xf32, #tpu.memory_space<vmem>>, %arg11: memref<32x32xf32, #tpu.memory_space<vmem>>) attributes {dimension_semantics = [], scalar_prefetch = 0 : i64, scratch_operands = 2 : i64, tpu.core_type = #tpu.core_type<tc>} {
    %c0 = arith.constant 0 : index
    %c0_0 = arith.constant 0 : index
    %0 = vector.load %arg0[%c0, %c0_0] : memref<32x8xf32, #tpu.memory_space<vmem>>, vector<32x8xf32>
    %c0_1 = arith.constant 0 : index
    %c0_2 = arith.constant 0 : index
    %1 = vector.load %arg3[%c0_1, %c0_2] : memref<8x128xf32, #tpu.memory_space<vmem>>, vector<8x128xf32>
    %cst = arith.constant dense<0.000000e+00> : vector<32x128xf32>
    %2 = tpu.matmul %0, %1, %cst {dimension_numbers = #tpu.dot_dimension_numbers<[1], [0], [0], [1], [0, 0, 1, 1], [], []>} : vector<32x8xf32>, vector<8x128xf32>, vector<32x128xf32> -> vector<32x128xf32>
    %c0_3 = arith.constant 0 : index
    %c0_4 = arith.constant 0 : index
    %3 = vector.load %arg5[%c0_3, %c0_4] : memref<1x128xf32, #tpu.memory_space<vmem>>, vector<1x128xf32>
    %4 = vector.broadcast %3 : vector<1x128xf32> to vector<32x128xf32>
    %5 = arith.addf %2, %4 : vector<32x128xf32>
    %c0_5 = arith.constant 0 : index
    %c0_6 = arith.constant 0 : index
    %6 = vector.load %arg10[%c0_5, %c0_6] : memref<32x128xf32, #tpu.memory_space<vmem>>, vector<32x128xf32>
    tpu.vector_store %arg10[%c0_5, %c0_6], %5 {strides = array<i32>} : memref<32x128xf32, #tpu.memory_space<vmem>>, vector<32x128xf32>,
    %c0_7 = arith.constant 0 : index
    %c0_8 = arith.constant 0 : index
    %7 = vector.load %arg4[%c0_7, %c0_8] : memref<32x128xf32, #tpu.memory_space<vmem>>, vector<32x128xf32>
    %c0_9 = arith.constant 0 : index
    %c0_10 = arith.constant 0 : index
    %c0_11 = arith.constant 0 : index
    %8 = vector.load %arg1[%c0_9, %c0_10, %c0_11] : memref<2x2x32xf32, #tpu.memory_space<vmem>>, vector<1x2x32xf32>
    %9 = vector.shape_cast %8 : vector<1x2x32xf32> to vector<2x32xf32>
    %c0_12 = arith.constant 0 : index
    %c0_13 = arith.constant 0 : index
    %c0_14 = arith.constant 0 : index
    %10 = vector.load %arg2[%c0_12, %c0_13, %c0_14] : memref<2x2x32xf32, #tpu.memory_space<vmem>>, vector<1x2x32xf32>
    %11 = vector.shape_cast %10 : vector<1x2x32xf32> to vector<2x32xf32>
    %c0_15 = arith.constant 0 : index
    %c0_16 = arith.constant 0 : index
    %12 = vector.load %arg10[%c0_15, %c0_16] : memref<32x128xf32, #tpu.memory_space<vmem>>, vector<2x128xf32>
    %cst_17 = arith.constant dense<0.000000e+00> : vector<2x128xf32>
    %13 = tpu.matmul %9, %7, %cst_17 {dimension_numbers = #tpu.dot_dimension_numbers<[1], [0], [0], [1], [0, 0, 1, 1], [], []>} : vector<2x32xf32>, vector<32x128xf32>, vector<2x128xf32> -> vector<2x128xf32>
    %14 = arith.addf %12, %13 : vector<2x128xf32>
    %15 = arith.negf %14 : vector<2x128xf32>
    %16 = math.exp %15 : vector<2x128xf32>
    %cst_18 = arith.constant 1.000000e+00 : f32
    %17 = vector.broadcast %cst_18 : f32 to vector<2x128xf32>
    %18 = arith.addf %17, %16 : vector<2x128xf32>
    %19 = arith.divf %17, %18 : vector<2x128xf32>
    %20 = math.tanh %14 : vector<2x128xf32>
    %21 = vector.extract_strided_slice %19 {offsets = [0, 0], sizes = [2, 32], strides = [1, 1]} : vector<2x128xf32> to vector<2x32xf32>
    %22 = vector.extract_strided_slice %19 {offsets = [0, 32], sizes = [2, 32], strides = [1, 1]} : vector<2x128xf32> to vector<2x32xf32>
    %23 = vector.extract_strided_slice %20 {offsets = [0, 64], sizes = [2, 32], strides = [1, 1]} : vector<2x128xf32> to vector<2x32xf32>
    %24 = vector.extract_strided_slice %19 {offsets = [0, 96], sizes = [2, 32], strides = [1, 1]} : vector<2x128xf32> to vector<2x32xf32>
    %25 = arith.mulf %22, %11 : vector<2x32xf32>
    %26 = arith.mulf %21, %23 : vector<2x32xf32>
    %27 = arith.addf %25, %26 : vector<2x32xf32>
    %28 = math.tanh %27 : vector<2x32xf32>
    %29 = arith.mulf %24, %28 : vector<2x32xf32>
    %c0_19 = arith.constant 0 : index
    %c0_20 = arith.constant 0 : index
    %30 = vector.load %arg11[%c0_19, %c0_20] : memref<32x32xf32, #tpu.memory_space<vmem>>, vector<2x32xf32>
    tpu.vector_store %arg11[%c0_19, %c0_20], %29 {strides = array<i32>} : memref<32x32xf32, #tpu.memory_space<vmem>>, vector<2x32xf32>,
    %c2 = arith.constant 2 : index
    %c0_21 = arith.constant 0 : index
    %31 = vector.load %arg10[%c2, %c0_21] : memref<32x128xf32, #tpu.memory_space<vmem>>, vector<2x128xf32>
    %cst_22 = arith.constant dense<0.000000e+00> : vector<2x128xf32>
    %32 = tpu.matmul %29, %7, %cst_22 {dimension_numbers = #tpu.dot_dimension_numbers<[1], [0], [0], [1], [0, 0, 1, 1], [], []>} : vector<2x32xf32>, vector<32x128xf32>, vector<2x128xf32> -> vector<2x128xf32>
    %33 = arith.addf %31, %32 : vector<2x128xf32>
    %34 = arith.negf %33 : vector<2x128xf32>
    %35 = math.exp %34 : vector<2x128xf32>
    %cst_23 = arith.constant 1.000000e+00 : f32
    %36 = vector.broadcast %cst_23 : f32 to vector<2x128xf32>
    %37 = arith.addf %36, %35 : vector<2x128xf32>
    %38 = arith.divf %36, %37 : vector<2x128xf32>
    %39 = math.tanh %33 : vector<2x128xf32>
    %40 = vector.extract_strided_slice %38 {offsets = [0, 0], sizes = [2, 32], strides = [1, 1]} : vector<2x128xf32> to vector<2x32xf32>
    %41 = vector.extract_strided_slice %38 {offsets = [0, 32], sizes = [2, 32], strides = [1, 1]} : vector<2x128xf32> to vector<2x32xf32>
    %42 = vector.extract_strided_slice %39 {offsets = [0, 64], sizes = [2, 32], strides = [1, 1]} : vector<2x128xf32> to vector<2x32xf32>
    %43 = vector.extract_strided_slice %38 {offsets = [0, 96], sizes = [2, 32], strides = [1, 1]} : vector<2x128xf32> to vector<2x32xf32>
    %44 = arith.mulf %41, %27 : vector<2x32xf32>
    %45 = arith.mulf %40, %42 : vector<2x32xf32>
    %46 = arith.addf %44, %45 : vector<2x32xf32>
    %47 = math.tanh %46 : vector<2x32xf32>
    %48 = arith.mulf %43, %47 : vector<2x32xf32>
    %c2_24 = arith.constant 2 : index
    %c0_25 = arith.constant 0 : index
    %49 = vector.load %arg11[%c2_24, %c0_25] : memref<32x32xf32, #tpu.memory_space<vmem>>, vector<2x32xf32>
    tpu.vector_store %arg11[%c2_24, %c0_25], %48 {strides = array<i32>} : memref<32x32xf32, #tpu.memory_space<vmem>>, vector<2x32xf32>,
    %c4 = arith.constant 4 : index
    %c0_26 = arith.constant 0 : index
    %50 = vector.load %arg10[%c4, %c0_26] : memref<32x128xf32, #tpu.memory_space<vmem>>, vector<2x128xf32>
    %cst_27 = arith.constant dense<0.000000e+00> : vector<2x128xf32>
    %51 = tpu.matmul %48, %7, %cst_27 {dimension_numbers = #tpu.dot_dimension_numbers<[1], [0], [0], [1], [0, 0, 1, 1], [], []>} : vector<2x32xf32>, vector<32x128xf32>, vector<2x128xf32> -> vector<2x128xf32>
    %52 = arith.addf %50, %51 : vector<2x128xf32>
    %53 = arith.negf %52 : vector<2x128xf32>
    %54 = math.exp %53 : vector<2x128xf32>
    %cst_28 = arith.constant 1.000000e+00 : f32
    %55 = vector.broadcast %cst_28 : f32 to vector<2x128xf32>
    %56 = arith.addf %55, %54 : vector<2x128xf32>
    %57 = arith.divf %55, %56 : vector<2x128xf32>
    %58 = math.tanh %52 : vector<2x128xf32>
    %59 = vector.extract_strided_slice %57 {offsets = [0, 0], sizes = [2, 32], strides = [1, 1]} : vector<2x128xf32> to vector<2x32xf32>
    %60 = vector.extract_strided_slice %57 {offsets = [0, 32], sizes = [2, 32], strides = [1, 1]} : vector<2x128xf32> to vector<2x32xf32>
    %61 = vector.extract_strided_slice %58 {offsets = [0, 64], sizes = [2, 32], strides = [1, 1]} : vector<2x128xf32> to vector<2x32xf32>
    %62 = vector.extract_strided_slice %57 {offsets = [0, 96], sizes = [2, 32], strides = [1, 1]} : vector<2x128xf32> to vector<2x32xf32>
    %63 = arith.mulf %60, %46 : vector<2x32xf32>
    %64 = arith.mulf %59, %61 : vector<2x32xf32>
    %65 = arith.addf %63, %64 : vector<2x32xf32>
    %66 = math.tanh %65 : vector<2x32xf32>
    %67 = arith.mulf %62, %66 : vector<2x32xf32>
    %c4_29 = arith.constant 4 : index
    %c0_30 = arith.constant 0 : index
    %68 = vector.load %arg11[%c4_29, %c0_30] : memref<32x32xf32, #tpu.memory_space<vmem>>, vector<2x32xf32>
    tpu.vector_store %arg11[%c4_29, %c0_30], %67 {strides = array<i32>} : memref<32x32xf32, #tpu.memory_space<vmem>>, vector<2x32xf32>,
    %c6 = arith.constant 6 : index
    %c0_31 = arith.constant 0 : index
    %69 = vector.load %arg10[%c6, %c0_31] : memref<32x128xf32, #tpu.memory_space<vmem>>, vector<2x128xf32>
    %cst_32 = arith.constant dense<0.000000e+00> : vector<2x128xf32>
    %70 = tpu.matmul %67, %7, %cst_32 {dimension_numbers = #tpu.dot_dimension_numbers<[1], [0], [0], [1], [0, 0, 1, 1], [], []>} : vector<2x32xf32>, vector<32x128xf32>, vector<2x128xf32> -> vector<2x128xf32>
    %71 = arith.addf %69, %70 : vector<2x128xf32>
    %72 = arith.negf %71 : vector<2x128xf32>
    %73 = math.exp %72 : vector<2x128xf32>
    %cst_33 = arith.constant 1.000000e+00 : f32
    %74 = vector.broadcast %cst_33 : f32 to vector<2x128xf32>
    %75 = arith.addf %74, %73 : vector<2x128xf32>
    %76 = arith.divf %74, %75 : vector<2x128xf32>
    %77 = math.tanh %71 : vector<2x128xf32>
    %78 = vector.extract_strided_slice %76 {offsets = [0, 0], sizes = [2, 32], strides = [1, 1]} : vector<2x128xf32> to vector<2x32xf32>
    %79 = vector.extract_strided_slice %76 {offsets = [0, 32], sizes = [2, 32], strides = [1, 1]} : vector<2x128xf32> to vector<2x32xf32>
    %80 = vector.extract_strided_slice %77 {offsets = [0, 64], sizes = [2, 32], strides = [1, 1]} : vector<2x128xf32> to vector<2x32xf32>
    %81 = vector.extract_strided_slice %76 {offsets = [0, 96], sizes = [2, 32], strides = [1, 1]} : vector<2x128xf32> to vector<2x32xf32>
    %82 = arith.mulf %79, %65 : vector<2x32xf32>
    %83 = arith.mulf %78, %80 : vector<2x32xf32>
    %84 = arith.addf %82, %83 : vector<2x32xf32>
    %85 = math.tanh %84 : vector<2x32xf32>
    %86 = arith.mulf %81, %85 : vector<2x32xf32>
    %c6_34 = arith.constant 6 : index
    %c0_35 = arith.constant 0 : index
    %87 = vector.load %arg11[%c6_34, %c0_35] : memref<32x32xf32, #tpu.memory_space<vmem>>, vector<2x32xf32>
    tpu.vector_store %arg11[%c6_34, %c0_35], %86 {strides = array<i32>} : memref<32x32xf32, #tpu.memory_space<vmem>>, vector<2x32xf32>,
    %c8 = arith.constant 8 : index
    %c0_36 = arith.constant 0 : index
    %88 = vector.load %arg10[%c8, %c0_36] : memref<32x128xf32, #tpu.memory_space<vmem>>, vector<2x128xf32>
    %cst_37 = arith.constant dense<0.000000e+00> : vector<2x128xf32>
    %89 = tpu.matmul %86, %7, %cst_37 {dimension_numbers = #tpu.dot_dimension_numbers<[1], [0], [0], [1], [0, 0, 1, 1], [], []>} : vector<2x32xf32>, vector<32x128xf32>, vector<2x128xf32> -> vector<2x128xf32>
    %90 = arith.addf %88, %89 : vector<2x128xf32>
    %91 = arith.negf %90 : vector<2x128xf32>
    %92 = math.exp %91 : vector<2x128xf32>
    %cst_38 = arith.constant 1.000000e+00 : f32
    %93 = vector.broadcast %cst_38 : f32 to vector<2x128xf32>
    %94 = arith.addf %93, %92 : vector<2x128xf32>
    %95 = arith.divf %93, %94 : vector<2x128xf32>
    %96 = math.tanh %90 : vector<2x128xf32>
    %97 = vector.extract_strided_slice %95 {offsets = [0, 0], sizes = [2, 32], strides = [1, 1]} : vector<2x128xf32> to vector<2x32xf32>
    %98 = vector.extract_strided_slice %95 {offsets = [0, 32], sizes = [2, 32], strides = [1, 1]} : vector<2x128xf32> to vector<2x32xf32>
    %99 = vector.extract_strided_slice %96 {offsets = [0, 64], sizes = [2, 32], strides = [1, 1]} : vector<2x128xf32> to vector<2x32xf32>
    %100 = vector.extract_strided_slice %95 {offsets = [0, 96], sizes = [2, 32], strides = [1, 1]} : vector<2x128xf32> to vector<2x32xf32>
    %101 = arith.mulf %98, %84 : vector<2x32xf32>
    %102 = arith.mulf %97, %99 : vector<2x32xf32>
    %103 = arith.addf %101, %102 : vector<2x32xf32>
    %104 = math.tanh %103 : vector<2x32xf32>
    %105 = arith.mulf %100, %104 : vector<2x32xf32>
    %c8_39 = arith.constant 8 : index
    %c0_40 = arith.constant 0 : index
    %106 = vector.load %arg11[%c8_39, %c0_40] : memref<32x32xf32, #tpu.memory_space<vmem>>, vector<2x32xf32>
    tpu.vector_store %arg11[%c8_39, %c0_40], %105 {strides = array<i32>} : memref<32x32xf32, #tpu.memory_space<vmem>>, vector<2x32xf32>,
    %c10 = arith.constant 10 : index
    %c0_41 = arith.constant 0 : index
    %107 = vector.load %arg10[%c10, %c0_41] : memref<32x128xf32, #tpu.memory_space<vmem>>, vector<2x128xf32>
    %cst_42 = arith.constant dense<0.000000e+00> : vector<2x128xf32>
    %108 = tpu.matmul %105, %7, %cst_42 {dimension_numbers = #tpu.dot_dimension_numbers<[1], [0], [0], [1], [0, 0, 1, 1], [], []>} : vector<2x32xf32>, vector<32x128xf32>, vector<2x128xf32> -> vector<2x128xf32>
    %109 = arith.addf %107, %108 : vector<2x128xf32>
    %110 = arith.negf %109 : vector<2x128xf32>
    %111 = math.exp %110 : vector<2x128xf32>
    %cst_43 = arith.constant 1.000000e+00 : f32
    %112 = vector.broadcast %cst_43 : f32 to vector<2x128xf32>
    %113 = arith.addf %112, %111 : vector<2x128xf32>
    %114 = arith.divf %112, %113 : vector<2x128xf32>
    %115 = math.tanh %109 : vector<2x128xf32>
    %116 = vector.extract_strided_slice %114 {offsets = [0, 0], sizes = [2, 32], strides = [1, 1]} : vector<2x128xf32> to vector<2x32xf32>
    %117 = vector.extract_strided_slice %114 {offsets = [0, 32], sizes = [2, 32], strides = [1, 1]} : vector<2x128xf32> to vector<2x32xf32>
    %118 = vector.extract_strided_slice %115 {offsets = [0, 64], sizes = [2, 32], strides = [1, 1]} : vector<2x128xf32> to vector<2x32xf32>
    %119 = vector.extract_strided_slice %114 {offsets = [0, 96], sizes = [2, 32], strides = [1, 1]} : vector<2x128xf32> to vector<2x32xf32>
    %120 = arith.mulf %117, %103 : vector<2x32xf32>
    %121 = arith.mulf %116, %118 : vector<2x32xf32>
    %122 = arith.addf %120, %121 : vector<2x32xf32>
    %123 = math.tanh %122 : vector<2x32xf32>
    %124 = arith.mulf %119, %123 : vector<2x32xf32>
    %c10_44 = arith.constant 10 : index
    %c0_45 = arith.constant 0 : index
    %125 = vector.load %arg11[%c10_44, %c0_45] : memref<32x32xf32, #tpu.memory_space<vmem>>, vector<2x32xf32>
    tpu.vector_store %arg11[%c10_44, %c0_45], %124 {strides = array<i32>} : memref<32x32xf32, #tpu.memory_space<vmem>>, vector<2x32xf32>,
    %c12 = arith.constant 12 : index
    %c0_46 = arith.constant 0 : index
    %126 = vector.load %arg10[%c12, %c0_46] : memref<32x128xf32, #tpu.memory_space<vmem>>, vector<2x128xf32>
    %cst_47 = arith.constant dense<0.000000e+00> : vector<2x128xf32>
    %127 = tpu.matmul %124, %7, %cst_47 {dimension_numbers = #tpu.dot_dimension_numbers<[1], [0], [0], [1], [0, 0, 1, 1], [], []>} : vector<2x32xf32>, vector<32x128xf32>, vector<2x128xf32> -> vector<2x128xf32>
    %128 = arith.addf %126, %127 : vector<2x128xf32>
    %129 = arith.negf %128 : vector<2x128xf32>
    %130 = math.exp %129 : vector<2x128xf32>
    %cst_48 = arith.constant 1.000000e+00 : f32
    %131 = vector.broadcast %cst_48 : f32 to vector<2x128xf32>
    %132 = arith.addf %131, %130 : vector<2x128xf32>
    %133 = arith.divf %131, %132 : vector<2x128xf32>
    %134 = math.tanh %128 : vector<2x128xf32>
    %135 = vector.extract_strided_slice %133 {offsets = [0, 0], sizes = [2, 32], strides = [1, 1]} : vector<2x128xf32> to vector<2x32xf32>
    %136 = vector.extract_strided_slice %133 {offsets = [0, 32], sizes = [2, 32], strides = [1, 1]} : vector<2x128xf32> to vector<2x32xf32>
    %137 = vector.extract_strided_slice %134 {offsets = [0, 64], sizes = [2, 32], strides = [1, 1]} : vector<2x128xf32> to vector<2x32xf32>
    %138 = vector.extract_strided_slice %133 {offsets = [0, 96], sizes = [2, 32], strides = [1, 1]} : vector<2x128xf32> to vector<2x32xf32>
    %139 = arith.mulf %136, %122 : vector<2x32xf32>
    %140 = arith.mulf %135, %137 : vector<2x32xf32>
    %141 = arith.addf %139, %140 : vector<2x32xf32>
    %142 = math.tanh %141 : vector<2x32xf32>
    %143 = arith.mulf %138, %142 : vector<2x32xf32>
    %c12_49 = arith.constant 12 : index
    %c0_50 = arith.constant 0 : index
    %144 = vector.load %arg11[%c12_49, %c0_50] : memref<32x32xf32, #tpu.memory_space<vmem>>, vector<2x32xf32>
    tpu.vector_store %arg11[%c12_49, %c0_50], %143 {strides = array<i32>} : memref<32x32xf32, #tpu.memory_space<vmem>>, vector<2x32xf32>,
    %c14 = arith.constant 14 : index
    %c0_51 = arith.constant 0 : index
    %145 = vector.load %arg10[%c14, %c0_51] : memref<32x128xf32, #tpu.memory_space<vmem>>, vector<2x128xf32>
    %cst_52 = arith.constant dense<0.000000e+00> : vector<2x128xf32>
    %146 = tpu.matmul %143, %7, %cst_52 {dimension_numbers = #tpu.dot_dimension_numbers<[1], [0], [0], [1], [0, 0, 1, 1], [], []>} : vector<2x32xf32>, vector<32x128xf32>, vector<2x128xf32> -> vector<2x128xf32>
    %147 = arith.addf %145, %146 : vector<2x128xf32>
    %148 = arith.negf %147 : vector<2x128xf32>
    %149 = math.exp %148 : vector<2x128xf32>
    %cst_53 = arith.constant 1.000000e+00 : f32
    %150 = vector.broadcast %cst_53 : f32 to vector<2x128xf32>
    %151 = arith.addf %150, %149 : vector<2x128xf32>
    %152 = arith.divf %150, %151 : vector<2x128xf32>
    %153 = math.tanh %147 : vector<2x128xf32>
    %154 = vector.extract_strided_slice %152 {offsets = [0, 0], sizes = [2, 32], strides = [1, 1]} : vector<2x128xf32> to vector<2x32xf32>
    %155 = vector.extract_strided_slice %152 {offsets = [0, 32], sizes = [2, 32], strides = [1, 1]} : vector<2x128xf32> to vector<2x32xf32>
    %156 = vector.extract_strided_slice %153 {offsets = [0, 64], sizes = [2, 32], strides = [1, 1]} : vector<2x128xf32> to vector<2x32xf32>
    %157 = vector.extract_strided_slice %152 {offsets = [0, 96], sizes = [2, 32], strides = [1, 1]} : vector<2x128xf32> to vector<2x32xf32>
    %158 = arith.mulf %155, %141 : vector<2x32xf32>
    %159 = arith.mulf %154, %156 : vector<2x32xf32>
    %160 = arith.addf %158, %159 : vector<2x32xf32>
    %161 = math.tanh %160 : vector<2x32xf32>
    %162 = arith.mulf %157, %161 : vector<2x32xf32>
    %c14_54 = arith.constant 14 : index
    %c0_55 = arith.constant 0 : index
    %163 = vector.load %arg11[%c14_54, %c0_55] : memref<32x32xf32, #tpu.memory_space<vmem>>, vector<2x32xf32>
    tpu.vector_store %arg11[%c14_54, %c0_55], %162 {strides = array<i32>} : memref<32x32xf32, #tpu.memory_space<vmem>>, vector<2x32xf32>,
    %c16 = arith.constant 16 : index
    %c0_56 = arith.constant 0 : index
    %164 = vector.load %arg10[%c16, %c0_56] : memref<32x128xf32, #tpu.memory_space<vmem>>, vector<2x128xf32>
    %cst_57 = arith.constant dense<0.000000e+00> : vector<2x128xf32>
    %165 = tpu.matmul %162, %7, %cst_57 {dimension_numbers = #tpu.dot_dimension_numbers<[1], [0], [0], [1], [0, 0, 1, 1], [], []>} : vector<2x32xf32>, vector<32x128xf32>, vector<2x128xf32> -> vector<2x128xf32>
    %166 = arith.addf %164, %165 : vector<2x128xf32>
    %167 = arith.negf %166 : vector<2x128xf32>
    %168 = math.exp %167 : vector<2x128xf32>
    %cst_58 = arith.constant 1.000000e+00 : f32
    %169 = vector.broadcast %cst_58 : f32 to vector<2x128xf32>
    %170 = arith.addf %169, %168 : vector<2x128xf32>
    %171 = arith.divf %169, %170 : vector<2x128xf32>
    %172 = math.tanh %166 : vector<2x128xf32>
    %173 = vector.extract_strided_slice %171 {offsets = [0, 0], sizes = [2, 32], strides = [1, 1]} : vector<2x128xf32> to vector<2x32xf32>
    %174 = vector.extract_strided_slice %171 {offsets = [0, 32], sizes = [2, 32], strides = [1, 1]} : vector<2x128xf32> to vector<2x32xf32>
    %175 = vector.extract_strided_slice %172 {offsets = [0, 64], sizes = [2, 32], strides = [1, 1]} : vector<2x128xf32> to vector<2x32xf32>
    %176 = vector.extract_strided_slice %171 {offsets = [0, 96], sizes = [2, 32], strides = [1, 1]} : vector<2x128xf32> to vector<2x32xf32>
    %177 = arith.mulf %174, %160 : vector<2x32xf32>
    %178 = arith.mulf %173, %175 : vector<2x32xf32>
    %179 = arith.addf %177, %178 : vector<2x32xf32>
    %180 = math.tanh %179 : vector<2x32xf32>
    %181 = arith.mulf %176, %180 : vector<2x32xf32>
    %c16_59 = arith.constant 16 : index
    %c0_60 = arith.constant 0 : index
    %182 = vector.load %arg11[%c16_59, %c0_60] : memref<32x32xf32, #tpu.memory_space<vmem>>, vector<2x32xf32>
    tpu.vector_store %arg11[%c16_59, %c0_60], %181 {strides = array<i32>} : memref<32x32xf32, #tpu.memory_space<vmem>>, vector<2x32xf32>,
    %c18 = arith.constant 18 : index
    %c0_61 = arith.constant 0 : index
    %183 = vector.load %arg10[%c18, %c0_61] : memref<32x128xf32, #tpu.memory_space<vmem>>, vector<2x128xf32>
    %cst_62 = arith.constant dense<0.000000e+00> : vector<2x128xf32>
    %184 = tpu.matmul %181, %7, %cst_62 {dimension_numbers = #tpu.dot_dimension_numbers<[1], [0], [0], [1], [0, 0, 1, 1], [], []>} : vector<2x32xf32>, vector<32x128xf32>, vector<2x128xf32> -> vector<2x128xf32>
    %185 = arith.addf %183, %184 : vector<2x128xf32>
    %186 = arith.negf %185 : vector<2x128xf32>
    %187 = math.exp %186 : vector<2x128xf32>
    %cst_63 = arith.constant 1.000000e+00 : f32
    %188 = vector.broadcast %cst_63 : f32 to vector<2x128xf32>
    %189 = arith.addf %188, %187 : vector<2x128xf32>
    %190 = arith.divf %188, %189 : vector<2x128xf32>
    %191 = math.tanh %185 : vector<2x128xf32>
    %192 = vector.extract_strided_slice %190 {offsets = [0, 0], sizes = [2, 32], strides = [1, 1]} : vector<2x128xf32> to vector<2x32xf32>
    %193 = vector.extract_strided_slice %190 {offsets = [0, 32], sizes = [2, 32], strides = [1, 1]} : vector<2x128xf32> to vector<2x32xf32>
    %194 = vector.extract_strided_slice %191 {offsets = [0, 64], sizes = [2, 32], strides = [1, 1]} : vector<2x128xf32> to vector<2x32xf32>
    %195 = vector.extract_strided_slice %190 {offsets = [0, 96], sizes = [2, 32], strides = [1, 1]} : vector<2x128xf32> to vector<2x32xf32>
    %196 = arith.mulf %193, %179 : vector<2x32xf32>
    %197 = arith.mulf %192, %194 : vector<2x32xf32>
    %198 = arith.addf %196, %197 : vector<2x32xf32>
    %199 = math.tanh %198 : vector<2x32xf32>
    %200 = arith.mulf %195, %199 : vector<2x32xf32>
    %c18_64 = arith.constant 18 : index
    %c0_65 = arith.constant 0 : index
    %201 = vector.load %arg11[%c18_64, %c0_65] : memref<32x32xf32, #tpu.memory_space<vmem>>, vector<2x32xf32>
    tpu.vector_store %arg11[%c18_64, %c0_65], %200 {strides = array<i32>} : memref<32x32xf32, #tpu.memory_space<vmem>>, vector<2x32xf32>,
    %c20 = arith.constant 20 : index
    %c0_66 = arith.constant 0 : index
    %202 = vector.load %arg10[%c20, %c0_66] : memref<32x128xf32, #tpu.memory_space<vmem>>, vector<2x128xf32>
    %cst_67 = arith.constant dense<0.000000e+00> : vector<2x128xf32>
    %203 = tpu.matmul %200, %7, %cst_67 {dimension_numbers = #tpu.dot_dimension_numbers<[1], [0], [0], [1], [0, 0, 1, 1], [], []>} : vector<2x32xf32>, vector<32x128xf32>, vector<2x128xf32> -> vector<2x128xf32>
    %204 = arith.addf %202, %203 : vector<2x128xf32>
    %205 = arith.negf %204 : vector<2x128xf32>
    %206 = math.exp %205 : vector<2x128xf32>
    %cst_68 = arith.constant 1.000000e+00 : f32
    %207 = vector.broadcast %cst_68 : f32 to vector<2x128xf32>
    %208 = arith.addf %207, %206 : vector<2x128xf32>
    %209 = arith.divf %207, %208 : vector<2x128xf32>
    %210 = math.tanh %204 : vector<2x128xf32>
    %211 = vector.extract_strided_slice %209 {offsets = [0, 0], sizes = [2, 32], strides = [1, 1]} : vector<2x128xf32> to vector<2x32xf32>
    %212 = vector.extract_strided_slice %209 {offsets = [0, 32], sizes = [2, 32], strides = [1, 1]} : vector<2x128xf32> to vector<2x32xf32>
    %213 = vector.extract_strided_slice %210 {offsets = [0, 64], sizes = [2, 32], strides = [1, 1]} : vector<2x128xf32> to vector<2x32xf32>
    %214 = vector.extract_strided_slice %209 {offsets = [0, 96], sizes = [2, 32], strides = [1, 1]} : vector<2x128xf32> to vector<2x32xf32>
    %215 = arith.mulf %212, %198 : vector<2x32xf32>
    %216 = arith.mulf %211, %213 : vector<2x32xf32>
    %217 = arith.addf %215, %216 : vector<2x32xf32>
    %218 = math.tanh %217 : vector<2x32xf32>
    %219 = arith.mulf %214, %218 : vector<2x32xf32>
    %c20_69 = arith.constant 20 : index
    %c0_70 = arith.constant 0 : index
    %220 = vector.load %arg11[%c20_69, %c0_70] : memref<32x32xf32, #tpu.memory_space<vmem>>, vector<2x32xf32>
    tpu.vector_store %arg11[%c20_69, %c0_70], %219 {strides = array<i32>} : memref<32x32xf32, #tpu.memory_space<vmem>>, vector<2x32xf32>,
    %c22 = arith.constant 22 : index
    %c0_71 = arith.constant 0 : index
    %221 = vector.load %arg10[%c22, %c0_71] : memref<32x128xf32, #tpu.memory_space<vmem>>, vector<2x128xf32>
    %cst_72 = arith.constant dense<0.000000e+00> : vector<2x128xf32>
    %222 = tpu.matmul %219, %7, %cst_72 {dimension_numbers = #tpu.dot_dimension_numbers<[1], [0], [0], [1], [0, 0, 1, 1], [], []>} : vector<2x32xf32>, vector<32x128xf32>, vector<2x128xf32> -> vector<2x128xf32>
    %223 = arith.addf %221, %222 : vector<2x128xf32>
    %224 = arith.negf %223 : vector<2x128xf32>
    %225 = math.exp %224 : vector<2x128xf32>
    %cst_73 = arith.constant 1.000000e+00 : f32
    %226 = vector.broadcast %cst_73 : f32 to vector<2x128xf32>
    %227 = arith.addf %226, %225 : vector<2x128xf32>
    %228 = arith.divf %226, %227 : vector<2x128xf32>
    %229 = math.tanh %223 : vector<2x128xf32>
    %230 = vector.extract_strided_slice %228 {offsets = [0, 0], sizes = [2, 32], strides = [1, 1]} : vector<2x128xf32> to vector<2x32xf32>
    %231 = vector.extract_strided_slice %228 {offsets = [0, 32], sizes = [2, 32], strides = [1, 1]} : vector<2x128xf32> to vector<2x32xf32>
    %232 = vector.extract_strided_slice %229 {offsets = [0, 64], sizes = [2, 32], strides = [1, 1]} : vector<2x128xf32> to vector<2x32xf32>
    %233 = vector.extract_strided_slice %228 {offsets = [0, 96], sizes = [2, 32], strides = [1, 1]} : vector<2x128xf32> to vector<2x32xf32>
    %234 = arith.mulf %231, %217 : vector<2x32xf32>
    %235 = arith.mulf %230, %232 : vector<2x32xf32>
    %236 = arith.addf %234, %235 : vector<2x32xf32>
    %237 = math.tanh %236 : vector<2x32xf32>
    %238 = arith.mulf %233, %237 : vector<2x32xf32>
    %c22_74 = arith.constant 22 : index
    %c0_75 = arith.constant 0 : index
    %239 = vector.load %arg11[%c22_74, %c0_75] : memref<32x32xf32, #tpu.memory_space<vmem>>, vector<2x32xf32>
    tpu.vector_store %arg11[%c22_74, %c0_75], %238 {strides = array<i32>} : memref<32x32xf32, #tpu.memory_space<vmem>>, vector<2x32xf32>,
    %c24 = arith.constant 24 : index
    %c0_76 = arith.constant 0 : index
    %240 = vector.load %arg10[%c24, %c0_76] : memref<32x128xf32, #tpu.memory_space<vmem>>, vector<2x128xf32>
    %cst_77 = arith.constant dense<0.000000e+00> : vector<2x128xf32>
    %241 = tpu.matmul %238, %7, %cst_77 {dimension_numbers = #tpu.dot_dimension_numbers<[1], [0], [0], [1], [0, 0, 1, 1], [], []>} : vector<2x32xf32>, vector<32x128xf32>, vector<2x128xf32> -> vector<2x128xf32>
    %242 = arith.addf %240, %241 : vector<2x128xf32>
    %243 = arith.negf %242 : vector<2x128xf32>
    %244 = math.exp %243 : vector<2x128xf32>
    %cst_78 = arith.constant 1.000000e+00 : f32
    %245 = vector.broadcast %cst_78 : f32 to vector<2x128xf32>
    %246 = arith.addf %245, %244 : vector<2x128xf32>
    %247 = arith.divf %245, %246 : vector<2x128xf32>
    %248 = math.tanh %242 : vector<2x128xf32>
    %249 = vector.extract_strided_slice %247 {offsets = [0, 0], sizes = [2, 32], strides = [1, 1]} : vector<2x128xf32> to vector<2x32xf32>
    %250 = vector.extract_strided_slice %247 {offsets = [0, 32], sizes = [2, 32], strides = [1, 1]} : vector<2x128xf32> to vector<2x32xf32>
    %251 = vector.extract_strided_slice %248 {offsets = [0, 64], sizes = [2, 32], strides = [1, 1]} : vector<2x128xf32> to vector<2x32xf32>
    %252 = vector.extract_strided_slice %247 {offsets = [0, 96], sizes = [2, 32], strides = [1, 1]} : vector<2x128xf32> to vector<2x32xf32>
    %253 = arith.mulf %250, %236 : vector<2x32xf32>
    %254 = arith.mulf %249, %251 : vector<2x32xf32>
    %255 = arith.addf %253, %254 : vector<2x32xf32>
    %256 = math.tanh %255 : vector<2x32xf32>
    %257 = arith.mulf %252, %256 : vector<2x32xf32>
    %c24_79 = arith.constant 24 : index
    %c0_80 = arith.constant 0 : index
    %258 = vector.load %arg11[%c24_79, %c0_80] : memref<32x32xf32, #tpu.memory_space<vmem>>, vector<2x32xf32>
    tpu.vector_store %arg11[%c24_79, %c0_80], %257 {strides = array<i32>} : memref<32x32xf32, #tpu.memory_space<vmem>>, vector<2x32xf32>,
    %c26 = arith.constant 26 : index
    %c0_81 = arith.constant 0 : index
    %259 = vector.load %arg10[%c26, %c0_81] : memref<32x128xf32, #tpu.memory_space<vmem>>, vector<2x128xf32>
    %cst_82 = arith.constant dense<0.000000e+00> : vector<2x128xf32>
    %260 = tpu.matmul %257, %7, %cst_82 {dimension_numbers = #tpu.dot_dimension_numbers<[1], [0], [0], [1], [0, 0, 1, 1], [], []>} : vector<2x32xf32>, vector<32x128xf32>, vector<2x128xf32> -> vector<2x128xf32>
    %261 = arith.addf %259, %260 : vector<2x128xf32>
    %262 = arith.negf %261 : vector<2x128xf32>
    %263 = math.exp %262 : vector<2x128xf32>
    %cst_83 = arith.constant 1.000000e+00 : f32
    %264 = vector.broadcast %cst_83 : f32 to vector<2x128xf32>
    %265 = arith.addf %264, %263 : vector<2x128xf32>
    %266 = arith.divf %264, %265 : vector<2x128xf32>
    %267 = math.tanh %261 : vector<2x128xf32>
    %268 = vector.extract_strided_slice %266 {offsets = [0, 0], sizes = [2, 32], strides = [1, 1]} : vector<2x128xf32> to vector<2x32xf32>
    %269 = vector.extract_strided_slice %266 {offsets = [0, 32], sizes = [2, 32], strides = [1, 1]} : vector<2x128xf32> to vector<2x32xf32>
    %270 = vector.extract_strided_slice %267 {offsets = [0, 64], sizes = [2, 32], strides = [1, 1]} : vector<2x128xf32> to vector<2x32xf32>
    %271 = vector.extract_strided_slice %266 {offsets = [0, 96], sizes = [2, 32], strides = [1, 1]} : vector<2x128xf32> to vector<2x32xf32>
    %272 = arith.mulf %269, %255 : vector<2x32xf32>
    %273 = arith.mulf %268, %270 : vector<2x32xf32>
    %274 = arith.addf %272, %273 : vector<2x32xf32>
    %275 = math.tanh %274 : vector<2x32xf32>
    %276 = arith.mulf %271, %275 : vector<2x32xf32>
    %c26_84 = arith.constant 26 : index
    %c0_85 = arith.constant 0 : index
    %277 = vector.load %arg11[%c26_84, %c0_85] : memref<32x32xf32, #tpu.memory_space<vmem>>, vector<2x32xf32>
    tpu.vector_store %arg11[%c26_84, %c0_85], %276 {strides = array<i32>} : memref<32x32xf32, #tpu.memory_space<vmem>>, vector<2x32xf32>,
    %c28 = arith.constant 28 : index
    %c0_86 = arith.constant 0 : index
    %278 = vector.load %arg10[%c28, %c0_86] : memref<32x128xf32, #tpu.memory_space<vmem>>, vector<2x128xf32>
    %cst_87 = arith.constant dense<0.000000e+00> : vector<2x128xf32>
    %279 = tpu.matmul %276, %7, %cst_87 {dimension_numbers = #tpu.dot_dimension_numbers<[1], [0], [0], [1], [0, 0, 1, 1], [], []>} : vector<2x32xf32>, vector<32x128xf32>, vector<2x128xf32> -> vector<2x128xf32>
    %280 = arith.addf %278, %279 : vector<2x128xf32>
    %281 = arith.negf %280 : vector<2x128xf32>
    %282 = math.exp %281 : vector<2x128xf32>
    %cst_88 = arith.constant 1.000000e+00 : f32
    %283 = vector.broadcast %cst_88 : f32 to vector<2x128xf32>
    %284 = arith.addf %283, %282 : vector<2x128xf32>
    %285 = arith.divf %283, %284 : vector<2x128xf32>
    %286 = math.tanh %280 : vector<2x128xf32>
    %287 = vector.extract_strided_slice %285 {offsets = [0, 0], sizes = [2, 32], strides = [1, 1]} : vector<2x128xf32> to vector<2x32xf32>
    %288 = vector.extract_strided_slice %285 {offsets = [0, 32], sizes = [2, 32], strides = [1, 1]} : vector<2x128xf32> to vector<2x32xf32>
    %289 = vector.extract_strided_slice %286 {offsets = [0, 64], sizes = [2, 32], strides = [1, 1]} : vector<2x128xf32> to vector<2x32xf32>
    %290 = vector.extract_strided_slice %285 {offsets = [0, 96], sizes = [2, 32], strides = [1, 1]} : vector<2x128xf32> to vector<2x32xf32>
    %291 = arith.mulf %288, %274 : vector<2x32xf32>
    %292 = arith.mulf %287, %289 : vector<2x32xf32>
    %293 = arith.addf %291, %292 : vector<2x32xf32>
    %294 = math.tanh %293 : vector<2x32xf32>
    %295 = arith.mulf %290, %294 : vector<2x32xf32>
    %c28_89 = arith.constant 28 : index
    %c0_90 = arith.constant 0 : index
    %296 = vector.load %arg11[%c28_89, %c0_90] : memref<32x32xf32, #tpu.memory_space<vmem>>, vector<2x32xf32>
    tpu.vector_store %arg11[%c28_89, %c0_90], %295 {strides = array<i32>} : memref<32x32xf32, #tpu.memory_space<vmem>>, vector<2x32xf32>,
    %c30 = arith.constant 30 : index
    %c0_91 = arith.constant 0 : index
    %297 = vector.load %arg10[%c30, %c0_91] : memref<32x128xf32, #tpu.memory_space<vmem>>, vector<2x128xf32>
    %cst_92 = arith.constant dense<0.000000e+00> : vector<2x128xf32>
    %298 = tpu.matmul %295, %7, %cst_92 {dimension_numbers = #tpu.dot_dimension_numbers<[1], [0], [0], [1], [0, 0, 1, 1], [], []>} : vector<2x32xf32>, vector<32x128xf32>, vector<2x128xf32> -> vector<2x128xf32>
    %299 = arith.addf %297, %298 : vector<2x128xf32>
    %300 = arith.negf %299 : vector<2x128xf32>
    %301 = math.exp %300 : vector<2x128xf32>
    %cst_93 = arith.constant 1.000000e+00 : f32
    %302 = vector.broadcast %cst_93 : f32 to vector<2x128xf32>
    %303 = arith.addf %302, %301 : vector<2x128xf32>
    %304 = arith.divf %302, %303 : vector<2x128xf32>
    %305 = math.tanh %299 : vector<2x128xf32>
    %306 = vector.extract_strided_slice %304 {offsets = [0, 0], sizes = [2, 32], strides = [1, 1]} : vector<2x128xf32> to vector<2x32xf32>
    %307 = vector.extract_strided_slice %304 {offsets = [0, 32], sizes = [2, 32], strides = [1, 1]} : vector<2x128xf32> to vector<2x32xf32>
    %308 = vector.extract_strided_slice %305 {offsets = [0, 64], sizes = [2, 32], strides = [1, 1]} : vector<2x128xf32> to vector<2x32xf32>
    %309 = vector.extract_strided_slice %304 {offsets = [0, 96], sizes = [2, 32], strides = [1, 1]} : vector<2x128xf32> to vector<2x32xf32>
    %310 = arith.mulf %307, %293 : vector<2x32xf32>
    %311 = arith.mulf %306, %308 : vector<2x32xf32>
    %312 = arith.addf %310, %311 : vector<2x32xf32>
    %313 = math.tanh %312 : vector<2x32xf32>
    %314 = arith.mulf %309, %313 : vector<2x32xf32>
    %c30_94 = arith.constant 30 : index
    %c0_95 = arith.constant 0 : index
    %315 = vector.load %arg11[%c30_94, %c0_95] : memref<32x32xf32, #tpu.memory_space<vmem>>, vector<2x32xf32>
    tpu.vector_store %arg11[%c30_94, %c0_95], %314 {strides = array<i32>} : memref<32x32xf32, #tpu.memory_space<vmem>>, vector<2x32xf32>,
    %c0_96 = arith.constant 0 : index
    %c0_97 = arith.constant 0 : index
    %316 = vector.load %arg11[%c0_96, %c0_97] : memref<32x32xf32, #tpu.memory_space<vmem>>, vector<32x32xf32>
    %c0_98 = arith.constant 0 : index
    %c0_99 = arith.constant 0 : index
    %317 = vector.load %arg6[%c0_98, %c0_99] : memref<32x128xf32, #tpu.memory_space<vmem>>, vector<32x128xf32>
    %cst_100 = arith.constant dense<0.000000e+00> : vector<32x128xf32>
    %318 = tpu.matmul %316, %317, %cst_100 {dimension_numbers = #tpu.dot_dimension_numbers<[1], [0], [0], [1], [0, 0, 1, 1], [], []>} : vector<32x32xf32>, vector<32x128xf32>, vector<32x128xf32> -> vector<32x128xf32>
    %c0_101 = arith.constant 0 : index
    %c0_102 = arith.constant 0 : index
    %319 = vector.load %arg8[%c0_101, %c0_102] : memref<1x128xf32, #tpu.memory_space<vmem>>, vector<1x128xf32>
    %320 = vector.broadcast %319 : vector<1x128xf32> to vector<32x128xf32>
    %321 = arith.addf %318, %320 : vector<32x128xf32>
    %c0_103 = arith.constant 0 : index
    %c0_104 = arith.constant 0 : index
    %322 = vector.load %arg10[%c0_103, %c0_104] : memref<32x128xf32, #tpu.memory_space<vmem>>, vector<32x128xf32>
    tpu.vector_store %arg10[%c0_103, %c0_104], %321 {strides = array<i32>} : memref<32x128xf32, #tpu.memory_space<vmem>>, vector<32x128xf32>,
    %c0_105 = arith.constant 0 : index
    %c0_106 = arith.constant 0 : index
    %323 = vector.load %arg7[%c0_105, %c0_106] : memref<32x128xf32, #tpu.memory_space<vmem>>, vector<32x128xf32>
    %c1 = arith.constant 1 : index
    %c0_107 = arith.constant 0 : index
    %c0_108 = arith.constant 0 : index
    %324 = vector.load %arg1[%c1, %c0_107, %c0_108] : memref<2x2x32xf32, #tpu.memory_space<vmem>>, vector<1x2x32xf32>
    %325 = vector.shape_cast %324 : vector<1x2x32xf32> to vector<2x32xf32>
    %c1_109 = arith.constant 1 : index
    %c0_110 = arith.constant 0 : index
    %c0_111 = arith.constant 0 : index
    %326 = vector.load %arg2[%c1_109, %c0_110, %c0_111] : memref<2x2x32xf32, #tpu.memory_space<vmem>>, vector<1x2x32xf32>
    %327 = vector.shape_cast %326 : vector<1x2x32xf32> to vector<2x32xf32>
    %c0_112 = arith.constant 0 : index
    %c0_113 = arith.constant 0 : index
    %328 = vector.load %arg10[%c0_112, %c0_113] : memref<32x128xf32, #tpu.memory_space<vmem>>, vector<2x128xf32>
    %cst_114 = arith.constant dense<0.000000e+00> : vector<2x128xf32>
    %329 = tpu.matmul %325, %323, %cst_114 {dimension_numbers = #tpu.dot_dimension_numbers<[1], [0], [0], [1], [0, 0, 1, 1], [], []>} : vector<2x32xf32>, vector<32x128xf32>, vector<2x128xf32> -> vector<2x128xf32>
    %330 = arith.addf %328, %329 : vector<2x128xf32>
    %331 = arith.negf %330 : vector<2x128xf32>
    %332 = math.exp %331 : vector<2x128xf32>
    %cst_115 = arith.constant 1.000000e+00 : f32
    %333 = vector.broadcast %cst_115 : f32 to vector<2x128xf32>
    %334 = arith.addf %333, %332 : vector<2x128xf32>
    %335 = arith.divf %333, %334 : vector<2x128xf32>
    %336 = math.tanh %330 : vector<2x128xf32>
    %337 = vector.extract_strided_slice %335 {offsets = [0, 0], sizes = [2, 32], strides = [1, 1]} : vector<2x128xf32> to vector<2x32xf32>
    %338 = vector.extract_strided_slice %335 {offsets = [0, 32], sizes = [2, 32], strides = [1, 1]} : vector<2x128xf32> to vector<2x32xf32>
    %339 = vector.extract_strided_slice %336 {offsets = [0, 64], sizes = [2, 32], strides = [1, 1]} : vector<2x128xf32> to vector<2x32xf32>
    %340 = vector.extract_strided_slice %335 {offsets = [0, 96], sizes = [2, 32], strides = [1, 1]} : vector<2x128xf32> to vector<2x32xf32>
    %341 = arith.mulf %338, %327 : vector<2x32xf32>
    %342 = arith.mulf %337, %339 : vector<2x32xf32>
    %343 = arith.addf %341, %342 : vector<2x32xf32>
    %344 = math.tanh %343 : vector<2x32xf32>
    %345 = arith.mulf %340, %344 : vector<2x32xf32>
    %c0_116 = arith.constant 0 : index
    %c0_117 = arith.constant 0 : index
    %346 = vector.load %arg9[%c0_116, %c0_117] : memref<32x32xf32, #tpu.memory_space<vmem>>, vector<2x32xf32>
    tpu.vector_store %arg9[%c0_116, %c0_117], %345 {strides = array<i32>} : memref<32x32xf32, #tpu.memory_space<vmem>>, vector<2x32xf32>,
    %c2_118 = arith.constant 2 : index
    %c0_119 = arith.constant 0 : index
    %347 = vector.load %arg10[%c2_118, %c0_119] : memref<32x128xf32, #tpu.memory_space<vmem>>, vector<2x128xf32>
    %cst_120 = arith.constant dense<0.000000e+00> : vector<2x128xf32>
    %348 = tpu.matmul %345, %323, %cst_120 {dimension_numbers = #tpu.dot_dimension_numbers<[1], [0], [0], [1], [0, 0, 1, 1], [], []>} : vector<2x32xf32>, vector<32x128xf32>, vector<2x128xf32> -> vector<2x128xf32>
    %349 = arith.addf %347, %348 : vector<2x128xf32>
    %350 = arith.negf %349 : vector<2x128xf32>
    %351 = math.exp %350 : vector<2x128xf32>
    %cst_121 = arith.constant 1.000000e+00 : f32
    %352 = vector.broadcast %cst_121 : f32 to vector<2x128xf32>
    %353 = arith.addf %352, %351 : vector<2x128xf32>
    %354 = arith.divf %352, %353 : vector<2x128xf32>
    %355 = math.tanh %349 : vector<2x128xf32>
    %356 = vector.extract_strided_slice %354 {offsets = [0, 0], sizes = [2, 32], strides = [1, 1]} : vector<2x128xf32> to vector<2x32xf32>
    %357 = vector.extract_strided_slice %354 {offsets = [0, 32], sizes = [2, 32], strides = [1, 1]} : vector<2x128xf32> to vector<2x32xf32>
    %358 = vector.extract_strided_slice %355 {offsets = [0, 64], sizes = [2, 32], strides = [1, 1]} : vector<2x128xf32> to vector<2x32xf32>
    %359 = vector.extract_strided_slice %354 {offsets = [0, 96], sizes = [2, 32], strides = [1, 1]} : vector<2x128xf32> to vector<2x32xf32>
    %360 = arith.mulf %357, %343 : vector<2x32xf32>
    %361 = arith.mulf %356, %358 : vector<2x32xf32>
    %362 = arith.addf %360, %361 : vector<2x32xf32>
    %363 = math.tanh %362 : vector<2x32xf32>
    %364 = arith.mulf %359, %363 : vector<2x32xf32>
    %c2_122 = arith.constant 2 : index
    %c0_123 = arith.constant 0 : index
    %365 = vector.load %arg9[%c2_122, %c0_123] : memref<32x32xf32, #tpu.memory_space<vmem>>, vector<2x32xf32>
    tpu.vector_store %arg9[%c2_122, %c0_123], %364 {strides = array<i32>} : memref<32x32xf32, #tpu.memory_space<vmem>>, vector<2x32xf32>,
    %c4_124 = arith.constant 4 : index
    %c0_125 = arith.constant 0 : index
    %366 = vector.load %arg10[%c4_124, %c0_125] : memref<32x128xf32, #tpu.memory_space<vmem>>, vector<2x128xf32>
    %cst_126 = arith.constant dense<0.000000e+00> : vector<2x128xf32>
    %367 = tpu.matmul %364, %323, %cst_126 {dimension_numbers = #tpu.dot_dimension_numbers<[1], [0], [0], [1], [0, 0, 1, 1], [], []>} : vector<2x32xf32>, vector<32x128xf32>, vector<2x128xf32> -> vector<2x128xf32>
    %368 = arith.addf %366, %367 : vector<2x128xf32>
    %369 = arith.negf %368 : vector<2x128xf32>
    %370 = math.exp %369 : vector<2x128xf32>
    %cst_127 = arith.constant 1.000000e+00 : f32
    %371 = vector.broadcast %cst_127 : f32 to vector<2x128xf32>
    %372 = arith.addf %371, %370 : vector<2x128xf32>
    %373 = arith.divf %371, %372 : vector<2x128xf32>
    %374 = math.tanh %368 : vector<2x128xf32>
    %375 = vector.extract_strided_slice %373 {offsets = [0, 0], sizes = [2, 32], strides = [1, 1]} : vector<2x128xf32> to vector<2x32xf32>
    %376 = vector.extract_strided_slice %373 {offsets = [0, 32], sizes = [2, 32], strides = [1, 1]} : vector<2x128xf32> to vector<2x32xf32>
    %377 = vector.extract_strided_slice %374 {offsets = [0, 64], sizes = [2, 32], strides = [1, 1]} : vector<2x128xf32> to vector<2x32xf32>
    %378 = vector.extract_strided_slice %373 {offsets = [0, 96], sizes = [2, 32], strides = [1, 1]} : vector<2x128xf32> to vector<2x32xf32>
    %379 = arith.mulf %376, %362 : vector<2x32xf32>
    %380 = arith.mulf %375, %377 : vector<2x32xf32>
    %381 = arith.addf %379, %380 : vector<2x32xf32>
    %382 = math.tanh %381 : vector<2x32xf32>
    %383 = arith.mulf %378, %382 : vector<2x32xf32>
    %c4_128 = arith.constant 4 : index
    %c0_129 = arith.constant 0 : index
    %384 = vector.load %arg9[%c4_128, %c0_129] : memref<32x32xf32, #tpu.memory_space<vmem>>, vector<2x32xf32>
    tpu.vector_store %arg9[%c4_128, %c0_129], %383 {strides = array<i32>} : memref<32x32xf32, #tpu.memory_space<vmem>>, vector<2x32xf32>,
    %c6_130 = arith.constant 6 : index
    %c0_131 = arith.constant 0 : index
    %385 = vector.load %arg10[%c6_130, %c0_131] : memref<32x128xf32, #tpu.memory_space<vmem>>, vector<2x128xf32>
    %cst_132 = arith.constant dense<0.000000e+00> : vector<2x128xf32>
    %386 = tpu.matmul %383, %323, %cst_132 {dimension_numbers = #tpu.dot_dimension_numbers<[1], [0], [0], [1], [0, 0, 1, 1], [], []>} : vector<2x32xf32>, vector<32x128xf32>, vector<2x128xf32> -> vector<2x128xf32>
    %387 = arith.addf %385, %386 : vector<2x128xf32>
    %388 = arith.negf %387 : vector<2x128xf32>
    %389 = math.exp %388 : vector<2x128xf32>
    %cst_133 = arith.constant 1.000000e+00 : f32
    %390 = vector.broadcast %cst_133 : f32 to vector<2x128xf32>
    %391 = arith.addf %390, %389 : vector<2x128xf32>
    %392 = arith.divf %390, %391 : vector<2x128xf32>
    %393 = math.tanh %387 : vector<2x128xf32>
    %394 = vector.extract_strided_slice %392 {offsets = [0, 0], sizes = [2, 32], strides = [1, 1]} : vector<2x128xf32> to vector<2x32xf32>
    %395 = vector.extract_strided_slice %392 {offsets = [0, 32], sizes = [2, 32], strides = [1, 1]} : vector<2x128xf32> to vector<2x32xf32>
    %396 = vector.extract_strided_slice %393 {offsets = [0, 64], sizes = [2, 32], strides = [1, 1]} : vector<2x128xf32> to vector<2x32xf32>
    %397 = vector.extract_strided_slice %392 {offsets = [0, 96], sizes = [2, 32], strides = [1, 1]} : vector<2x128xf32> to vector<2x32xf32>
    %398 = arith.mulf %395, %381 : vector<2x32xf32>
    %399 = arith.mulf %394, %396 : vector<2x32xf32>
    %400 = arith.addf %398, %399 : vector<2x32xf32>
    %401 = math.tanh %400 : vector<2x32xf32>
    %402 = arith.mulf %397, %401 : vector<2x32xf32>
    %c6_134 = arith.constant 6 : index
    %c0_135 = arith.constant 0 : index
    %403 = vector.load %arg9[%c6_134, %c0_135] : memref<32x32xf32, #tpu.memory_space<vmem>>, vector<2x32xf32>
    tpu.vector_store %arg9[%c6_134, %c0_135], %402 {strides = array<i32>} : memref<32x32xf32, #tpu.memory_space<vmem>>, vector<2x32xf32>,
    %c8_136 = arith.constant 8 : index
    %c0_137 = arith.constant 0 : index
    %404 = vector.load %arg10[%c8_136, %c0_137] : memref<32x128xf32, #tpu.memory_space<vmem>>, vector<2x128xf32>
    %cst_138 = arith.constant dense<0.000000e+00> : vector<2x128xf32>
    %405 = tpu.matmul %402, %323, %cst_138 {dimension_numbers = #tpu.dot_dimension_numbers<[1], [0], [0], [1], [0, 0, 1, 1], [], []>} : vector<2x32xf32>, vector<32x128xf32>, vector<2x128xf32> -> vector<2x128xf32>
    %406 = arith.addf %404, %405 : vector<2x128xf32>
    %407 = arith.negf %406 : vector<2x128xf32>
    %408 = math.exp %407 : vector<2x128xf32>
    %cst_139 = arith.constant 1.000000e+00 : f32
    %409 = vector.broadcast %cst_139 : f32 to vector<2x128xf32>
    %410 = arith.addf %409, %408 : vector<2x128xf32>
    %411 = arith.divf %409, %410 : vector<2x128xf32>
    %412 = math.tanh %406 : vector<2x128xf32>
    %413 = vector.extract_strided_slice %411 {offsets = [0, 0], sizes = [2, 32], strides = [1, 1]} : vector<2x128xf32> to vector<2x32xf32>
    %414 = vector.extract_strided_slice %411 {offsets = [0, 32], sizes = [2, 32], strides = [1, 1]} : vector<2x128xf32> to vector<2x32xf32>
    %415 = vector.extract_strided_slice %412 {offsets = [0, 64], sizes = [2, 32], strides = [1, 1]} : vector<2x128xf32> to vector<2x32xf32>
    %416 = vector.extract_strided_slice %411 {offsets = [0, 96], sizes = [2, 32], strides = [1, 1]} : vector<2x128xf32> to vector<2x32xf32>
    %417 = arith.mulf %414, %400 : vector<2x32xf32>
    %418 = arith.mulf %413, %415 : vector<2x32xf32>
    %419 = arith.addf %417, %418 : vector<2x32xf32>
    %420 = math.tanh %419 : vector<2x32xf32>
    %421 = arith.mulf %416, %420 : vector<2x32xf32>
    %c8_140 = arith.constant 8 : index
    %c0_141 = arith.constant 0 : index
    %422 = vector.load %arg9[%c8_140, %c0_141] : memref<32x32xf32, #tpu.memory_space<vmem>>, vector<2x32xf32>
    tpu.vector_store %arg9[%c8_140, %c0_141], %421 {strides = array<i32>} : memref<32x32xf32, #tpu.memory_space<vmem>>, vector<2x32xf32>,
    %c10_142 = arith.constant 10 : index
    %c0_143 = arith.constant 0 : index
    %423 = vector.load %arg10[%c10_142, %c0_143] : memref<32x128xf32, #tpu.memory_space<vmem>>, vector<2x128xf32>
    %cst_144 = arith.constant dense<0.000000e+00> : vector<2x128xf32>
    %424 = tpu.matmul %421, %323, %cst_144 {dimension_numbers = #tpu.dot_dimension_numbers<[1], [0], [0], [1], [0, 0, 1, 1], [], []>} : vector<2x32xf32>, vector<32x128xf32>, vector<2x128xf32> -> vector<2x128xf32>
    %425 = arith.addf %423, %424 : vector<2x128xf32>
    %426 = arith.negf %425 : vector<2x128xf32>
    %427 = math.exp %426 : vector<2x128xf32>
    %cst_145 = arith.constant 1.000000e+00 : f32
    %428 = vector.broadcast %cst_145 : f32 to vector<2x128xf32>
    %429 = arith.addf %428, %427 : vector<2x128xf32>
    %430 = arith.divf %428, %429 : vector<2x128xf32>
    %431 = math.tanh %425 : vector<2x128xf32>
    %432 = vector.extract_strided_slice %430 {offsets = [0, 0], sizes = [2, 32], strides = [1, 1]} : vector<2x128xf32> to vector<2x32xf32>
    %433 = vector.extract_strided_slice %430 {offsets = [0, 32], sizes = [2, 32], strides = [1, 1]} : vector<2x128xf32> to vector<2x32xf32>
    %434 = vector.extract_strided_slice %431 {offsets = [0, 64], sizes = [2, 32], strides = [1, 1]} : vector<2x128xf32> to vector<2x32xf32>
    %435 = vector.extract_strided_slice %430 {offsets = [0, 96], sizes = [2, 32], strides = [1, 1]} : vector<2x128xf32> to vector<2x32xf32>
    %436 = arith.mulf %433, %419 : vector<2x32xf32>
    %437 = arith.mulf %432, %434 : vector<2x32xf32>
    %438 = arith.addf %436, %437 : vector<2x32xf32>
    %439 = math.tanh %438 : vector<2x32xf32>
    %440 = arith.mulf %435, %439 : vector<2x32xf32>
    %c10_146 = arith.constant 10 : index
    %c0_147 = arith.constant 0 : index
    %441 = vector.load %arg9[%c10_146, %c0_147] : memref<32x32xf32, #tpu.memory_space<vmem>>, vector<2x32xf32>
    tpu.vector_store %arg9[%c10_146, %c0_147], %440 {strides = array<i32>} : memref<32x32xf32, #tpu.memory_space<vmem>>, vector<2x32xf32>,
    %c12_148 = arith.constant 12 : index
    %c0_149 = arith.constant 0 : index
    %442 = vector.load %arg10[%c12_148, %c0_149] : memref<32x128xf32, #tpu.memory_space<vmem>>, vector<2x128xf32>
    %cst_150 = arith.constant dense<0.000000e+00> : vector<2x128xf32>
    %443 = tpu.matmul %440, %323, %cst_150 {dimension_numbers = #tpu.dot_dimension_numbers<[1], [0], [0], [1], [0, 0, 1, 1], [], []>} : vector<2x32xf32>, vector<32x128xf32>, vector<2x128xf32> -> vector<2x128xf32>
    %444 = arith.addf %442, %443 : vector<2x128xf32>
    %445 = arith.negf %444 : vector<2x128xf32>
    %446 = math.exp %445 : vector<2x128xf32>
    %cst_151 = arith.constant 1.000000e+00 : f32
    %447 = vector.broadcast %cst_151 : f32 to vector<2x128xf32>
    %448 = arith.addf %447, %446 : vector<2x128xf32>
    %449 = arith.divf %447, %448 : vector<2x128xf32>
    %450 = math.tanh %444 : vector<2x128xf32>
    %451 = vector.extract_strided_slice %449 {offsets = [0, 0], sizes = [2, 32], strides = [1, 1]} : vector<2x128xf32> to vector<2x32xf32>
    %452 = vector.extract_strided_slice %449 {offsets = [0, 32], sizes = [2, 32], strides = [1, 1]} : vector<2x128xf32> to vector<2x32xf32>
    %453 = vector.extract_strided_slice %450 {offsets = [0, 64], sizes = [2, 32], strides = [1, 1]} : vector<2x128xf32> to vector<2x32xf32>
    %454 = vector.extract_strided_slice %449 {offsets = [0, 96], sizes = [2, 32], strides = [1, 1]} : vector<2x128xf32> to vector<2x32xf32>
    %455 = arith.mulf %452, %438 : vector<2x32xf32>
    %456 = arith.mulf %451, %453 : vector<2x32xf32>
    %457 = arith.addf %455, %456 : vector<2x32xf32>
    %458 = math.tanh %457 : vector<2x32xf32>
    %459 = arith.mulf %454, %458 : vector<2x32xf32>
    %c12_152 = arith.constant 12 : index
    %c0_153 = arith.constant 0 : index
    %460 = vector.load %arg9[%c12_152, %c0_153] : memref<32x32xf32, #tpu.memory_space<vmem>>, vector<2x32xf32>
    tpu.vector_store %arg9[%c12_152, %c0_153], %459 {strides = array<i32>} : memref<32x32xf32, #tpu.memory_space<vmem>>, vector<2x32xf32>,
    %c14_154 = arith.constant 14 : index
    %c0_155 = arith.constant 0 : index
    %461 = vector.load %arg10[%c14_154, %c0_155] : memref<32x128xf32, #tpu.memory_space<vmem>>, vector<2x128xf32>
    %cst_156 = arith.constant dense<0.000000e+00> : vector<2x128xf32>
    %462 = tpu.matmul %459, %323, %cst_156 {dimension_numbers = #tpu.dot_dimension_numbers<[1], [0], [0], [1], [0, 0, 1, 1], [], []>} : vector<2x32xf32>, vector<32x128xf32>, vector<2x128xf32> -> vector<2x128xf32>
    %463 = arith.addf %461, %462 : vector<2x128xf32>
    %464 = arith.negf %463 : vector<2x128xf32>
    %465 = math.exp %464 : vector<2x128xf32>
    %cst_157 = arith.constant 1.000000e+00 : f32
    %466 = vector.broadcast %cst_157 : f32 to vector<2x128xf32>
    %467 = arith.addf %466, %465 : vector<2x128xf32>
    %468 = arith.divf %466, %467 : vector<2x128xf32>
    %469 = math.tanh %463 : vector<2x128xf32>
    %470 = vector.extract_strided_slice %468 {offsets = [0, 0], sizes = [2, 32], strides = [1, 1]} : vector<2x128xf32> to vector<2x32xf32>
    %471 = vector.extract_strided_slice %468 {offsets = [0, 32], sizes = [2, 32], strides = [1, 1]} : vector<2x128xf32> to vector<2x32xf32>
    %472 = vector.extract_strided_slice %469 {offsets = [0, 64], sizes = [2, 32], strides = [1, 1]} : vector<2x128xf32> to vector<2x32xf32>
    %473 = vector.extract_strided_slice %468 {offsets = [0, 96], sizes = [2, 32], strides = [1, 1]} : vector<2x128xf32> to vector<2x32xf32>
    %474 = arith.mulf %471, %457 : vector<2x32xf32>
    %475 = arith.mulf %470, %472 : vector<2x32xf32>
    %476 = arith.addf %474, %475 : vector<2x32xf32>
    %477 = math.tanh %476 : vector<2x32xf32>
    %478 = arith.mulf %473, %477 : vector<2x32xf32>
    %c14_158 = arith.constant 14 : index
    %c0_159 = arith.constant 0 : index
    %479 = vector.load %arg9[%c14_158, %c0_159] : memref<32x32xf32, #tpu.memory_space<vmem>>, vector<2x32xf32>
    tpu.vector_store %arg9[%c14_158, %c0_159], %478 {strides = array<i32>} : memref<32x32xf32, #tpu.memory_space<vmem>>, vector<2x32xf32>,
    %c16_160 = arith.constant 16 : index
    %c0_161 = arith.constant 0 : index
    %480 = vector.load %arg10[%c16_160, %c0_161] : memref<32x128xf32, #tpu.memory_space<vmem>>, vector<2x128xf32>
    %cst_162 = arith.constant dense<0.000000e+00> : vector<2x128xf32>
    %481 = tpu.matmul %478, %323, %cst_162 {dimension_numbers = #tpu.dot_dimension_numbers<[1], [0], [0], [1], [0, 0, 1, 1], [], []>} : vector<2x32xf32>, vector<32x128xf32>, vector<2x128xf32> -> vector<2x128xf32>
    %482 = arith.addf %480, %481 : vector<2x128xf32>
    %483 = arith.negf %482 : vector<2x128xf32>
    %484 = math.exp %483 : vector<2x128xf32>
    %cst_163 = arith.constant 1.000000e+00 : f32
    %485 = vector.broadcast %cst_163 : f32 to vector<2x128xf32>
    %486 = arith.addf %485, %484 : vector<2x128xf32>
    %487 = arith.divf %485, %486 : vector<2x128xf32>
    %488 = math.tanh %482 : vector<2x128xf32>
    %489 = vector.extract_strided_slice %487 {offsets = [0, 0], sizes = [2, 32], strides = [1, 1]} : vector<2x128xf32> to vector<2x32xf32>
    %490 = vector.extract_strided_slice %487 {offsets = [0, 32], sizes = [2, 32], strides = [1, 1]} : vector<2x128xf32> to vector<2x32xf32>
    %491 = vector.extract_strided_slice %488 {offsets = [0, 64], sizes = [2, 32], strides = [1, 1]} : vector<2x128xf32> to vector<2x32xf32>
    %492 = vector.extract_strided_slice %487 {offsets = [0, 96], sizes = [2, 32], strides = [1, 1]} : vector<2x128xf32> to vector<2x32xf32>
    %493 = arith.mulf %490, %476 : vector<2x32xf32>
    %494 = arith.mulf %489, %491 : vector<2x32xf32>
    %495 = arith.addf %493, %494 : vector<2x32xf32>
    %496 = math.tanh %495 : vector<2x32xf32>
    %497 = arith.mulf %492, %496 : vector<2x32xf32>
    %c16_164 = arith.constant 16 : index
    %c0_165 = arith.constant 0 : index
    %498 = vector.load %arg9[%c16_164, %c0_165] : memref<32x32xf32, #tpu.memory_space<vmem>>, vector<2x32xf32>
    tpu.vector_store %arg9[%c16_164, %c0_165], %497 {strides = array<i32>} : memref<32x32xf32, #tpu.memory_space<vmem>>, vector<2x32xf32>,
    %c18_166 = arith.constant 18 : index
    %c0_167 = arith.constant 0 : index
    %499 = vector.load %arg10[%c18_166, %c0_167] : memref<32x128xf32, #tpu.memory_space<vmem>>, vector<2x128xf32>
    %cst_168 = arith.constant dense<0.000000e+00> : vector<2x128xf32>
    %500 = tpu.matmul %497, %323, %cst_168 {dimension_numbers = #tpu.dot_dimension_numbers<[1], [0], [0], [1], [0, 0, 1, 1], [], []>} : vector<2x32xf32>, vector<32x128xf32>, vector<2x128xf32> -> vector<2x128xf32>
    %501 = arith.addf %499, %500 : vector<2x128xf32>
    %502 = arith.negf %501 : vector<2x128xf32>
    %503 = math.exp %502 : vector<2x128xf32>
    %cst_169 = arith.constant 1.000000e+00 : f32
    %504 = vector.broadcast %cst_169 : f32 to vector<2x128xf32>
    %505 = arith.addf %504, %503 : vector<2x128xf32>
    %506 = arith.divf %504, %505 : vector<2x128xf32>
    %507 = math.tanh %501 : vector<2x128xf32>
    %508 = vector.extract_strided_slice %506 {offsets = [0, 0], sizes = [2, 32], strides = [1, 1]} : vector<2x128xf32> to vector<2x32xf32>
    %509 = vector.extract_strided_slice %506 {offsets = [0, 32], sizes = [2, 32], strides = [1, 1]} : vector<2x128xf32> to vector<2x32xf32>
    %510 = vector.extract_strided_slice %507 {offsets = [0, 64], sizes = [2, 32], strides = [1, 1]} : vector<2x128xf32> to vector<2x32xf32>
    %511 = vector.extract_strided_slice %506 {offsets = [0, 96], sizes = [2, 32], strides = [1, 1]} : vector<2x128xf32> to vector<2x32xf32>
    %512 = arith.mulf %509, %495 : vector<2x32xf32>
    %513 = arith.mulf %508, %510 : vector<2x32xf32>
    %514 = arith.addf %512, %513 : vector<2x32xf32>
    %515 = math.tanh %514 : vector<2x32xf32>
    %516 = arith.mulf %511, %515 : vector<2x32xf32>
    %c18_170 = arith.constant 18 : index
    %c0_171 = arith.constant 0 : index
    %517 = vector.load %arg9[%c18_170, %c0_171] : memref<32x32xf32, #tpu.memory_space<vmem>>, vector<2x32xf32>
    tpu.vector_store %arg9[%c18_170, %c0_171], %516 {strides = array<i32>} : memref<32x32xf32, #tpu.memory_space<vmem>>, vector<2x32xf32>,
    %c20_172 = arith.constant 20 : index
    %c0_173 = arith.constant 0 : index
    %518 = vector.load %arg10[%c20_172, %c0_173] : memref<32x128xf32, #tpu.memory_space<vmem>>, vector<2x128xf32>
    %cst_174 = arith.constant dense<0.000000e+00> : vector<2x128xf32>
    %519 = tpu.matmul %516, %323, %cst_174 {dimension_numbers = #tpu.dot_dimension_numbers<[1], [0], [0], [1], [0, 0, 1, 1], [], []>} : vector<2x32xf32>, vector<32x128xf32>, vector<2x128xf32> -> vector<2x128xf32>
    %520 = arith.addf %518, %519 : vector<2x128xf32>
    %521 = arith.negf %520 : vector<2x128xf32>
    %522 = math.exp %521 : vector<2x128xf32>
    %cst_175 = arith.constant 1.000000e+00 : f32
    %523 = vector.broadcast %cst_175 : f32 to vector<2x128xf32>
    %524 = arith.addf %523, %522 : vector<2x128xf32>
    %525 = arith.divf %523, %524 : vector<2x128xf32>
    %526 = math.tanh %520 : vector<2x128xf32>
    %527 = vector.extract_strided_slice %525 {offsets = [0, 0], sizes = [2, 32], strides = [1, 1]} : vector<2x128xf32> to vector<2x32xf32>
    %528 = vector.extract_strided_slice %525 {offsets = [0, 32], sizes = [2, 32], strides = [1, 1]} : vector<2x128xf32> to vector<2x32xf32>
    %529 = vector.extract_strided_slice %526 {offsets = [0, 64], sizes = [2, 32], strides = [1, 1]} : vector<2x128xf32> to vector<2x32xf32>
    %530 = vector.extract_strided_slice %525 {offsets = [0, 96], sizes = [2, 32], strides = [1, 1]} : vector<2x128xf32> to vector<2x32xf32>
    %531 = arith.mulf %528, %514 : vector<2x32xf32>
    %532 = arith.mulf %527, %529 : vector<2x32xf32>
    %533 = arith.addf %531, %532 : vector<2x32xf32>
    %534 = math.tanh %533 : vector<2x32xf32>
    %535 = arith.mulf %530, %534 : vector<2x32xf32>
    %c20_176 = arith.constant 20 : index
    %c0_177 = arith.constant 0 : index
    %536 = vector.load %arg9[%c20_176, %c0_177] : memref<32x32xf32, #tpu.memory_space<vmem>>, vector<2x32xf32>
    tpu.vector_store %arg9[%c20_176, %c0_177], %535 {strides = array<i32>} : memref<32x32xf32, #tpu.memory_space<vmem>>, vector<2x32xf32>,
    %c22_178 = arith.constant 22 : index
    %c0_179 = arith.constant 0 : index
    %537 = vector.load %arg10[%c22_178, %c0_179] : memref<32x128xf32, #tpu.memory_space<vmem>>, vector<2x128xf32>
    %cst_180 = arith.constant dense<0.000000e+00> : vector<2x128xf32>
    %538 = tpu.matmul %535, %323, %cst_180 {dimension_numbers = #tpu.dot_dimension_numbers<[1], [0], [0], [1], [0, 0, 1, 1], [], []>} : vector<2x32xf32>, vector<32x128xf32>, vector<2x128xf32> -> vector<2x128xf32>
    %539 = arith.addf %537, %538 : vector<2x128xf32>
    %540 = arith.negf %539 : vector<2x128xf32>
    %541 = math.exp %540 : vector<2x128xf32>
    %cst_181 = arith.constant 1.000000e+00 : f32
    %542 = vector.broadcast %cst_181 : f32 to vector<2x128xf32>
    %543 = arith.addf %542, %541 : vector<2x128xf32>
    %544 = arith.divf %542, %543 : vector<2x128xf32>
    %545 = math.tanh %539 : vector<2x128xf32>
    %546 = vector.extract_strided_slice %544 {offsets = [0, 0], sizes = [2, 32], strides = [1, 1]} : vector<2x128xf32> to vector<2x32xf32>
    %547 = vector.extract_strided_slice %544 {offsets = [0, 32], sizes = [2, 32], strides = [1, 1]} : vector<2x128xf32> to vector<2x32xf32>
    %548 = vector.extract_strided_slice %545 {offsets = [0, 64], sizes = [2, 32], strides = [1, 1]} : vector<2x128xf32> to vector<2x32xf32>
    %549 = vector.extract_strided_slice %544 {offsets = [0, 96], sizes = [2, 32], strides = [1, 1]} : vector<2x128xf32> to vector<2x32xf32>
    %550 = arith.mulf %547, %533 : vector<2x32xf32>
    %551 = arith.mulf %546, %548 : vector<2x32xf32>
    %552 = arith.addf %550, %551 : vector<2x32xf32>
    %553 = math.tanh %552 : vector<2x32xf32>
    %554 = arith.mulf %549, %553 : vector<2x32xf32>
    %c22_182 = arith.constant 22 : index
    %c0_183 = arith.constant 0 : index
    %555 = vector.load %arg9[%c22_182, %c0_183] : memref<32x32xf32, #tpu.memory_space<vmem>>, vector<2x32xf32>
    tpu.vector_store %arg9[%c22_182, %c0_183], %554 {strides = array<i32>} : memref<32x32xf32, #tpu.memory_space<vmem>>, vector<2x32xf32>,
    %c24_184 = arith.constant 24 : index
    %c0_185 = arith.constant 0 : index
    %556 = vector.load %arg10[%c24_184, %c0_185] : memref<32x128xf32, #tpu.memory_space<vmem>>, vector<2x128xf32>
    %cst_186 = arith.constant dense<0.000000e+00> : vector<2x128xf32>
    %557 = tpu.matmul %554, %323, %cst_186 {dimension_numbers = #tpu.dot_dimension_numbers<[1], [0], [0], [1], [0, 0, 1, 1], [], []>} : vector<2x32xf32>, vector<32x128xf32>, vector<2x128xf32> -> vector<2x128xf32>
    %558 = arith.addf %556, %557 : vector<2x128xf32>
    %559 = arith.negf %558 : vector<2x128xf32>
    %560 = math.exp %559 : vector<2x128xf32>
    %cst_187 = arith.constant 1.000000e+00 : f32
    %561 = vector.broadcast %cst_187 : f32 to vector<2x128xf32>
    %562 = arith.addf %561, %560 : vector<2x128xf32>
    %563 = arith.divf %561, %562 : vector<2x128xf32>
    %564 = math.tanh %558 : vector<2x128xf32>
    %565 = vector.extract_strided_slice %563 {offsets = [0, 0], sizes = [2, 32], strides = [1, 1]} : vector<2x128xf32> to vector<2x32xf32>
    %566 = vector.extract_strided_slice %563 {offsets = [0, 32], sizes = [2, 32], strides = [1, 1]} : vector<2x128xf32> to vector<2x32xf32>
    %567 = vector.extract_strided_slice %564 {offsets = [0, 64], sizes = [2, 32], strides = [1, 1]} : vector<2x128xf32> to vector<2x32xf32>
    %568 = vector.extract_strided_slice %563 {offsets = [0, 96], sizes = [2, 32], strides = [1, 1]} : vector<2x128xf32> to vector<2x32xf32>
    %569 = arith.mulf %566, %552 : vector<2x32xf32>
    %570 = arith.mulf %565, %567 : vector<2x32xf32>
    %571 = arith.addf %569, %570 : vector<2x32xf32>
    %572 = math.tanh %571 : vector<2x32xf32>
    %573 = arith.mulf %568, %572 : vector<2x32xf32>
    %c24_188 = arith.constant 24 : index
    %c0_189 = arith.constant 0 : index
    %574 = vector.load %arg9[%c24_188, %c0_189] : memref<32x32xf32, #tpu.memory_space<vmem>>, vector<2x32xf32>
    tpu.vector_store %arg9[%c24_188, %c0_189], %573 {strides = array<i32>} : memref<32x32xf32, #tpu.memory_space<vmem>>, vector<2x32xf32>,
    %c26_190 = arith.constant 26 : index
    %c0_191 = arith.constant 0 : index
    %575 = vector.load %arg10[%c26_190, %c0_191] : memref<32x128xf32, #tpu.memory_space<vmem>>, vector<2x128xf32>
    %cst_192 = arith.constant dense<0.000000e+00> : vector<2x128xf32>
    %576 = tpu.matmul %573, %323, %cst_192 {dimension_numbers = #tpu.dot_dimension_numbers<[1], [0], [0], [1], [0, 0, 1, 1], [], []>} : vector<2x32xf32>, vector<32x128xf32>, vector<2x128xf32> -> vector<2x128xf32>
    %577 = arith.addf %575, %576 : vector<2x128xf32>
    %578 = arith.negf %577 : vector<2x128xf32>
    %579 = math.exp %578 : vector<2x128xf32>
    %cst_193 = arith.constant 1.000000e+00 : f32
    %580 = vector.broadcast %cst_193 : f32 to vector<2x128xf32>
    %581 = arith.addf %580, %579 : vector<2x128xf32>
    %582 = arith.divf %580, %581 : vector<2x128xf32>
    %583 = math.tanh %577 : vector<2x128xf32>
    %584 = vector.extract_strided_slice %582 {offsets = [0, 0], sizes = [2, 32], strides = [1, 1]} : vector<2x128xf32> to vector<2x32xf32>
    %585 = vector.extract_strided_slice %582 {offsets = [0, 32], sizes = [2, 32], strides = [1, 1]} : vector<2x128xf32> to vector<2x32xf32>
    %586 = vector.extract_strided_slice %583 {offsets = [0, 64], sizes = [2, 32], strides = [1, 1]} : vector<2x128xf32> to vector<2x32xf32>
    %587 = vector.extract_strided_slice %582 {offsets = [0, 96], sizes = [2, 32], strides = [1, 1]} : vector<2x128xf32> to vector<2x32xf32>
    %588 = arith.mulf %585, %571 : vector<2x32xf32>
    %589 = arith.mulf %584, %586 : vector<2x32xf32>
    %590 = arith.addf %588, %589 : vector<2x32xf32>
    %591 = math.tanh %590 : vector<2x32xf32>
    %592 = arith.mulf %587, %591 : vector<2x32xf32>
    %c26_194 = arith.constant 26 : index
    %c0_195 = arith.constant 0 : index
    %593 = vector.load %arg9[%c26_194, %c0_195] : memref<32x32xf32, #tpu.memory_space<vmem>>, vector<2x32xf32>
    tpu.vector_store %arg9[%c26_194, %c0_195], %592 {strides = array<i32>} : memref<32x32xf32, #tpu.memory_space<vmem>>, vector<2x32xf32>,
    %c28_196 = arith.constant 28 : index
    %c0_197 = arith.constant 0 : index
    %594 = vector.load %arg10[%c28_196, %c0_197] : memref<32x128xf32, #tpu.memory_space<vmem>>, vector<2x128xf32>
    %cst_198 = arith.constant dense<0.000000e+00> : vector<2x128xf32>
    %595 = tpu.matmul %592, %323, %cst_198 {dimension_numbers = #tpu.dot_dimension_numbers<[1], [0], [0], [1], [0, 0, 1, 1], [], []>} : vector<2x32xf32>, vector<32x128xf32>, vector<2x128xf32> -> vector<2x128xf32>
    %596 = arith.addf %594, %595 : vector<2x128xf32>
    %597 = arith.negf %596 : vector<2x128xf32>
    %598 = math.exp %597 : vector<2x128xf32>
    %cst_199 = arith.constant 1.000000e+00 : f32
    %599 = vector.broadcast %cst_199 : f32 to vector<2x128xf32>
    %600 = arith.addf %599, %598 : vector<2x128xf32>
    %601 = arith.divf %599, %600 : vector<2x128xf32>
    %602 = math.tanh %596 : vector<2x128xf32>
    %603 = vector.extract_strided_slice %601 {offsets = [0, 0], sizes = [2, 32], strides = [1, 1]} : vector<2x128xf32> to vector<2x32xf32>
    %604 = vector.extract_strided_slice %601 {offsets = [0, 32], sizes = [2, 32], strides = [1, 1]} : vector<2x128xf32> to vector<2x32xf32>
    %605 = vector.extract_strided_slice %602 {offsets = [0, 64], sizes = [2, 32], strides = [1, 1]} : vector<2x128xf32> to vector<2x32xf32>
    %606 = vector.extract_strided_slice %601 {offsets = [0, 96], sizes = [2, 32], strides = [1, 1]} : vector<2x128xf32> to vector<2x32xf32>
    %607 = arith.mulf %604, %590 : vector<2x32xf32>
    %608 = arith.mulf %603, %605 : vector<2x32xf32>
    %609 = arith.addf %607, %608 : vector<2x32xf32>
    %610 = math.tanh %609 : vector<2x32xf32>
    %611 = arith.mulf %606, %610 : vector<2x32xf32>
    %c28_200 = arith.constant 28 : index
    %c0_201 = arith.constant 0 : index
    %612 = vector.load %arg9[%c28_200, %c0_201] : memref<32x32xf32, #tpu.memory_space<vmem>>, vector<2x32xf32>
    tpu.vector_store %arg9[%c28_200, %c0_201], %611 {strides = array<i32>} : memref<32x32xf32, #tpu.memory_space<vmem>>, vector<2x32xf32>,
    %c30_202 = arith.constant 30 : index
    %c0_203 = arith.constant 0 : index
    %613 = vector.load %arg10[%c30_202, %c0_203] : memref<32x128xf32, #tpu.memory_space<vmem>>, vector<2x128xf32>
    %cst_204 = arith.constant dense<0.000000e+00> : vector<2x128xf32>
    %614 = tpu.matmul %611, %323, %cst_204 {dimension_numbers = #tpu.dot_dimension_numbers<[1], [0], [0], [1], [0, 0, 1, 1], [], []>} : vector<2x32xf32>, vector<32x128xf32>, vector<2x128xf32> -> vector<2x128xf32>
    %615 = arith.addf %613, %614 : vector<2x128xf32>
    %616 = arith.negf %615 : vector<2x128xf32>
    %617 = math.exp %616 : vector<2x128xf32>
    %cst_205 = arith.constant 1.000000e+00 : f32
    %618 = vector.broadcast %cst_205 : f32 to vector<2x128xf32>
    %619 = arith.addf %618, %617 : vector<2x128xf32>
    %620 = arith.divf %618, %619 : vector<2x128xf32>
    %621 = math.tanh %615 : vector<2x128xf32>
    %622 = vector.extract_strided_slice %620 {offsets = [0, 0], sizes = [2, 32], strides = [1, 1]} : vector<2x128xf32> to vector<2x32xf32>
    %623 = vector.extract_strided_slice %620 {offsets = [0, 32], sizes = [2, 32], strides = [1, 1]} : vector<2x128xf32> to vector<2x32xf32>
    %624 = vector.extract_strided_slice %621 {offsets = [0, 64], sizes = [2, 32], strides = [1, 1]} : vector<2x128xf32> to vector<2x32xf32>
    %625 = vector.extract_strided_slice %620 {offsets = [0, 96], sizes = [2, 32], strides = [1, 1]} : vector<2x128xf32> to vector<2x32xf32>
    %626 = arith.mulf %623, %609 : vector<2x32xf32>
    %627 = arith.mulf %622, %624 : vector<2x32xf32>
    %628 = arith.addf %626, %627 : vector<2x32xf32>
    %629 = math.tanh %628 : vector<2x32xf32>
    %630 = arith.mulf %625, %629 : vector<2x32xf32>
    %c30_206 = arith.constant 30 : index
    %c0_207 = arith.constant 0 : index
    %631 = vector.load %arg9[%c30_206, %c0_207] : memref<32x32xf32, #tpu.memory_space<vmem>>, vector<2x32xf32>
    tpu.vector_store %arg9[%c30_206, %c0_207], %630 {strides = array<i32>} : memref<32x32xf32, #tpu.memory_space<vmem>>, vector<2x32xf32>,
    return
  }
}

</mosaic_0001>

<llo_original>
// kernel: tpu_custom_call.1
$region0: #{tpu_custom_call.1}
  #allocation0 [shape = 'u32[]', space=smem, size = 0x4, offset = 0x4, fixed_abs, tag = 'smem constant byte address 0x4 - core index']
  #allocation1 [shape = 'u32[72,128]{1,0:T(1,128)}', space=vmem, size = 0x9000, scoped, tag = 'internal scratch']
  #allocation2 [shape = 'f32[32,128]{1,0:T(8,128)}', space=vmem, size = 0x4000, scoped, tag = 'scratch operand']
  #allocation3 [shape = 'f32[32,32]{1,0:T(8,128)}', space=vmem, size = 0x4000, scoped, tag = 'scratch operand']
  %s0 = inlined_call_operand.vmem [shape: f32[32,8], index: 0, kind: input, shape index: {}]
  %s1 = inlined_call_operand.hbm [shape: f32[2,2,32], index: 1, kind: input, shape index: {}]
  %s2 = inlined_call_operand.hbm [shape: f32[2,2,32], index: 2, kind: input, shape index: {}]
  %s3 = inlined_call_operand.vmem [shape: f32[8,128], index: 3, kind: input, shape index: {}]
  %s4 = inlined_call_operand.vmem [shape: f32[32,128], index: 4, kind: input, shape index: {}]
  %s5 = inlined_call_operand.vmem [shape: f32[1,128], index: 5, kind: input, shape index: {}]
  %s6 = inlined_call_operand.hbm [shape: f32[32,128], index: 6, kind: input, shape index: {}]
  %s7 = inlined_call_operand.hbm [shape: f32[32,128], index: 7, kind: input, shape index: {}]
  %s8 = inlined_call_operand.vmem [shape: f32[1,128], index: 8, kind: input, shape index: {}]
  %s9 = inlined_call_operand.hbm [shape: f32[32,32], index: 9, kind: output, shape index: {}]
  %s10 = sld [smem:[#allocation0]]
  $region62: #{tpu_custom_call.1} parent=0
    _
  %s12 = ssub.s32 1, %s10
  %s13 = scalar_select 0, %s12, %s10
  $region1: #{tpu_custom_call.1} parent=0
    #allocation4 [shape = 'u8[2048]{0}', space=vmem, size = 0x800, scoped, tag = 'input window, operand 1, single buffered']
    #allocation5 [shape = 's32[1]{0}', space=sflag, size = 0x4, scoped, tag = 'scoped memory for tpu_custom_call.1']
    #allocation6 [shape = 's32[1]{0}', space=sflag, size = 0x4, scoped, tag = 'scoped memory for tpu_custom_call.1']
    #allocation7 [shape = 'u8[2048]{0}', space=vmem, size = 0x800, scoped, tag = 'input window, operand 2, single buffered']
    #allocation8 [shape = 's32[1]{0}', space=sflag, size = 0x4, scoped, tag = 'scoped memory for tpu_custom_call.1']
    #allocation9 [shape = 'u8[16384]{0}', space=vmem, size = 0x4000, scoped, tag = 'input window, operand 6, single buffered']
    #allocation10 [shape = 'u8[16384]{0}', space=vmem, size = 0x4000, scoped, tag = 'input window, operand 7, single buffered']
    #allocation11 [shape = 's32[1]{0}', space=sflag, size = 0x4, scoped, tag = 'scoped memory for tpu_custom_call.1']
    #allocation12 [shape = 'u8[16384]{0}', space=vmem, size = 0x4000, scoped, tag = 'output window, operand 0, single buffered']
    %14 = vsyncpa [#allocation5], 0
    %15 = vsyncpa [#allocation8], 0
    %16 = vsyncpa [#allocation11], 0
    %17 = vsyncpa [#allocation6], 0
    // Predicated region
    $region2: #{tpu_custom_call.1} parent=1 // pred_check
      _
    $region3: #{tpu_custom_call.1} parent=1 // pred_check_branch
      %19 = sbr.rel (0) target = $region5
    $region4: #{tpu_custom_call.1} parent=1 // pred_region
      _
    $region5: #{tpu_custom_call.1} parent=1 // pred_fallthru
      _
    // Predicated region
    $region6: #{tpu_custom_call.1} parent=1 // pred_check
      _
    $region7: #{tpu_custom_call.1} parent=1 // pred_check_branch
      %21 = sbr.rel (0) target = $region9
    $region8: #{tpu_custom_call.1} parent=1 // pred_region
      %23 = vsyncadd [#allocation5], 0
      %s24 = sshll.u32 %s1, 4
      %s25 = int_to_ptr.hbm [resolvable:$true] %s24
      %s26 = sshll.u32 [#allocation4], 4
      %s27 = int_to_ptr.vmem [resolvable:$true] %s26
      %32 = dma.hbm_to_vmem [thread:$0]  %s25, 64, %s27, [#allocation5], 32, 32, 2
    $region9: #{tpu_custom_call.1} parent=1 // pred_fallthru
      _
    // Predicated region
    $region10: #{tpu_custom_call.1} parent=1 // pred_check
      _
    $region11: #{tpu_custom_call.1} parent=1 // pred_check_branch
      %34 = sbr.rel (0) target = $region13
    $region12: #{tpu_custom_call.1} parent=1 // pred_region
      %36 = vsyncadd [#allocation8], 0
      %s37 = sshll.u32 %s2, 4
      %s38 = int_to_ptr.hbm [resolvable:$true] %s37
      %s39 = sshll.u32 [#allocation7], 4
      %s40 = int_to_ptr.vmem [resolvable:$true] %s39
      %45 = dma.hbm_to_vmem [thread:$0]  %s38, 64, %s40, [#allocation8], 32, 32, 2
    $region13: #{tpu_custom_call.1} parent=1 // pred_fallthru
      _
    // Predicated region
    $region14: #{tpu_custom_call.1} parent=1 // pred_check
      _
    $region15: #{tpu_custom_call.1} parent=1 // pred_check_branch
      %47 = sbr.rel (0) target = $region17
    $region16: #{tpu_custom_call.1} parent=1 // pred_region
      _
    $region17: #{tpu_custom_call.1} parent=1 // pred_fallthru
      _
    // Predicated region
    $region18: #{tpu_custom_call.1} parent=1 // pred_check
      _
    $region19: #{tpu_custom_call.1} parent=1 // pred_check_branch
      %49 = sbr.rel (0) target = $region21
    $region20: #{tpu_custom_call.1} parent=1 // pred_region
      _
    $region21: #{tpu_custom_call.1} parent=1 // pred_fallthru
      _
    // Predicated region
    $region22: #{tpu_custom_call.1} parent=1 // pred_check
      _
    $region23: #{tpu_custom_call.1} parent=1 // pred_check_branch
      %51 = sbr.rel (0) target = $region25
    $region24: #{tpu_custom_call.1} parent=1 // pred_region
      _
    $region25: #{tpu_custom_call.1} parent=1 // pred_fallthru
      _
    // Predicated region
    $region26: #{tpu_custom_call.1} parent=1 // pred_check
      _
    $region27: #{tpu_custom_call.1} parent=1 // pred_check_branch
      %53 = sbr.rel (0) target = $region29
    $region28: #{tpu_custom_call.1} parent=1 // pred_region
      %55 = vsyncadd [#allocation8], 0
      %s56 = sshll.u32 %s6, 4
      %s57 = int_to_ptr.hbm [resolvable:$true] %s56
      %s58 = sshll.u32 [#allocation9], 4
      %s59 = int_to_ptr.vmem [resolvable:$true] %s58
      %64 = dma.hbm_to_vmem [thread:$0]  %s57, 512, %s59, [#allocation8], 128, 128, 8
    $region29: #{tpu_custom_call.1} parent=1 // pred_fallthru
      _
    // Predicated region
    $region30: #{tpu_custom_call.1} parent=1 // pred_check
      _
    $region31: #{tpu_custom_call.1} parent=1 // pred_check_branch
      %66 = sbr.rel (0) target = $region33
    $region32: #{tpu_custom_call.1} parent=1 // pred_region
      %68 = vsyncadd [#allocation11], 0
      %s69 = sshll.u32 %s7, 4
      %s70 = int_to_ptr.hbm [resolvable:$true] %s69
      %s71 = sshll.u32 [#allocation10], 4
      %s72 = int_to_ptr.vmem [resolvable:$true] %s71
      %77 = dma.hbm_to_vmem [thread:$0]  %s70, 512, %s72, [#allocation11], 128, 128, 8
    $region33: #{tpu_custom_call.1} parent=1 // pred_fallthru
      _
    // Predicated region
    $region34: #{tpu_custom_call.1} parent=1 // pred_check
      _
    $region35: #{tpu_custom_call.1} parent=1 // pred_check_branch
      %79 = sbr.rel (0) target = $region37
    $region36: #{tpu_custom_call.1} parent=1 // pred_region
      _
    $region37: #{tpu_custom_call.1} parent=1 // pred_fallthru
      _
    // Predicated region
    $region38: #{tpu_custom_call.1} parent=1 // pred_check
      _
    $region39: #{tpu_custom_call.1} parent=1 // pred_check_branch
      %81 = sbr.rel (0) target = $region41
    $region40: #{tpu_custom_call.1} parent=1 // pred_region
      %83 = dma.done [#allocation5], 64
    $region41: #{tpu_custom_call.1} parent=1 // pred_fallthru
      _
    // Predicated region
    $region42: #{tpu_custom_call.1} parent=1 // pred_check
      _
    $region43: #{tpu_custom_call.1} parent=1 // pred_check_branch
      %85 = sbr.rel (0) target = $region45
    $region44: #{tpu_custom_call.1} parent=1 // pred_region
      %87 = dma.done [#allocation8], 64
    $region45: #{tpu_custom_call.1} parent=1 // pred_fallthru
      _
    // Predicated region
    $region46: #{tpu_custom_call.1} parent=1 // pred_check
      _
    $region47: #{tpu_custom_call.1} parent=1 // pred_check_branch
      %89 = sbr.rel (0) target = $region49
    $region48: #{tpu_custom_call.1} parent=1 // pred_region
      %91 = dma.done [#allocation8], 512
    $region49: #{tpu_custom_call.1} parent=1 // pred_fallthru
      _
    // Predicated region
    $region50: #{tpu_custom_call.1} parent=1 // pred_check
      _
    $region51: #{tpu_custom_call.1} parent=1 // pred_check_branch
      %93 = sbr.rel (0) target = $region53
    $region52: #{tpu_custom_call.1} parent=1 // pred_region
      %95 = dma.done [#allocation11], 512
    $region53: #{tpu_custom_call.1} parent=1 // pred_fallthru
      _
    %v96 = vld [vmem:[%s0] sm:$0xff]
    %v97 = vld [vmem:[%s0 + $0x8] sm:$0xff]
    %v98 = vld [vmem:[%s0 + $0x10] sm:$0xff]
    %v99 = vld [vmem:[%s0 + $0x18] sm:$0xff]
    %v100 = vld [vmem:[%s3] sm:$0xff]
    %v101 = vld [vmem:[%s5] sm:$0x1]
    %v103 = vperm.slane %v101, 0
    %vm105 = vcmask 64512
    %v107 = vsel %vm105, %v96, 0
    %v110 = vsel %vm105, %v97, 0
    %v113 = vsel %vm105, %v98, 0
    %v116 = vsel %vm105, %v99, 0
    %118 = vmatpush.msra.mxu0 0.0
    %119 = vmatpush.msra.mxu0 0.0
    %120 = vmatpush.msra.mxu0 0.0
    %121 = vmatpush.msra.mxu0 0.0
    %122 = vmatpush.msra.mxu0 0.0
    %123 = vmatpush.msra.mxu0 0.0
    %124 = vmatpush.msra.mxu0 0.0
    %125 = vmatpush.msra.mxu0 0.0
    %126 = vmatpush.msra.mxu0 0.0
    %127 = vmatpush.msra.mxu0 0.0
    %128 = vmatpush.msra.mxu0 0.0
    %129 = vmatpush.msra.mxu0 0.0
    %130 = vmatpush.msra.mxu0 0.0
    %131 = vmatpush.msra.mxu0 0.0
    %132 = vmatpush.msra.mxu0 0.0
    %133 = vmatpush.msra.mxu0 %v100
    %134 = vmatmul.f32.gmra.mxu0 %v107
    %v135 = vpop.f32.mrf.mxu0
    %v136 = vadd.f32 %v103, %v135
    %137 = vmatmul.f32.gmra.mxu0 %v110
    %v138 = vpop.f32.mrf.mxu0
    %v139 = vadd.f32 %v103, %v138
    %140 = vmatmul.f32.gmra.mxu0 %v113
    %v141 = vpop.f32.mrf.mxu0
    %v142 = vadd.f32 %v103, %v141
    %143 = vmatmul.f32.gmra.mxu0 %v116
    %v144 = vpop.f32.mrf.mxu0
    %v145 = vadd.f32 %v103, %v144
    %146 = vdwg.mxu0
    %147 = vst [vmem:[#allocation2] sm:$0xff] %v136
    %148 = vst [vmem:[#allocation2 + $0x8] sm:$0xff] %v139
    %149 = vst [vmem:[#allocation2 + $0x10] sm:$0xff] %v142
    %150 = vst [vmem:[#allocation2 + $0x18] sm:$0xff] %v145
    %v151 = vld [vmem:[%s4] sm:$0xff]
    %v152 = vld [vmem:[%s4 + $0x8] sm:$0xff]
    %v153 = vld [vmem:[%s4 + $0x10] sm:$0xff]
    %v154 = vld [vmem:[%s4 + $0x18] sm:$0xff]
    %v155 = vld [vmem:[#allocation4] sm:$0x3]
    %v156 = vld [vmem:[#allocation7] sm:$0x3]
    %v157 = vld [vmem:[#allocation2] sm:$0x3]
    %vm158 = vcmask 261120
    %v160 = vsel %vm158, %v155, 0
    %162 = vmatpush.msra.mxu0 0.0
    %163 = vmatpush.msra.mxu0 0.0
    %164 = vmatpush.msra.mxu0 0.0
    %165 = vmatpush.msra.mxu0 0.0
    %166 = vmatpush.msra.mxu0 0.0
    %167 = vmatpush.msra.mxu0 0.0
    %168 = vmatpush.msra.mxu0 0.0
    %169 = vmatpush.msra.mxu0 0.0
    %170 = vmatpush.msra.mxu0 0.0
    %171 = vmatpush.msra.mxu0 0.0
    %172 = vmatpush.msra.mxu0 0.0
    %173 = vmatpush.msra.mxu0 0.0
    %174 = vmatpush.msra.mxu0 %v154
    %175 = vmatpush.msra.mxu0 %v153
    %176 = vmatpush.msra.mxu0 %v152
    %177 = vmatpush.msra.mxu0 %v151
    %178 = vmatmul.f32.gmra.mxu0 %v160
    %v179 = vpop.f32.mrf.mxu0
    %v180 = vadd.f32 0.0, %v179
    %181 = vdwg.mxu0
    %v182 = vadd.f32 %v157, %v180
    %v183 = vxor.u32 %v182, 2147483648
    %v184 = vmul.f32 %v183, 1.442695
    %v185 = vpow.pop %v184
    %v186 = vadd.f32 %v185, 1.0
    %v187 = vrcp.pop %v186
    %v188 = vmul.f32 %v186, %v187
    %v189 = vsub.f32 1.0, %v188
    %v190 = vmul.f32 %v187, %v189
    %v191 = vadd.f32 %v187, %v190
    %vm192 = vweird.f32 %v186
    %vm193 = vweird.f32 %v187
    %vm194 = vmor %vm192, %vm193
    %v195 = vsel %vm194, %v187, %v191
    %v196 = vand.u32 2147483647, %v186
    %vm197 = vcmp.eq.f32.partialorder %v196, 8.507059e+37
    %v198 = vand.u32 %v186, 2147483648
    %v199 = vor.u32 1.1754944e-38, %v198
    %v200 = vsel %vm197, %v199, %v195
    %v201 = vmul.f32 1.0, %v200
    %v202 = vtanh.pop %v182
    %204 = vrot.lane.b32.xlu0 %v156, 32
    %v205 = vpop.permute.xlu0 %204
    %v207 = vmul.f32 %v201, %v205
    %209 = vrot.lane.b32.xlu0 %v202, 64
    %v210 = vpop.permute.xlu0 %209
    %v212 = vmul.f32 %v201, %v210
    %214 = vrot.lane.b32.xlu0 %v212, 32
    %v215 = vpop.permute.xlu0 %214
    %v217 = vadd.f32 %v207, %v215
    %v218 = vtanh.pop %v217
    %220 = vrot.lane.b32.xlu0 %v218, 64
    %v221 = vpop.permute.xlu0 %220
    %v223 = vmul.f32 %v201, %v221
    %225 = vrot.lane.b32.xlu0 %v223, 32
    %v226 = vpop.permute.xlu0 %225
    %vm228 = vcmask 254976
    %229 = vst.msk [vmem:[#allocation3] sm:$0x3] %vm228, %v226
    %v230 = vld [vmem:[#allocation2 + $0x2] sm:$0x3]
    %v231 = vsel %vm158, %v226, 0
    %233 = vmatpush.msra.mxu0 0.0
    %234 = vmatpush.msra.mxu0 0.0
    %235 = vmatpush.msra.mxu0 0.0
    %236 = vmatpush.msra.mxu0 0.0
    %237 = vmatpush.msra.mxu0 0.0
    %238 = vmatpush.msra.mxu0 0.0
    %239 = vmatpush.msra.mxu0 0.0
    %240 = vmatpush.msra.mxu0 0.0
    %241 = vmatpush.msra.mxu0 0.0
    %242 = vmatpush.msra.mxu0 0.0
    %243 = vmatpush.msra.mxu0 0.0
    %244 = vmatpush.msra.mxu0 0.0
    %245 = vmatpush.msra.mxu0 %v154
    %246 = vmatpush.msra.mxu0 %v153
    %247 = vmatpush.msra.mxu0 %v152
    %248 = vmatpush.msra.mxu0 %v151
    %249 = vmatmul.f32.gmra.mxu0 %v231
    %v250 = vpop.f32.mrf.mxu0
    %v251 = vadd.f32 0.0, %v250
    %252 = vdwg.mxu0
    %v253 = vadd.f32 %v230, %v251
    %v254 = vxor.u32 %v253, 2147483648
    %v255 = vmul.f32 %v254, 1.442695
    %v256 = vpow.pop %v255
    %v257 = vadd.f32 %v256, 1.0
    %v258 = vrcp.pop %v257
    %v259 = vmul.f32 %v257, %v258
    %v260 = vsub.f32 1.0, %v259
    %v261 = vmul.f32 %v258, %v260
    %v262 = vadd.f32 %v258, %v261
    %vm263 = vweird.f32 %v257
    %vm264 = vweird.f32 %v258
    %vm265 = vmor %vm263, %vm264
    %v266 = vsel %vm265, %v258, %v262
    %v267 = vand.u32 2147483647, %v257
    %vm268 = vcmp.eq.f32.partialorder %v267, 8.507059e+37
    %v269 = vand.u32 %v257, 2147483648
    %v270 = vor.u32 1.1754944e-38, %v269
    %v271 = vsel %vm268, %v270, %v266
    %v272 = vmul.f32 1.0, %v271
    %v273 = vtanh.pop %v253
    %v274 = vmul.f32 %v272, %v217
    %276 = vrot.lane.b32.xlu0 %v273, 64
    %v277 = vpop.permute.xlu0 %276
    %v279 = vmul.f32 %v272, %v277
    %281 = vrot.lane.b32.xlu0 %v279, 32
    %v282 = vpop.permute.xlu0 %281
    %v284 = vadd.f32 %v274, %v282
    %v285 = vtanh.pop %v284
    %287 = vrot.lane.b32.xlu0 %v285, 64
    %v288 = vpop.permute.xlu0 %287
    %v290 = vmul.f32 %v272, %v288
    %292 = vrot.lane.b32.xlu0 %v290, 32
    %v293 = vpop.permute.xlu0 %292
    %295 = vst.msk [vmem:[#allocation3 + $0x2] sm:$0x3] %vm228, %v293
    %v296 = vld [vmem:[#allocation2 + $0x4] sm:$0x3]
    %v297 = vsel %vm158, %v293, 0
    %299 = vmatpush.msra.mxu0 0.0
    %300 = vmatpush.msra.mxu0 0.0
    %301 = vmatpush.msra.mxu0 0.0
    %302 = vmatpush.msra.mxu0 0.0
    %303 = vmatpush.msra.mxu0 0.0
    %304 = vmatpush.msra.mxu0 0.0
    %305 = vmatpush.msra.mxu0 0.0
    %306 = vmatpush.msra.mxu0 0.0
    %307 = vmatpush.msra.mxu0 0.0
    %308 = vmatpush.msra.mxu0 0.0
    %309 = vmatpush.msra.mxu0 0.0
    %310 = vmatpush.msra.mxu0 0.0
    %311 = vmatpush.msra.mxu0 %v154
    %312 = vmatpush.msra.mxu0 %v153
    %313 = vmatpush.msra.mxu0 %v152
    %314 = vmatpush.msra.mxu0 %v151
    %315 = vmatmul.f32.gmra.mxu0 %v297
    %v316 = vpop.f32.mrf.mxu0
    %v317 = vadd.f32 0.0, %v316
    %318 = vdwg.mxu0
    %v319 = vadd.f32 %v296, %v317
    %v320 = vxor.u32 %v319, 2147483648
    %v321 = vmul.f32 %v320, 1.442695
    %v322 = vpow.pop %v321
    %v323 = vadd.f32 %v322, 1.0
    %v324 = vrcp.pop %v323
    %v325 = vmul.f32 %v323, %v324
    %v326 = vsub.f32 1.0, %v325
    %v327 = vmul.f32 %v324, %v326
    %v328 = vadd.f32 %v324, %v327
    %vm329 = vweird.f32 %v323
    %vm330 = vweird.f32 %v324
    %vm331 = vmor %vm329, %vm330
    %v332 = vsel %vm331, %v324, %v328
    %v333 = vand.u32 2147483647, %v323
    %vm334 = vcmp.eq.f32.partialorder %v333, 8.507059e+37
    %v335 = vand.u32 %v323, 2147483648
    %v336 = vor.u32 1.1754944e-38, %v335
    %v337 = vsel %vm334, %v336, %v332
    %v338 = vmul.f32 1.0, %v337
    %v339 = vtanh.pop %v319
    %v340 = vmul.f32 %v338, %v284
    %342 = vrot.lane.b32.xlu0 %v339, 64
    %v343 = vpop.permute.xlu0 %342
    %v345 = vmul.f32 %v338, %v343
    %347 = vrot.lane.b32.xlu0 %v345, 32
    %v348 = vpop.permute.xlu0 %347
    %v350 = vadd.f32 %v340, %v348
    %v351 = vtanh.pop %v350
    %353 = vrot.lane.b32.xlu0 %v351, 64
    %v354 = vpop.permute.xlu0 %353
    %v356 = vmul.f32 %v338, %v354
    %358 = vrot.lane.b32.xlu0 %v356, 32
    %v359 = vpop.permute.xlu0 %358
    %361 = vst.msk [vmem:[#allocation3 + $0x4] sm:$0x3] %vm228, %v359
    %v362 = vld [vmem:[#allocation2 + $0x6] sm:$0x3]
    %v363 = vsel %vm158, %v359, 0
    %365 = vmatpush.msra.mxu0 0.0
    %366 = vmatpush.msra.mxu0 0.0
    %367 = vmatpush.msra.mxu0 0.0
    %368 = vmatpush.msra.mxu0 0.0
    %369 = vmatpush.msra.mxu0 0.0
    %370 = vmatpush.msra.mxu0 0.0
    %371 = vmatpush.msra.mxu0 0.0
    %372 = vmatpush.msra.mxu0 0.0
    %373 = vmatpush.msra.mxu0 0.0
    %374 = vmatpush.msra.mxu0 0.0
    %375 = vmatpush.msra.mxu0 0.0
    %376 = vmatpush.msra.mxu0 0.0
    %377 = vmatpush.msra.mxu0 %v154
    %378 = vmatpush.msra.mxu0 %v153
    %379 = vmatpush.msra.mxu0 %v152
    %380 = vmatpush.msra.mxu0 %v151
    %381 = vmatmul.f32.gmra.mxu0 %v363
    %v382 = vpop.f32.mrf.mxu0
    %v383 = vadd.f32 0.0, %v382
    %384 = vdwg.mxu0
    %v385 = vadd.f32 %v362, %v383
    %v386 = vxor.u32 %v385, 2147483648
    %v387 = vmul.f32 %v386, 1.442695
    %v388 = vpow.pop %v387
    %v389 = vadd.f32 %v388, 1.0
    %v390 = vrcp.pop %v389
    %v391 = vmul.f32 %v389, %v390
    %v392 = vsub.f32 1.0, %v391
    %v393 = vmul.f32 %v390, %v392
    %v394 = vadd.f32 %v390, %v393
    %vm395 = vweird.f32 %v389
    %vm396 = vweird.f32 %v390
    %vm397 = vmor %vm395, %vm396
    %v398 = vsel %vm397, %v390, %v394
    %v399 = vand.u32 2147483647, %v389
    %vm400 = vcmp.eq.f32.partialorder %v399, 8.507059e+37
    %v401 = vand.u32 %v389, 2147483648
    %v402 = vor.u32 1.1754944e-38, %v401
    %v403 = vsel %vm400, %v402, %v398
    %v404 = vmul.f32 1.0, %v403
    %v405 = vtanh.pop %v385
    %v406 = vmul.f32 %v404, %v350
    %408 = vrot.lane.b32.xlu0 %v405, 64
    %v409 = vpop.permute.xlu0 %408
    %v411 = vmul.f32 %v404, %v409
    %413 = vrot.lane.b32.xlu0 %v411, 32
    %v414 = vpop.permute.xlu0 %413
    %v416 = vadd.f32 %v406, %v414
    %v417 = vtanh.pop %v416
    %419 = vrot.lane.b32.xlu0 %v417, 64
    %v420 = vpop.permute.xlu0 %419
    %v422 = vmul.f32 %v404, %v420
    %424 = vrot.lane.b32.xlu0 %v422, 32
    %v425 = vpop.permute.xlu0 %424
    %427 = vst.msk [vmem:[#allocation3 + $0x6] sm:$0x3] %vm228, %v425
    %v428 = vld [vmem:[#allocation2 + $0x8] sm:$0x3]
    %v429 = vsel %vm158, %v425, 0
    %431 = vmatpush.msra.mxu0 0.0
    %432 = vmatpush.msra.mxu0 0.0
    %433 = vmatpush.msra.mxu0 0.0
    %434 = vmatpush.msra.mxu0 0.0
    %435 = vmatpush.msra.mxu0 0.0
    %436 = vmatpush.msra.mxu0 0.0
    %437 = vmatpush.msra.mxu0 0.0
    %438 = vmatpush.msra.mxu0 0.0
    %439 = vmatpush.msra.mxu0 0.0
    %440 = vmatpush.msra.mxu0 0.0
    %441 = vmatpush.msra.mxu0 0.0
    %442 = vmatpush.msra.mxu0 0.0
    %443 = vmatpush.msra.mxu0 %v154
    %444 = vmatpush.msra.mxu0 %v153
    %445 = vmatpush.msra.mxu0 %v152
    %446 = vmatpush.msra.mxu0 %v151
    %447 = vmatmul.f32.gmra.mxu0 %v429
    %v448 = vpop.f32.mrf.mxu0
    %v449 = vadd.f32 0.0, %v448
    %450 = vdwg.mxu0
    %v451 = vadd.f32 %v428, %v449
    %v452 = vxor.u32 %v451, 2147483648
    %v453 = vmul.f32 %v452, 1.442695
    %v454 = vpow.pop %v453
    %v455 = vadd.f32 %v454, 1.0
    %v456 = vrcp.pop %v455
    %v457 = vmul.f32 %v455, %v456
    %v458 = vsub.f32 1.0, %v457
    %v459 = vmul.f32 %v456, %v458
    %v460 = vadd.f32 %v456, %v459
    %vm461 = vweird.f32 %v455
    %vm462 = vweird.f32 %v456
    %vm463 = vmor %vm461, %vm462
    %v464 = vsel %vm463, %v456, %v460
    %v465 = vand.u32 2147483647, %v455
    %vm466 = vcmp.eq.f32.partialorder %v465, 8.507059e+37
    %v467 = vand.u32 %v455, 2147483648
    %v468 = vor.u32 1.1754944e-38, %v467
    %v469 = vsel %vm466, %v468, %v464
    %v470 = vmul.f32 1.0, %v469
    %v471 = vtanh.pop %v451
    %v472 = vmul.f32 %v470, %v416
    %474 = vrot.lane.b32.xlu0 %v471, 64
    %v475 = vpop.permute.xlu0 %474
    %v477 = vmul.f32 %v470, %v475
    %479 = vrot.lane.b32.xlu0 %v477, 32
    %v480 = vpop.permute.xlu0 %479
    %v482 = vadd.f32 %v472, %v480
    %v483 = vtanh.pop %v482
    %485 = vrot.lane.b32.xlu0 %v483, 64
    %v486 = vpop.permute.xlu0 %485
    %v488 = vmul.f32 %v470, %v486
    %490 = vrot.lane.b32.xlu0 %v488, 32
    %v491 = vpop.permute.xlu0 %490
    %493 = vst.msk [vmem:[#allocation3 + $0x8] sm:$0x3] %vm228, %v491
    %v494 = vld [vmem:[#allocation2 + $0xa] sm:$0x3]
    %v495 = vsel %vm158, %v491, 0
    %497 = vmatpush.msra.mxu0 0.0
    %498 = vmatpush.msra.mxu0 0.0
    %499 = vmatpush.msra.mxu0 0.0
    %500 = vmatpush.msra.mxu0 0.0
    %501 = vmatpush.msra.mxu0 0.0
    %502 = vmatpush.msra.mxu0 0.0
    %503 = vmatpush.msra.mxu0 0.0
    %504 = vmatpush.msra.mxu0 0.0
    %505 = vmatpush.msra.mxu0 0.0
    %506 = vmatpush.msra.mxu0 0.0
    %507 = vmatpush.msra.mxu0 0.0
    %508 = vmatpush.msra.mxu0 0.0
    %509 = vmatpush.msra.mxu0 %v154
    %510 = vmatpush.msra.mxu0 %v153
    %511 = vmatpush.msra.mxu0 %v152
    %512 = vmatpush.msra.mxu0 %v151
    %513 = vmatmul.f32.gmra.mxu0 %v495
    %v514 = vpop.f32.mrf.mxu0
    %v515 = vadd.f32 0.0, %v514
    %516 = vdwg.mxu0
    %v517 = vadd.f32 %v494, %v515
    %v518 = vxor.u32 %v517, 2147483648
    %v519 = vmul.f32 %v518, 1.442695
    %v520 = vpow.pop %v519
    %v521 = vadd.f32 %v520, 1.0
    %v522 = vrcp.pop %v521
    %v523 = vmul.f32 %v521, %v522
    %v524 = vsub.f32 1.0, %v523
    %v525 = vmul.f32 %v522, %v524
    %v526 = vadd.f32 %v522, %v525
    %vm527 = vweird.f32 %v521
    %vm528 = vweird.f32 %v522
    %vm529 = vmor %vm527, %vm528
    %v530 = vsel %vm529, %v522, %v526
    %v531 = vand.u32 2147483647, %v521
    %vm532 = vcmp.eq.f32.partialorder %v531, 8.507059e+37
    %v533 = vand.u32 %v521, 2147483648
    %v534 = vor.u32 1.1754944e-38, %v533
    %v535 = vsel %vm532, %v534, %v530
    %v536 = vmul.f32 1.0, %v535
    %v537 = vtanh.pop %v517
    %v538 = vmul.f32 %v536, %v482
    %540 = vrot.lane.b32.xlu0 %v537, 64
    %v541 = vpop.permute.xlu0 %540
    %v543 = vmul.f32 %v536, %v541
    %545 = vrot.lane.b32.xlu0 %v543, 32
    %v546 = vpop.permute.xlu0 %545
    %v548 = vadd.f32 %v538, %v546
    %v549 = vtanh.pop %v548
    %551 = vrot.lane.b32.xlu0 %v549, 64
    %v552 = vpop.permute.xlu0 %551
    %v554 = vmul.f32 %v536, %v552
    %556 = vrot.lane.b32.xlu0 %v554, 32
    %v557 = vpop.permute.xlu0 %556
    %559 = vst.msk [vmem:[#allocation3 + $0xa] sm:$0x3] %vm228, %v557
    %v560 = vld [vmem:[#allocation2 + $0xc] sm:$0x3]
    %v561 = vsel %vm158, %v557, 0
    %563 = vmatpush.msra.mxu0 0.0
    %564 = vmatpush.msra.mxu0 0.0
    %565 = vmatpush.msra.mxu0 0.0
    %566 = vmatpush.msra.mxu0 0.0
    %567 = vmatpush.msra.mxu0 0.0
    %568 = vmatpush.msra.mxu0 0.0
    %569 = vmatpush.msra.mxu0 0.0
    %570 = vmatpush.msra.mxu0 0.0
    %571 = vmatpush.msra.mxu0 0.0
    %572 = vmatpush.msra.mxu0 0.0
    %573 = vmatpush.msra.mxu0 0.0
    %574 = vmatpush.msra.mxu0 0.0
    %575 = vmatpush.msra.mxu0 %v154
    %576 = vmatpush.msra.mxu0 %v153
    %577 = vmatpush.msra.mxu0 %v152
    %578 = vmatpush.msra.mxu0 %v151
    %579 = vmatmul.f32.gmra.mxu0 %v561
    %v580 = vpop.f32.mrf.mxu0
    %v581 = vadd.f32 0.0, %v580
    %582 = vdwg.mxu0
    %v583 = vadd.f32 %v560, %v581
    %v584 = vxor.u32 %v583, 2147483648
    %v585 = vmul.f32 %v584, 1.442695
    %v586 = vpow.pop %v585
    %v587 = vadd.f32 %v586, 1.0
    %v588 = vrcp.pop %v587
    %v589 = vmul.f32 %v587, %v588
    %v590 = vsub.f32 1.0, %v589
    %v591 = vmul.f32 %v588, %v590
    %v592 = vadd.f32 %v588, %v591
    %vm593 = vweird.f32 %v587
    %vm594 = vweird.f32 %v588
    %vm595 = vmor %vm593, %vm594
    %v596 = vsel %vm595, %v588, %v592
    %v597 = vand.u32 2147483647, %v587
    %vm598 = vcmp.eq.f32.partialorder %v597, 8.507059e+37
    %v599 = vand.u32 %v587, 2147483648
    %v600 = vor.u32 1.1754944e-38, %v599
    %v601 = vsel %vm598, %v600, %v596
    %v602 = vmul.f32 1.0, %v601
    %v603 = vtanh.pop %v583
    %v604 = vmul.f32 %v602, %v548
    %606 = vrot.lane.b32.xlu0 %v603, 64
    %v607 = vpop.permute.xlu0 %606
    %v609 = vmul.f32 %v602, %v607
    %611 = vrot.lane.b32.xlu0 %v609, 32
    %v612 = vpop.permute.xlu0 %611
    %v614 = vadd.f32 %v604, %v612
    %v615 = vtanh.pop %v614
    %617 = vrot.lane.b32.xlu0 %v615, 64
    %v618 = vpop.permute.xlu0 %617
    %v620 = vmul.f32 %v602, %v618
    %622 = vrot.lane.b32.xlu0 %v620, 32
    %v623 = vpop.permute.xlu0 %622
    %625 = vst.msk [vmem:[#allocation3 + $0xc] sm:$0x3] %vm228, %v623
    %v626 = vld [vmem:[#allocation2 + $0xe] sm:$0x3]
    %v627 = vsel %vm158, %v623, 0
    %629 = vmatpush.msra.mxu0 0.0
    %630 = vmatpush.msra.mxu0 0.0
    %631 = vmatpush.msra.mxu0 0.0
    %632 = vmatpush.msra.mxu0 0.0
    %633 = vmatpush.msra.mxu0 0.0
    %634 = vmatpush.msra.mxu0 0.0
    %635 = vmatpush.msra.mxu0 0.0
    %636 = vmatpush.msra.mxu0 0.0
    %637 = vmatpush.msra.mxu0 0.0
    %638 = vmatpush.msra.mxu0 0.0
    %639 = vmatpush.msra.mxu0 0.0
    %640 = vmatpush.msra.mxu0 0.0
    %641 = vmatpush.msra.mxu0 %v154
    %642 = vmatpush.msra.mxu0 %v153
    %643 = vmatpush.msra.mxu0 %v152
    %644 = vmatpush.msra.mxu0 %v151
    %645 = vmatmul.f32.gmra.mxu0 %v627
    %v646 = vpop.f32.mrf.mxu0
    %v647 = vadd.f32 0.0, %v646
    %648 = vdwg.mxu0
    %v649 = vadd.f32 %v626, %v647
    %v650 = vxor.u32 %v649, 2147483648
    %v651 = vmul.f32 %v650, 1.442695
    %v652 = vpow.pop %v651
    %v653 = vadd.f32 %v652, 1.0
    %v654 = vrcp.pop %v653
    %v655 = vmul.f32 %v653, %v654
    %v656 = vsub.f32 1.0, %v655
    %v657 = vmul.f32 %v654, %v656
    %v658 = vadd.f32 %v654, %v657
    %vm659 = vweird.f32 %v653
    %vm660 = vweird.f32 %v654
    %vm661 = vmor %vm659, %vm660
    %v662 = vsel %vm661, %v654, %v658
    %v663 = vand.u32 2147483647, %v653
    %vm664 = vcmp.eq.f32.partialorder %v663, 8.507059e+37
    %v665 = vand.u32 %v653, 2147483648
    %v666 = vor.u32 1.1754944e-38, %v665
    %v667 = vsel %vm664, %v666, %v662
    %v668 = vmul.f32 1.0, %v667
    %v669 = vtanh.pop %v649
    %v670 = vmul.f32 %v668, %v614
    %672 = vrot.lane.b32.xlu0 %v669, 64
    %v673 = vpop.permute.xlu0 %672
    %v675 = vmul.f32 %v668, %v673
    %677 = vrot.lane.b32.xlu0 %v675, 32
    %v678 = vpop.permute.xlu0 %677
    %v680 = vadd.f32 %v670, %v678
    %v681 = vtanh.pop %v680
    %683 = vrot.lane.b32.xlu0 %v681, 64
    %v684 = vpop.permute.xlu0 %683
    %v686 = vmul.f32 %v668, %v684
    %688 = vrot.lane.b32.xlu0 %v686, 32
    %v689 = vpop.permute.xlu0 %688
    %691 = vst.msk [vmem:[#allocation3 + $0xe] sm:$0x3] %vm228, %v689
    %v692 = vld [vmem:[#allocation2 + $0x10] sm:$0x3]
    %v693 = vsel %vm158, %v689, 0
    %695 = vmatpush.msra.mxu0 0.0
    %696 = vmatpush.msra.mxu0 0.0
    %697 = vmatpush.msra.mxu0 0.0
    %698 = vmatpush.msra.mxu0 0.0
    %699 = vmatpush.msra.mxu0 0.0
    %700 = vmatpush.msra.mxu0 0.0
    %701 = vmatpush.msra.mxu0 0.0
    %702 = vmatpush.msra.mxu0 0.0
    %703 = vmatpush.msra.mxu0 0.0
    %704 = vmatpush.msra.mxu0 0.0
    %705 = vmatpush.msra.mxu0 0.0
    %706 = vmatpush.msra.mxu0 0.0
    %707 = vmatpush.msra.mxu0 %v154
    %708 = vmatpush.msra.mxu0 %v153
    %709 = vmatpush.msra.mxu0 %v152
    %710 = vmatpush.msra.mxu0 %v151
    %711 = vmatmul.f32.gmra.mxu0 %v693
    %v712 = vpop.f32.mrf.mxu0
    %v713 = vadd.f32 0.0, %v712
    %714 = vdwg.mxu0
    %v715 = vadd.f32 %v692, %v713
    %v716 = vxor.u32 %v715, 2147483648
    %v717 = vmul.f32 %v716, 1.442695
    %v718 = vpow.pop %v717
    %v719 = vadd.f32 %v718, 1.0
    %v720 = vrcp.pop %v719
    %v721 = vmul.f32 %v719, %v720
    %v722 = vsub.f32 1.0, %v721
    %v723 = vmul.f32 %v720, %v722
    %v724 = vadd.f32 %v720, %v723
    %vm725 = vweird.f32 %v719
    %vm726 = vweird.f32 %v720
    %vm727 = vmor %vm725, %vm726
    %v728 = vsel %vm727, %v720, %v724
    %v729 = vand.u32 2147483647, %v719
    %vm730 = vcmp.eq.f32.partialorder %v729, 8.507059e+37
    %v731 = vand.u32 %v719, 2147483648
    %v732 = vor.u32 1.1754944e-38, %v731
    %v733 = vsel %vm730, %v732, %v728
    %v734 = vmul.f32 1.0, %v733
    %v735 = vtanh.pop %v715
    %v736 = vmul.f32 %v734, %v680
    %738 = vrot.lane.b32.xlu0 %v735, 64
    %v739 = vpop.permute.xlu0 %738
    %v741 = vmul.f32 %v734, %v739
    %743 = vrot.lane.b32.xlu0 %v741, 32
    %v744 = vpop.permute.xlu0 %743
    %v746 = vadd.f32 %v736, %v744
    %v747 = vtanh.pop %v746
    %749 = vrot.lane.b32.xlu0 %v747, 64
    %v750 = vpop.permute.xlu0 %749
    %v752 = vmul.f32 %v734, %v750
    %754 = vrot.lane.b32.xlu0 %v752, 32
    %v755 = vpop.permute.xlu0 %754
    %757 = vst.msk [vmem:[#allocation3 + $0x10] sm:$0x3] %vm228, %v755
    %v758 = vld [vmem:[#allocation2 + $0x12] sm:$0x3]
    %v759 = vsel %vm158, %v755, 0
    %761 = vmatpush.msra.mxu0 0.0
    %762 = vmatpush.msra.mxu0 0.0
    %763 = vmatpush.msra.mxu0 0.0
    %764 = vmatpush.msra.mxu0 0.0
    %765 = vmatpush.msra.mxu0 0.0
    %766 = vmatpush.msra.mxu0 0.0
    %767 = vmatpush.msra.mxu0 0.0
    %768 = vmatpush.msra.mxu0 0.0
    %769 = vmatpush.msra.mxu0 0.0
    %770 = vmatpush.msra.mxu0 0.0
    %771 = vmatpush.msra.mxu0 0.0
    %772 = vmatpush.msra.mxu0 0.0
    %773 = vmatpush.msra.mxu0 %v154
    %774 = vmatpush.msra.mxu0 %v153
    %775 = vmatpush.msra.mxu0 %v152
    %776 = vmatpush.msra.mxu0 %v151
    %777 = vmatmul.f32.gmra.mxu0 %v759
    %v778 = vpop.f32.mrf.mxu0
    %v779 = vadd.f32 0.0, %v778
    %780 = vdwg.mxu0
    %v781 = vadd.f32 %v758, %v779
    %v782 = vxor.u32 %v781, 2147483648
    %v783 = vmul.f32 %v782, 1.442695
    %v784 = vpow.pop %v783
    %v785 = vadd.f32 %v784, 1.0
    %v786 = vrcp.pop %v785
    %v787 = vmul.f32 %v785, %v786
    %v788 = vsub.f32 1.0, %v787
    %v789 = vmul.f32 %v786, %v788
    %v790 = vadd.f32 %v786, %v789
    %vm791 = vweird.f32 %v785
    %vm792 = vweird.f32 %v786
    %vm793 = vmor %vm791, %vm792
    %v794 = vsel %vm793, %v786, %v790
    %v795 = vand.u32 2147483647, %v785
    %vm796 = vcmp.eq.f32.partialorder %v795, 8.507059e+37
    %v797 = vand.u32 %v785, 2147483648
    %v798 = vor.u32 1.1754944e-38, %v797
    %v799 = vsel %vm796, %v798, %v794
    %v800 = vmul.f32 1.0, %v799
    %v801 = vtanh.pop %v781
    %v802 = vmul.f32 %v800, %v746
    %804 = vrot.lane.b32.xlu0 %v801, 64
    %v805 = vpop.permute.xlu0 %804
    %v807 = vmul.f32 %v800, %v805
    %809 = vrot.lane.b32.xlu0 %v807, 32
    %v810 = vpop.permute.xlu0 %809
    %v812 = vadd.f32 %v802, %v810
    %v813 = vtanh.pop %v812
    %815 = vrot.lane.b32.xlu0 %v813, 64
    %v816 = vpop.permute.xlu0 %815
    %v818 = vmul.f32 %v800, %v816
    %820 = vrot.lane.b32.xlu0 %v818, 32
    %v821 = vpop.permute.xlu0 %820
    %823 = vst.msk [vmem:[#allocation3 + $0x12] sm:$0x3] %vm228, %v821
    %v824 = vld [vmem:[#allocation2 + $0x14] sm:$0x3]
    %v825 = vsel %vm158, %v821, 0
    %827 = vmatpush.msra.mxu0 0.0
    %828 = vmatpush.msra.mxu0 0.0
    %829 = vmatpush.msra.mxu0 0.0
    %830 = vmatpush.msra.mxu0 0.0
    %831 = vmatpush.msra.mxu0 0.0
    %832 = vmatpush.msra.mxu0 0.0
    %833 = vmatpush.msra.mxu0 0.0
    %834 = vmatpush.msra.mxu0 0.0
    %835 = vmatpush.msra.mxu0 0.0
    %836 = vmatpush.msra.mxu0 0.0
    %837 = vmatpush.msra.mxu0 0.0
    %838 = vmatpush.msra.mxu0 0.0
    %839 = vmatpush.msra.mxu0 %v154
    %840 = vmatpush.msra.mxu0 %v153
    %841 = vmatpush.msra.mxu0 %v152
    %842 = vmatpush.msra.mxu0 %v151
    %843 = vmatmul.f32.gmra.mxu0 %v825
    %v844 = vpop.f32.mrf.mxu0
    %v845 = vadd.f32 0.0, %v844
    %846 = vdwg.mxu0
    %v847 = vadd.f32 %v824, %v845
    %v848 = vxor.u32 %v847, 2147483648
    %v849 = vmul.f32 %v848, 1.442695
    %v850 = vpow.pop %v849
    %v851 = vadd.f32 %v850, 1.0
    %v852 = vrcp.pop %v851
    %v853 = vmul.f32 %v851, %v852
    %v854 = vsub.f32 1.0, %v853
    %v855 = vmul.f32 %v852, %v854
    %v856 = vadd.f32 %v852, %v855
    %vm857 = vweird.f32 %v851
    %vm858 = vweird.f32 %v852
    %vm859 = vmor %vm857, %vm858
    %v860 = vsel %vm859, %v852, %v856
    %v861 = vand.u32 2147483647, %v851
    %vm862 = vcmp.eq.f32.partialorder %v861, 8.507059e+37
    %v863 = vand.u32 %v851, 2147483648
    %v864 = vor.u32 1.1754944e-38, %v863
    %v865 = vsel %vm862, %v864, %v860
    %v866 = vmul.f32 1.0, %v865
    %v867 = vtanh.pop %v847
    %v868 = vmul.f32 %v866, %v812
    %870 = vrot.lane.b32.xlu0 %v867, 64
    %v871 = vpop.permute.xlu0 %870
    %v873 = vmul.f32 %v866, %v871
    %875 = vrot.lane.b32.xlu0 %v873, 32
    %v876 = vpop.permute.xlu0 %875
    %v878 = vadd.f32 %v868, %v876
    %v879 = vtanh.pop %v878
    %881 = vrot.lane.b32.xlu0 %v879, 64
    %v882 = vpop.permute.xlu0 %881
    %v884 = vmul.f32 %v866, %v882
    %886 = vrot.lane.b32.xlu0 %v884, 32
    %v887 = vpop.permute.xlu0 %886
    %889 = vst.msk [vmem:[#allocation3 + $0x14] sm:$0x3] %vm228, %v887
    %v890 = vld [vmem:[#allocation2 + $0x16] sm:$0x3]
    %v891 = vsel %vm158, %v887, 0
    %893 = vmatpush.msra.mxu0 0.0
    %894 = vmatpush.msra.mxu0 0.0
    %895 = vmatpush.msra.mxu0 0.0
    %896 = vmatpush.msra.mxu0 0.0
    %897 = vmatpush.msra.mxu0 0.0
    %898 = vmatpush.msra.mxu0 0.0
    %899 = vmatpush.msra.mxu0 0.0
    %900 = vmatpush.msra.mxu0 0.0
    %901 = vmatpush.msra.mxu0 0.0
    %902 = vmatpush.msra.mxu0 0.0
    %903 = vmatpush.msra.mxu0 0.0
    %904 = vmatpush.msra.mxu0 0.0
    %905 = vmatpush.msra.mxu0 %v154
    %906 = vmatpush.msra.mxu0 %v153
    %907 = vmatpush.msra.mxu0 %v152
    %908 = vmatpush.msra.mxu0 %v151
    %909 = vmatmul.f32.gmra.mxu0 %v891
    %v910 = vpop.f32.mrf.mxu0
    %v911 = vadd.f32 0.0, %v910
    %912 = vdwg.mxu0
    %v913 = vadd.f32 %v890, %v911
    %v914 = vxor.u32 %v913, 2147483648
    %v915 = vmul.f32 %v914, 1.442695
    %v916 = vpow.pop %v915
    %v917 = vadd.f32 %v916, 1.0
    %v918 = vrcp.pop %v917
    %v919 = vmul.f32 %v917, %v918
    %v920 = vsub.f32 1.0, %v919
    %v921 = vmul.f32 %v918, %v920
    %v922 = vadd.f32 %v918, %v921
    %vm923 = vweird.f32 %v917
    %vm924 = vweird.f32 %v918
    %vm925 = vmor %vm923, %vm924
    %v926 = vsel %vm925, %v918, %v922
    %v927 = vand.u32 2147483647, %v917
    %vm928 = vcmp.eq.f32.partialorder %v927, 8.507059e+37
    %v929 = vand.u32 %v917, 2147483648
    %v930 = vor.u32 1.1754944e-38, %v929
    %v931 = vsel %vm928, %v930, %v926
    %v932 = vmul.f32 1.0, %v931
    %v933 = vtanh.pop %v913
    %v934 = vmul.f32 %v932, %v878
    %936 = vrot.lane.b32.xlu0 %v933, 64
    %v937 = vpop.permute.xlu0 %936
    %v939 = vmul.f32 %v932, %v937
    %941 = vrot.lane.b32.xlu0 %v939, 32
    %v942 = vpop.permute.xlu0 %941
    %v944 = vadd.f32 %v934, %v942
    %v945 = vtanh.pop %v944
    %947 = vrot.lane.b32.xlu0 %v945, 64
    %v948 = vpop.permute.xlu0 %947
    %v950 = vmul.f32 %v932, %v948
    %952 = vrot.lane.b32.xlu0 %v950, 32
    %v953 = vpop.permute.xlu0 %952
    %955 = vst.msk [vmem:[#allocation3 + $0x16] sm:$0x3] %vm228, %v953
    %v956 = vld [vmem:[#allocation2 + $0x18] sm:$0x3]
    %v957 = vsel %vm158, %v953, 0
    %959 = vmatpush.msra.mxu0 0.0
    %960 = vmatpush.msra.mxu0 0.0
    %961 = vmatpush.msra.mxu0 0.0
    %962 = vmatpush.msra.mxu0 0.0
    %963 = vmatpush.msra.mxu0 0.0
    %964 = vmatpush.msra.mxu0 0.0
    %965 = vmatpush.msra.mxu0 0.0
    %966 = vmatpush.msra.mxu0 0.0
    %967 = vmatpush.msra.mxu0 0.0
    %968 = vmatpush.msra.mxu0 0.0
    %969 = vmatpush.msra.mxu0 0.0
    %970 = vmatpush.msra.mxu0 0.0
    %971 = vmatpush.msra.mxu0 %v154
    %972 = vmatpush.msra.mxu0 %v153
    %973 = vmatpush.msra.mxu0 %v152
    %974 = vmatpush.msra.mxu0 %v151
    %975 = vmatmul.f32.gmra.mxu0 %v957
    %v976 = vpop.f32.mrf.mxu0
    %v977 = vadd.f32 0.0, %v976
    %978 = vdwg.mxu0
    %v979 = vadd.f32 %v956, %v977
    %v980 = vxor.u32 %v979, 2147483648
    %v981 = vmul.f32 %v980, 1.442695
    %v982 = vpow.pop %v981
    %v983 = vadd.f32 %v982, 1.0
    %v984 = vrcp.pop %v983
    %v985 = vmul.f32 %v983, %v984
    %v986 = vsub.f32 1.0, %v985
    %v987 = vmul.f32 %v984, %v986
    %v988 = vadd.f32 %v984, %v987
    %vm989 = vweird.f32 %v983
    %vm990 = vweird.f32 %v984
    %vm991 = vmor %vm989, %vm990
    %v992 = vsel %vm991, %v984, %v988
    %v993 = vand.u32 2147483647, %v983
    %vm994 = vcmp.eq.f32.partialorder %v993, 8.507059e+37
    %v995 = vand.u32 %v983, 2147483648
    %v996 = vor.u32 1.1754944e-38, %v995
    %v997 = vsel %vm994, %v996, %v992
    %v998 = vmul.f32 1.0, %v997
    %v999 = vtanh.pop %v979
    %v1000 = vmul.f32 %v998, %v944
    %1002 = vrot.lane.b32.xlu0 %v999, 64
    %v1003 = vpop.permute.xlu0 %1002
    %v1005 = vmul.f32 %v998, %v1003
    %1007 = vrot.lane.b32.xlu0 %v1005, 32
    %v1008 = vpop.permute.xlu0 %1007
    %v1010 = vadd.f32 %v1000, %v1008
    %v1011 = vtanh.pop %v1010
    %1013 = vrot.lane.b32.xlu0 %v1011, 64
    %v1014 = vpop.permute.xlu0 %1013
    %v1016 = vmul.f32 %v998, %v1014
    %1018 = vrot.lane.b32.xlu0 %v1016, 32
    %v1019 = vpop.permute.xlu0 %1018
    %1021 = vst.msk [vmem:[#allocation3 + $0x18] sm:$0x3] %vm228, %v1019
    %v1022 = vld [vmem:[#allocation2 + $0x1a] sm:$0x3]
    %v1023 = vsel %vm158, %v1019, 0
    %1025 = vmatpush.msra.mxu0 0.0
    %1026 = vmatpush.msra.mxu0 0.0
    %1027 = vmatpush.msra.mxu0 0.0
    %1028 = vmatpush.msra.mxu0 0.0
    %1029 = vmatpush.msra.mxu0 0.0
    %1030 = vmatpush.msra.mxu0 0.0
    %1031 = vmatpush.msra.mxu0 0.0
    %1032 = vmatpush.msra.mxu0 0.0
    %1033 = vmatpush.msra.mxu0 0.0
    %1034 = vmatpush.msra.mxu0 0.0
    %1035 = vmatpush.msra.mxu0 0.0
    %1036 = vmatpush.msra.mxu0 0.0
    %1037 = vmatpush.msra.mxu0 %v154
    %1038 = vmatpush.msra.mxu0 %v153
    %1039 = vmatpush.msra.mxu0 %v152
    %1040 = vmatpush.msra.mxu0 %v151
    %1041 = vmatmul.f32.gmra.mxu0 %v1023
    %v1042 = vpop.f32.mrf.mxu0
    %v1043 = vadd.f32 0.0, %v1042
    %1044 = vdwg.mxu0
    %v1045 = vadd.f32 %v1022, %v1043
    %v1046 = vxor.u32 %v1045, 2147483648
    %v1047 = vmul.f32 %v1046, 1.442695
    %v1048 = vpow.pop %v1047
    %v1049 = vadd.f32 %v1048, 1.0
    %v1050 = vrcp.pop %v1049
    %v1051 = vmul.f32 %v1049, %v1050
    %v1052 = vsub.f32 1.0, %v1051
    %v1053 = vmul.f32 %v1050, %v1052
    %v1054 = vadd.f32 %v1050, %v1053
    %vm1055 = vweird.f32 %v1049
    %vm1056 = vweird.f32 %v1050
    %vm1057 = vmor %vm1055, %vm1056
    %v1058 = vsel %vm1057, %v1050, %v1054
    %v1059 = vand.u32 2147483647, %v1049
    %vm1060 = vcmp.eq.f32.partialorder %v1059, 8.507059e+37
    %v1061 = vand.u32 %v1049, 2147483648
    %v1062 = vor.u32 1.1754944e-38, %v1061
    %v1063 = vsel %vm1060, %v1062, %v1058
    %v1064 = vmul.f32 1.0, %v1063
    %v1065 = vtanh.pop %v1045
    %v1066 = vmul.f32 %v1064, %v1010
    %1068 = vrot.lane.b32.xlu0 %v1065, 64
    %v1069 = vpop.permute.xlu0 %1068
    %v1071 = vmul.f32 %v1064, %v1069
    %1073 = vrot.lane.b32.xlu0 %v1071, 32
    %v1074 = vpop.permute.xlu0 %1073
    %v1076 = vadd.f32 %v1066, %v1074
    %v1077 = vtanh.pop %v1076
    %1079 = vrot.lane.b32.xlu0 %v1077, 64
    %v1080 = vpop.permute.xlu0 %1079
    %v1082 = vmul.f32 %v1064, %v1080
    %1084 = vrot.lane.b32.xlu0 %v1082, 32
    %v1085 = vpop.permute.xlu0 %1084
    %1087 = vst.msk [vmem:[#allocation3 + $0x1a] sm:$0x3] %vm228, %v1085
    %v1088 = vld [vmem:[#allocation2 + $0x1c] sm:$0x3]
    %v1089 = vsel %vm158, %v1085, 0
    %1091 = vmatpush.msra.mxu0 0.0
    %1092 = vmatpush.msra.mxu0 0.0
    %1093 = vmatpush.msra.mxu0 0.0
    %1094 = vmatpush.msra.mxu0 0.0
    %1095 = vmatpush.msra.mxu0 0.0
    %1096 = vmatpush.msra.mxu0 0.0
    %1097 = vmatpush.msra.mxu0 0.0
    %1098 = vmatpush.msra.mxu0 0.0
    %1099 = vmatpush.msra.mxu0 0.0
    %1100 = vmatpush.msra.mxu0 0.0
    %1101 = vmatpush.msra.mxu0 0.0
    %1102 = vmatpush.msra.mxu0 0.0
    %1103 = vmatpush.msra.mxu0 %v154
    %1104 = vmatpush.msra.mxu0 %v153
    %1105 = vmatpush.msra.mxu0 %v152
    %1106 = vmatpush.msra.mxu0 %v151
    %1107 = vmatmul.f32.gmra.mxu0 %v1089
    %v1108 = vpop.f32.mrf.mxu0
    %v1109 = vadd.f32 0.0, %v1108
    %1110 = vdwg.mxu0
    %v1111 = vadd.f32 %v1088, %v1109
    %v1112 = vxor.u32 %v1111, 2147483648
    %v1113 = vmul.f32 %v1112, 1.442695
    %v1114 = vpow.pop %v1113
    %v1115 = vadd.f32 %v1114, 1.0
    %v1116 = vrcp.pop %v1115
    %v1117 = vmul.f32 %v1115, %v1116
    %v1118 = vsub.f32 1.0, %v1117
    %v1119 = vmul.f32 %v1116, %v1118
    %v1120 = vadd.f32 %v1116, %v1119
    %vm1121 = vweird.f32 %v1115
    %vm1122 = vweird.f32 %v1116
    %vm1123 = vmor %vm1121, %vm1122
    %v1124 = vsel %vm1123, %v1116, %v1120
    %v1125 = vand.u32 2147483647, %v1115
    %vm1126 = vcmp.eq.f32.partialorder %v1125, 8.507059e+37
    %v1127 = vand.u32 %v1115, 2147483648
    %v1128 = vor.u32 1.1754944e-38, %v1127
    %v1129 = vsel %vm1126, %v1128, %v1124
    %v1130 = vmul.f32 1.0, %v1129
    %v1131 = vtanh.pop %v1111
    %v1132 = vmul.f32 %v1130, %v1076
    %1134 = vrot.lane.b32.xlu0 %v1131, 64
    %v1135 = vpop.permute.xlu0 %1134
    %v1137 = vmul.f32 %v1130, %v1135
    %1139 = vrot.lane.b32.xlu0 %v1137, 32
    %v1140 = vpop.permute.xlu0 %1139
    %v1142 = vadd.f32 %v1132, %v1140
    %v1143 = vtanh.pop %v1142
    %1145 = vrot.lane.b32.xlu0 %v1143, 64
    %v1146 = vpop.permute.xlu0 %1145
    %v1148 = vmul.f32 %v1130, %v1146
    %1150 = vrot.lane.b32.xlu0 %v1148, 32
    %v1151 = vpop.permute.xlu0 %1150
    %1153 = vst.msk [vmem:[#allocation3 + $0x1c] sm:$0x3] %vm228, %v1151
    %v1154 = vld [vmem:[#allocation2 + $0x1e] sm:$0x3]
    %v1155 = vsel %vm158, %v1151, 0
    %1157 = vmatpush.msra.mxu0 0.0
    %1158 = vmatpush.msra.mxu0 0.0
    %1159 = vmatpush.msra.mxu0 0.0
    %1160 = vmatpush.msra.mxu0 0.0
    %1161 = vmatpush.msra.mxu0 0.0
    %1162 = vmatpush.msra.mxu0 0.0
    %1163 = vmatpush.msra.mxu0 0.0
    %1164 = vmatpush.msra.mxu0 0.0
    %1165 = vmatpush.msra.mxu0 0.0
    %1166 = vmatpush.msra.mxu0 0.0
    %1167 = vmatpush.msra.mxu0 0.0
    %1168 = vmatpush.msra.mxu0 0.0
    %1169 = vmatpush.msra.mxu0 %v154
    %1170 = vmatpush.msra.mxu0 %v153
    %1171 = vmatpush.msra.mxu0 %v152
    %1172 = vmatpush.msra.mxu0 %v151
    %1173 = vmatmul.f32.gmra.mxu0 %v1155
    %v1174 = vpop.f32.mrf.mxu0
    %v1175 = vadd.f32 0.0, %v1174
    %1176 = vdwg.mxu0
    %v1177 = vadd.f32 %v1154, %v1175
    %v1178 = vxor.u32 %v1177, 2147483648
    %v1179 = vmul.f32 %v1178, 1.442695
    %v1180 = vpow.pop %v1179
    %v1181 = vadd.f32 %v1180, 1.0
    %v1182 = vrcp.pop %v1181
    %v1183 = vmul.f32 %v1181, %v1182
    %v1184 = vsub.f32 1.0, %v1183
    %v1185 = vmul.f32 %v1182, %v1184
    %v1186 = vadd.f32 %v1182, %v1185
    %vm1187 = vweird.f32 %v1181
    %vm1188 = vweird.f32 %v1182
    %vm1189 = vmor %vm1187, %vm1188
    %v1190 = vsel %vm1189, %v1182, %v1186
    %v1191 = vand.u32 2147483647, %v1181
    %vm1192 = vcmp.eq.f32.partialorder %v1191, 8.507059e+37
    %v1193 = vand.u32 %v1181, 2147483648
    %v1194 = vor.u32 1.1754944e-38, %v1193
    %v1195 = vsel %vm1192, %v1194, %v1190
    %v1196 = vmul.f32 1.0, %v1195
    %v1197 = vtanh.pop %v1177
    %v1198 = vmul.f32 %v1196, %v1142
    %1200 = vrot.lane.b32.xlu0 %v1197, 64
    %v1201 = vpop.permute.xlu0 %1200
    %v1203 = vmul.f32 %v1196, %v1201
    %1205 = vrot.lane.b32.xlu0 %v1203, 32
    %v1206 = vpop.permute.xlu0 %1205
    %v1208 = vadd.f32 %v1198, %v1206
    %v1209 = vtanh.pop %v1208
    %1211 = vrot.lane.b32.xlu0 %v1209, 64
    %v1212 = vpop.permute.xlu0 %1211
    %v1214 = vmul.f32 %v1196, %v1212
    %1216 = vrot.lane.b32.xlu0 %v1214, 32
    %v1217 = vpop.permute.xlu0 %1216
    %1219 = vst.msk [vmem:[#allocation3 + $0x1e] sm:$0x3] %vm228, %v1217
    %v1220 = vld [vmem:[#allocation3] sm:$0xff]
    %v1221 = vld [vmem:[#allocation3 + $0x8] sm:$0xff]
    %v1222 = vld [vmem:[#allocation3 + $0x10] sm:$0xff]
    %v1223 = vld [vmem:[#allocation3 + $0x18] sm:$0xff]
    %v1224 = vld [vmem:[#allocation9] sm:$0xff]
    %v1225 = vld [vmem:[#allocation9 + $0x8] sm:$0xff]
    %v1226 = vld [vmem:[#allocation9 + $0x10] sm:$0xff]
    %v1227 = vld [vmem:[#allocation9 + $0x18] sm:$0xff]
    %v1228 = vld [vmem:[%s8] sm:$0x1]
    %v1230 = vperm.slane %v1228, 0
    %v1233 = vsel %vm158, %v1220, 0
    %v1236 = vsel %vm158, %v1221, 0
    %v1239 = vsel %vm158, %v1222, 0
    %v1242 = vsel %vm158, %v1223, 0
    %1244 = vmatpush.msra.mxu0 0.0
    %1245 = vmatpush.msra.mxu0 0.0
    %1246 = vmatpush.msra.mxu0 0.0
    %1247 = vmatpush.msra.mxu0 0.0
    %1248 = vmatpush.msra.mxu0 0.0
    %1249 = vmatpush.msra.mxu0 0.0
    %1250 = vmatpush.msra.mxu0 0.0
    %1251 = vmatpush.msra.mxu0 0.0
    %1252 = vmatpush.msra.mxu0 0.0
    %1253 = vmatpush.msra.mxu0 0.0
    %1254 = vmatpush.msra.mxu0 0.0
    %1255 = vmatpush.msra.mxu0 0.0
    %1256 = vmatpush.msra.mxu0 %v1227
    %1257 = vmatpush.msra.mxu0 %v1226
    %1258 = vmatpush.msra.mxu0 %v1225
    %1259 = vmatpush.msra.mxu0 %v1224
    %1260 = vmatmul.f32.gmra.mxu0 %v1233
    %v1261 = vpop.f32.mrf.mxu0
    %v1262 = vadd.f32 %v1230, %v1261
    %1263 = vmatmul.f32.gmra.mxu0 %v1236
    %v1264 = vpop.f32.mrf.mxu0
    %v1265 = vadd.f32 %v1230, %v1264
    %1266 = vmatmul.f32.gmra.mxu0 %v1239
    %v1267 = vpop.f32.mrf.mxu0
    %v1268 = vadd.f32 %v1230, %v1267
    %1269 = vmatmul.f32.gmra.mxu0 %v1242
    %v1270 = vpop.f32.mrf.mxu0
    %v1271 = vadd.f32 %v1230, %v1270
    %1272 = vdwg.mxu0
    %1273 = vst [vmem:[#allocation2] sm:$0xff] %v1262
    %1274 = vst [vmem:[#allocation2 + $0x8] sm:$0xff] %v1265
    %1275 = vst [vmem:[#allocation2 + $0x10] sm:$0xff] %v1268
    %1276 = vst [vmem:[#allocation2 + $0x18] sm:$0xff] %v1271
    %v1277 = vld [vmem:[#allocation10] sm:$0xff]
    %v1278 = vld [vmem:[#allocation10 + $0x8] sm:$0xff]
    %v1279 = vld [vmem:[#allocation10 + $0x10] sm:$0xff]
    %v1280 = vld [vmem:[#allocation10 + $0x18] sm:$0xff]
    %s1281 = scalar_lea.vmem [#allocation4], 2
    %v1282 = vld [vmem:[%s1281] sm:$0x3]
    %s1283 = scalar_lea.vmem [#allocation7], 2
    %v1284 = vld [vmem:[%s1283] sm:$0x3]
    %v1285 = vld [vmem:[#allocation2] sm:$0x3]
    %v1287 = vsel %vm158, %v1282, 0
    %1289 = vmatpush.msra.mxu0 0.0
    %1290 = vmatpush.msra.mxu0 0.0
    %1291 = vmatpush.msra.mxu0 0.0
    %1292 = vmatpush.msra.mxu0 0.0
    %1293 = vmatpush.msra.mxu0 0.0
    %1294 = vmatpush.msra.mxu0 0.0
    %1295 = vmatpush.msra.mxu0 0.0
    %1296 = vmatpush.msra.mxu0 0.0
    %1297 = vmatpush.msra.mxu0 0.0
    %1298 = vmatpush.msra.mxu0 0.0
    %1299 = vmatpush.msra.mxu0 0.0
    %1300 = vmatpush.msra.mxu0 0.0
    %1301 = vmatpush.msra.mxu0 %v1280
    %1302 = vmatpush.msra.mxu0 %v1279
    %1303 = vmatpush.msra.mxu0 %v1278
    %1304 = vmatpush.msra.mxu0 %v1277
    %1305 = vmatmul.f32.gmra.mxu0 %v1287
    %v1306 = vpop.f32.mrf.mxu0
    %v1307 = vadd.f32 0.0, %v1306
    %1308 = vdwg.mxu0
    %v1309 = vadd.f32 %v1285, %v1307
    %v1310 = vxor.u32 %v1309, 2147483648
    %v1311 = vmul.f32 %v1310, 1.442695
    %v1312 = vpow.pop %v1311
    %v1313 = vadd.f32 %v1312, 1.0
    %v1314 = vrcp.pop %v1313
    %v1315 = vmul.f32 %v1313, %v1314
    %v1316 = vsub.f32 1.0, %v1315
    %v1317 = vmul.f32 %v1314, %v1316
    %v1318 = vadd.f32 %v1314, %v1317
    %vm1319 = vweird.f32 %v1313
    %vm1320 = vweird.f32 %v1314
    %vm1321 = vmor %vm1319, %vm1320
    %v1322 = vsel %vm1321, %v1314, %v1318
    %v1323 = vand.u32 2147483647, %v1313
    %vm1324 = vcmp.eq.f32.partialorder %v1323, 8.507059e+37
    %v1325 = vand.u32 %v1313, 2147483648
    %v1326 = vor.u32 1.1754944e-38, %v1325
    %v1327 = vsel %vm1324, %v1326, %v1322
    %v1328 = vmul.f32 1.0, %v1327
    %v1329 = vtanh.pop %v1309
    %1331 = vrot.lane.b32.xlu0 %v1284, 32
    %v1332 = vpop.permute.xlu0 %1331
    %v1334 = vmul.f32 %v1328, %v1332
    %1336 = vrot.lane.b32.xlu0 %v1329, 64
    %v1337 = vpop.permute.xlu0 %1336
    %v1339 = vmul.f32 %v1328, %v1337
    %1341 = vrot.lane.b32.xlu0 %v1339, 32
    %v1342 = vpop.permute.xlu0 %1341
    %v1344 = vadd.f32 %v1334, %v1342
    %v1345 = vtanh.pop %v1344
    %1347 = vrot.lane.b32.xlu0 %v1345, 64
    %v1348 = vpop.permute.xlu0 %1347
    %v1350 = vmul.f32 %v1328, %v1348
    %1352 = vrot.lane.b32.xlu0 %v1350, 32
    %v1353 = vpop.permute.xlu0 %1352
    %1355 = vst.msk [vmem:[#allocation12] sm:$0x3] %vm228, %v1353
    %v1356 = vld [vmem:[#allocation2 + $0x2] sm:$0x3]
    %v1357 = vsel %vm158, %v1353, 0
    %1359 = vmatpush.msra.mxu0 0.0
    %1360 = vmatpush.msra.mxu0 0.0
    %1361 = vmatpush.msra.mxu0 0.0
    %1362 = vmatpush.msra.mxu0 0.0
    %1363 = vmatpush.msra.mxu0 0.0
    %1364 = vmatpush.msra.mxu0 0.0
    %1365 = vmatpush.msra.mxu0 0.0
    %1366 = vmatpush.msra.mxu0 0.0
    %1367 = vmatpush.msra.mxu0 0.0
    %1368 = vmatpush.msra.mxu0 0.0
    %1369 = vmatpush.msra.mxu0 0.0
    %1370 = vmatpush.msra.mxu0 0.0
    %1371 = vmatpush.msra.mxu0 %v1280
    %1372 = vmatpush.msra.mxu0 %v1279
    %1373 = vmatpush.msra.mxu0 %v1278
    %1374 = vmatpush.msra.mxu0 %v1277
    %1375 = vmatmul.f32.gmra.mxu0 %v1357
    %v1376 = vpop.f32.mrf.mxu0
    %v1377 = vadd.f32 0.0, %v1376
    %1378 = vdwg.mxu0
    %v1379 = vadd.f32 %v1356, %v1377
    %v1380 = vxor.u32 %v1379, 2147483648
    %v1381 = vmul.f32 %v1380, 1.442695
    %v1382 = vpow.pop %v1381
    %v1383 = vadd.f32 %v1382, 1.0
    %v1384 = vrcp.pop %v1383
    %v1385 = vmul.f32 %v1383, %v1384
    %v1386 = vsub.f32 1.0, %v1385
    %v1387 = vmul.f32 %v1384, %v1386
    %v1388 = vadd.f32 %v1384, %v1387
    %vm1389 = vweird.f32 %v1383
    %vm1390 = vweird.f32 %v1384
    %vm1391 = vmor %vm1389, %vm1390
    %v1392 = vsel %vm1391, %v1384, %v1388
    %v1393 = vand.u32 2147483647, %v1383
    %vm1394 = vcmp.eq.f32.partialorder %v1393, 8.507059e+37
    %v1395 = vand.u32 %v1383, 2147483648
    %v1396 = vor.u32 1.1754944e-38, %v1395
    %v1397 = vsel %vm1394, %v1396, %v1392
    %v1398 = vmul.f32 1.0, %v1397
    %v1399 = vtanh.pop %v1379
    %v1400 = vmul.f32 %v1398, %v1344
    %1402 = vrot.lane.b32.xlu0 %v1399, 64
    %v1403 = vpop.permute.xlu0 %1402
    %v1405 = vmul.f32 %v1398, %v1403
    %1407 = vrot.lane.b32.xlu0 %v1405, 32
    %v1408 = vpop.permute.xlu0 %1407
    %v1410 = vadd.f32 %v1400, %v1408
    %v1411 = vtanh.pop %v1410
    %1413 = vrot.lane.b32.xlu0 %v1411, 64
    %v1414 = vpop.permute.xlu0 %1413
    %v1416 = vmul.f32 %v1398, %v1414
    %1418 = vrot.lane.b32.xlu0 %v1416, 32
    %v1419 = vpop.permute.xlu0 %1418
    %1421 = vst.msk [vmem:[#allocation12 + $0x2] sm:$0x3] %vm228, %v1419
    %v1422 = vld [vmem:[#allocation2 + $0x4] sm:$0x3]
    %v1423 = vsel %vm158, %v1419, 0
    %1425 = vmatpush.msra.mxu0 0.0
    %1426 = vmatpush.msra.mxu0 0.0
    %1427 = vmatpush.msra.mxu0 0.0
    %1428 = vmatpush.msra.mxu0 0.0
    %1429 = vmatpush.msra.mxu0 0.0
    %1430 = vmatpush.msra.mxu0 0.0
    %1431 = vmatpush.msra.mxu0 0.0
    %1432 = vmatpush.msra.mxu0 0.0
    %1433 = vmatpush.msra.mxu0 0.0
    %1434 = vmatpush.msra.mxu0 0.0
    %1435 = vmatpush.msra.mxu0 0.0
    %1436 = vmatpush.msra.mxu0 0.0
    %1437 = vmatpush.msra.mxu0 %v1280
    %1438 = vmatpush.msra.mxu0 %v1279
    %1439 = vmatpush.msra.mxu0 %v1278
    %1440 = vmatpush.msra.mxu0 %v1277
    %1441 = vmatmul.f32.gmra.mxu0 %v1423
    %v1442 = vpop.f32.mrf.mxu0
    %v1443 = vadd.f32 0.0, %v1442
    %1444 = vdwg.mxu0
    %v1445 = vadd.f32 %v1422, %v1443
    %v1446 = vxor.u32 %v1445, 2147483648
    %v1447 = vmul.f32 %v1446, 1.442695
    %v1448 = vpow.pop %v1447
    %v1449 = vadd.f32 %v1448, 1.0
    %v1450 = vrcp.pop %v1449
    %v1451 = vmul.f32 %v1449, %v1450
    %v1452 = vsub.f32 1.0, %v1451
    %v1453 = vmul.f32 %v1450, %v1452
    %v1454 = vadd.f32 %v1450, %v1453
    %vm1455 = vweird.f32 %v1449
    %vm1456 = vweird.f32 %v1450
    %vm1457 = vmor %vm1455, %vm1456
    %v1458 = vsel %vm1457, %v1450, %v1454
    %v1459 = vand.u32 2147483647, %v1449
    %vm1460 = vcmp.eq.f32.partialorder %v1459, 8.507059e+37
    %v1461 = vand.u32 %v1449, 2147483648
    %v1462 = vor.u32 1.1754944e-38, %v1461
    %v1463 = vsel %vm1460, %v1462, %v1458
    %v1464 = vmul.f32 1.0, %v1463
    %v1465 = vtanh.pop %v1445
    %v1466 = vmul.f32 %v1464, %v1410
    %1468 = vrot.lane.b32.xlu0 %v1465, 64
    %v1469 = vpop.permute.xlu0 %1468
    %v1471 = vmul.f32 %v1464, %v1469
    %1473 = vrot.lane.b32.xlu0 %v1471, 32
    %v1474 = vpop.permute.xlu0 %1473
    %v1476 = vadd.f32 %v1466, %v1474
    %v1477 = vtanh.pop %v1476
    %1479 = vrot.lane.b32.xlu0 %v1477, 64
    %v1480 = vpop.permute.xlu0 %1479
    %v1482 = vmul.f32 %v1464, %v1480
    %1484 = vrot.lane.b32.xlu0 %v1482, 32
    %v1485 = vpop.permute.xlu0 %1484
    %1487 = vst.msk [vmem:[#allocation12 + $0x4] sm:$0x3] %vm228, %v1485
    %v1488 = vld [vmem:[#allocation2 + $0x6] sm:$0x3]
    %v1489 = vsel %vm158, %v1485, 0
    %1491 = vmatpush.msra.mxu0 0.0
    %1492 = vmatpush.msra.mxu0 0.0
    %1493 = vmatpush.msra.mxu0 0.0
    %1494 = vmatpush.msra.mxu0 0.0
    %1495 = vmatpush.msra.mxu0 0.0
    %1496 = vmatpush.msra.mxu0 0.0
    %1497 = vmatpush.msra.mxu0 0.0
    %1498 = vmatpush.msra.mxu0 0.0
    %1499 = vmatpush.msra.mxu0 0.0
    %1500 = vmatpush.msra.mxu0 0.0
    %1501 = vmatpush.msra.mxu0 0.0
    %1502 = vmatpush.msra.mxu0 0.0
    %1503 = vmatpush.msra.mxu0 %v1280
    %1504 = vmatpush.msra.mxu0 %v1279
    %1505 = vmatpush.msra.mxu0 %v1278
    %1506 = vmatpush.msra.mxu0 %v1277
    %1507 = vmatmul.f32.gmra.mxu0 %v1489
    %v1508 = vpop.f32.mrf.mxu0
    %v1509 = vadd.f32 0.0, %v1508
    %1510 = vdwg.mxu0
    %v1511 = vadd.f32 %v1488, %v1509
    %v1512 = vxor.u32 %v1511, 2147483648
    %v1513 = vmul.f32 %v1512, 1.442695
    %v1514 = vpow.pop %v1513
    %v1515 = vadd.f32 %v1514, 1.0
    %v1516 = vrcp.pop %v1515
    %v1517 = vmul.f32 %v1515, %v1516
    %v1518 = vsub.f32 1.0, %v1517
    %v1519 = vmul.f32 %v1516, %v1518
    %v1520 = vadd.f32 %v1516, %v1519
    %vm1521 = vweird.f32 %v1515
    %vm1522 = vweird.f32 %v1516
    %vm1523 = vmor %vm1521, %vm1522
    %v1524 = vsel %vm1523, %v1516, %v1520
    %v1525 = vand.u32 2147483647, %v1515
    %vm1526 = vcmp.eq.f32.partialorder %v1525, 8.507059e+37
    %v1527 = vand.u32 %v1515, 2147483648
    %v1528 = vor.u32 1.1754944e-38, %v1527
    %v1529 = vsel %vm1526, %v1528, %v1524
    %v1530 = vmul.f32 1.0, %v1529
    %v1531 = vtanh.pop %v1511
    %v1532 = vmul.f32 %v1530, %v1476
    %1534 = vrot.lane.b32.xlu0 %v1531, 64
    %v1535 = vpop.permute.xlu0 %1534
    %v1537 = vmul.f32 %v1530, %v1535
    %1539 = vrot.lane.b32.xlu0 %v1537, 32
    %v1540 = vpop.permute.xlu0 %1539
    %v1542 = vadd.f32 %v1532, %v1540
    %v1543 = vtanh.pop %v1542
    %1545 = vrot.lane.b32.xlu0 %v1543, 64
    %v1546 = vpop.permute.xlu0 %1545
    %v1548 = vmul.f32 %v1530, %v1546
    %1550 = vrot.lane.b32.xlu0 %v1548, 32
    %v1551 = vpop.permute.xlu0 %1550
    %1553 = vst.msk [vmem:[#allocation12 + $0x6] sm:$0x3] %vm228, %v1551
    %v1554 = vld [vmem:[#allocation2 + $0x8] sm:$0x3]
    %v1555 = vsel %vm158, %v1551, 0
    %1557 = vmatpush.msra.mxu0 0.0
    %1558 = vmatpush.msra.mxu0 0.0
    %1559 = vmatpush.msra.mxu0 0.0
    %1560 = vmatpush.msra.mxu0 0.0
    %1561 = vmatpush.msra.mxu0 0.0
    %1562 = vmatpush.msra.mxu0 0.0
    %1563 = vmatpush.msra.mxu0 0.0
    %1564 = vmatpush.msra.mxu0 0.0
    %1565 = vmatpush.msra.mxu0 0.0
    %1566 = vmatpush.msra.mxu0 0.0
    %1567 = vmatpush.msra.mxu0 0.0
    %1568 = vmatpush.msra.mxu0 0.0
    %1569 = vmatpush.msra.mxu0 %v1280
    %1570 = vmatpush.msra.mxu0 %v1279
    %1571 = vmatpush.msra.mxu0 %v1278
    %1572 = vmatpush.msra.mxu0 %v1277
    %1573 = vmatmul.f32.gmra.mxu0 %v1555
    %v1574 = vpop.f32.mrf.mxu0
    %v1575 = vadd.f32 0.0, %v1574
    %1576 = vdwg.mxu0
    %v1577 = vadd.f32 %v1554, %v1575
    %v1578 = vxor.u32 %v1577, 2147483648
    %v1579 = vmul.f32 %v1578, 1.442695
    %v1580 = vpow.pop %v1579
    %v1581 = vadd.f32 %v1580, 1.0
    %v1582 = vrcp.pop %v1581
    %v1583 = vmul.f32 %v1581, %v1582
    %v1584 = vsub.f32 1.0, %v1583
    %v1585 = vmul.f32 %v1582, %v1584
    %v1586 = vadd.f32 %v1582, %v1585
    %vm1587 = vweird.f32 %v1581
    %vm1588 = vweird.f32 %v1582
    %vm1589 = vmor %vm1587, %vm1588
    %v1590 = vsel %vm1589, %v1582, %v1586
    %v1591 = vand.u32 2147483647, %v1581
    %vm1592 = vcmp.eq.f32.partialorder %v1591, 8.507059e+37
    %v1593 = vand.u32 %v1581, 2147483648
    %v1594 = vor.u32 1.1754944e-38, %v1593
    %v1595 = vsel %vm1592, %v1594, %v1590
    %v1596 = vmul.f32 1.0, %v1595
    %v1597 = vtanh.pop %v1577
    %v1598 = vmul.f32 %v1596, %v1542
    %1600 = vrot.lane.b32.xlu0 %v1597, 64
    %v1601 = vpop.permute.xlu0 %1600
    %v1603 = vmul.f32 %v1596, %v1601
    %1605 = vrot.lane.b32.xlu0 %v1603, 32
    %v1606 = vpop.permute.xlu0 %1605
    %v1608 = vadd.f32 %v1598, %v1606
    %v1609 = vtanh.pop %v1608
    %1611 = vrot.lane.b32.xlu0 %v1609, 64
    %v1612 = vpop.permute.xlu0 %1611
    %v1614 = vmul.f32 %v1596, %v1612
    %1616 = vrot.lane.b32.xlu0 %v1614, 32
    %v1617 = vpop.permute.xlu0 %1616
    %1619 = vst.msk [vmem:[#allocation12 + $0x8] sm:$0x3] %vm228, %v1617
    %v1620 = vld [vmem:[#allocation2 + $0xa] sm:$0x3]
    %v1621 = vsel %vm158, %v1617, 0
    %1623 = vmatpush.msra.mxu0 0.0
    %1624 = vmatpush.msra.mxu0 0.0
    %1625 = vmatpush.msra.mxu0 0.0
    %1626 = vmatpush.msra.mxu0 0.0
    %1627 = vmatpush.msra.mxu0 0.0
    %1628 = vmatpush.msra.mxu0 0.0
    %1629 = vmatpush.msra.mxu0 0.0
    %1630 = vmatpush.msra.mxu0 0.0
    %1631 = vmatpush.msra.mxu0 0.0
    %1632 = vmatpush.msra.mxu0 0.0
    %1633 = vmatpush.msra.mxu0 0.0
    %1634 = vmatpush.msra.mxu0 0.0
    %1635 = vmatpush.msra.mxu0 %v1280
    %1636 = vmatpush.msra.mxu0 %v1279
    %1637 = vmatpush.msra.mxu0 %v1278
    %1638 = vmatpush.msra.mxu0 %v1277
    %1639 = vmatmul.f32.gmra.mxu0 %v1621
    %v1640 = vpop.f32.mrf.mxu0
    %v1641 = vadd.f32 0.0, %v1640
    %1642 = vdwg.mxu0
    %v1643 = vadd.f32 %v1620, %v1641
    %v1644 = vxor.u32 %v1643, 2147483648
    %v1645 = vmul.f32 %v1644, 1.442695
    %v1646 = vpow.pop %v1645
    %v1647 = vadd.f32 %v1646, 1.0
    %v1648 = vrcp.pop %v1647
    %v1649 = vmul.f32 %v1647, %v1648
    %v1650 = vsub.f32 1.0, %v1649
    %v1651 = vmul.f32 %v1648, %v1650
    %v1652 = vadd.f32 %v1648, %v1651
    %vm1653 = vweird.f32 %v1647
    %vm1654 = vweird.f32 %v1648
    %vm1655 = vmor %vm1653, %vm1654
    %v1656 = vsel %vm1655, %v1648, %v1652
    %v1657 = vand.u32 2147483647, %v1647
    %vm1658 = vcmp.eq.f32.partialorder %v1657, 8.507059e+37
    %v1659 = vand.u32 %v1647, 2147483648
    %v1660 = vor.u32 1.1754944e-38, %v1659
    %v1661 = vsel %vm1658, %v1660, %v1656
    %v1662 = vmul.f32 1.0, %v1661
    %v1663 = vtanh.pop %v1643
    %v1664 = vmul.f32 %v1662, %v1608
    %1666 = vrot.lane.b32.xlu0 %v1663, 64
    %v1667 = vpop.permute.xlu0 %1666
    %v1669 = vmul.f32 %v1662, %v1667
    %1671 = vrot.lane.b32.xlu0 %v1669, 32
    %v1672 = vpop.permute.xlu0 %1671
    %v1674 = vadd.f32 %v1664, %v1672
    %v1675 = vtanh.pop %v1674
    %1677 = vrot.lane.b32.xlu0 %v1675, 64
    %v1678 = vpop.permute.xlu0 %1677
    %v1680 = vmul.f32 %v1662, %v1678
    %1682 = vrot.lane.b32.xlu0 %v1680, 32
    %v1683 = vpop.permute.xlu0 %1682
    %1685 = vst.msk [vmem:[#allocation12 + $0xa] sm:$0x3] %vm228, %v1683
    %v1686 = vld [vmem:[#allocation2 + $0xc] sm:$0x3]
    %v1687 = vsel %vm158, %v1683, 0
    %1689 = vmatpush.msra.mxu0 0.0
    %1690 = vmatpush.msra.mxu0 0.0
    %1691 = vmatpush.msra.mxu0 0.0
    %1692 = vmatpush.msra.mxu0 0.0
    %1693 = vmatpush.msra.mxu0 0.0
    %1694 = vmatpush.msra.mxu0 0.0
    %1695 = vmatpush.msra.mxu0 0.0
    %1696 = vmatpush.msra.mxu0 0.0
    %1697 = vmatpush.msra.mxu0 0.0
    %1698 = vmatpush.msra.mxu0 0.0
    %1699 = vmatpush.msra.mxu0 0.0
    %1700 = vmatpush.msra.mxu0 0.0
    %1701 = vmatpush.msra.mxu0 %v1280
    %1702 = vmatpush.msra.mxu0 %v1279
    %1703 = vmatpush.msra.mxu0 %v1278
    %1704 = vmatpush.msra.mxu0 %v1277
    %1705 = vmatmul.f32.gmra.mxu0 %v1687
    %v1706 = vpop.f32.mrf.mxu0
    %v1707 = vadd.f32 0.0, %v1706
    %1708 = vdwg.mxu0
    %v1709 = vadd.f32 %v1686, %v1707
    %v1710 = vxor.u32 %v1709, 2147483648
    %v1711 = vmul.f32 %v1710, 1.442695
    %v1712 = vpow.pop %v1711
    %v1713 = vadd.f32 %v1712, 1.0
    %v1714 = vrcp.pop %v1713
    %v1715 = vmul.f32 %v1713, %v1714
    %v1716 = vsub.f32 1.0, %v1715
    %v1717 = vmul.f32 %v1714, %v1716
    %v1718 = vadd.f32 %v1714, %v1717
    %vm1719 = vweird.f32 %v1713
    %vm1720 = vweird.f32 %v1714
    %vm1721 = vmor %vm1719, %vm1720
    %v1722 = vsel %vm1721, %v1714, %v1718
    %v1723 = vand.u32 2147483647, %v1713
    %vm1724 = vcmp.eq.f32.partialorder %v1723, 8.507059e+37
    %v1725 = vand.u32 %v1713, 2147483648
    %v1726 = vor.u32 1.1754944e-38, %v1725
    %v1727 = vsel %vm1724, %v1726, %v1722
    %v1728 = vmul.f32 1.0, %v1727
    %v1729 = vtanh.pop %v1709
    %v1730 = vmul.f32 %v1728, %v1674
    %1732 = vrot.lane.b32.xlu0 %v1729, 64
    %v1733 = vpop.permute.xlu0 %1732
    %v1735 = vmul.f32 %v1728, %v1733
    %1737 = vrot.lane.b32.xlu0 %v1735, 32
    %v1738 = vpop.permute.xlu0 %1737
    %v1740 = vadd.f32 %v1730, %v1738
    %v1741 = vtanh.pop %v1740
    %1743 = vrot.lane.b32.xlu0 %v1741, 64
    %v1744 = vpop.permute.xlu0 %1743
    %v1746 = vmul.f32 %v1728, %v1744
    %1748 = vrot.lane.b32.xlu0 %v1746, 32
    %v1749 = vpop.permute.xlu0 %1748
    %1751 = vst.msk [vmem:[#allocation12 + $0xc] sm:$0x3] %vm228, %v1749
    %v1752 = vld [vmem:[#allocation2 + $0xe] sm:$0x3]
    %v1753 = vsel %vm158, %v1749, 0
    %1755 = vmatpush.msra.mxu0 0.0
    %1756 = vmatpush.msra.mxu0 0.0
    %1757 = vmatpush.msra.mxu0 0.0
    %1758 = vmatpush.msra.mxu0 0.0
    %1759 = vmatpush.msra.mxu0 0.0
    %1760 = vmatpush.msra.mxu0 0.0
    %1761 = vmatpush.msra.mxu0 0.0
    %1762 = vmatpush.msra.mxu0 0.0
    %1763 = vmatpush.msra.mxu0 0.0
    %1764 = vmatpush.msra.mxu0 0.0
    %1765 = vmatpush.msra.mxu0 0.0
    %1766 = vmatpush.msra.mxu0 0.0
    %1767 = vmatpush.msra.mxu0 %v1280
    %1768 = vmatpush.msra.mxu0 %v1279
    %1769 = vmatpush.msra.mxu0 %v1278
    %1770 = vmatpush.msra.mxu0 %v1277
    %1771 = vmatmul.f32.gmra.mxu0 %v1753
    %v1772 = vpop.f32.mrf.mxu0
    %v1773 = vadd.f32 0.0, %v1772
    %1774 = vdwg.mxu0
    %v1775 = vadd.f32 %v1752, %v1773
    %v1776 = vxor.u32 %v1775, 2147483648
    %v1777 = vmul.f32 %v1776, 1.442695
    %v1778 = vpow.pop %v1777
    %v1779 = vadd.f32 %v1778, 1.0
    %v1780 = vrcp.pop %v1779
    %v1781 = vmul.f32 %v1779, %v1780
    %v1782 = vsub.f32 1.0, %v1781
    %v1783 = vmul.f32 %v1780, %v1782
    %v1784 = vadd.f32 %v1780, %v1783
    %vm1785 = vweird.f32 %v1779
    %vm1786 = vweird.f32 %v1780
    %vm1787 = vmor %vm1785, %vm1786
    %v1788 = vsel %vm1787, %v1780, %v1784
    %v1789 = vand.u32 2147483647, %v1779
    %vm1790 = vcmp.eq.f32.partialorder %v1789, 8.507059e+37
    %v1791 = vand.u32 %v1779, 2147483648
    %v1792 = vor.u32 1.1754944e-38, %v1791
    %v1793 = vsel %vm1790, %v1792, %v1788
    %v1794 = vmul.f32 1.0, %v1793
    %v1795 = vtanh.pop %v1775
    %v1796 = vmul.f32 %v1794, %v1740
    %1798 = vrot.lane.b32.xlu0 %v1795, 64
    %v1799 = vpop.permute.xlu0 %1798
    %v1801 = vmul.f32 %v1794, %v1799
    %1803 = vrot.lane.b32.xlu0 %v1801, 32
    %v1804 = vpop.permute.xlu0 %1803
    %v1806 = vadd.f32 %v1796, %v1804
    %v1807 = vtanh.pop %v1806
    %1809 = vrot.lane.b32.xlu0 %v1807, 64
    %v1810 = vpop.permute.xlu0 %1809
    %v1812 = vmul.f32 %v1794, %v1810
    %1814 = vrot.lane.b32.xlu0 %v1812, 32
    %v1815 = vpop.permute.xlu0 %1814
    %1817 = vst.msk [vmem:[#allocation12 + $0xe] sm:$0x3] %vm228, %v1815
    %v1818 = vld [vmem:[#allocation2 + $0x10] sm:$0x3]
    %v1819 = vsel %vm158, %v1815, 0
    %1821 = vmatpush.msra.mxu0 0.0
    %1822 = vmatpush.msra.mxu0 0.0
    %1823 = vmatpush.msra.mxu0 0.0
    %1824 = vmatpush.msra.mxu0 0.0
    %1825 = vmatpush.msra.mxu0 0.0
    %1826 = vmatpush.msra.mxu0 0.0
    %1827 = vmatpush.msra.mxu0 0.0
    %1828 = vmatpush.msra.mxu0 0.0
    %1829 = vmatpush.msra.mxu0 0.0
    %1830 = vmatpush.msra.mxu0 0.0
    %1831 = vmatpush.msra.mxu0 0.0
    %1832 = vmatpush.msra.mxu0 0.0
    %1833 = vmatpush.msra.mxu0 %v1280
    %1834 = vmatpush.msra.mxu0 %v1279
    %1835 = vmatpush.msra.mxu0 %v1278
    %1836 = vmatpush.msra.mxu0 %v1277
    %1837 = vmatmul.f32.gmra.mxu0 %v1819
    %v1838 = vpop.f32.mrf.mxu0
    %v1839 = vadd.f32 0.0, %v1838
    %1840 = vdwg.mxu0
    %v1841 = vadd.f32 %v1818, %v1839
    %v1842 = vxor.u32 %v1841, 2147483648
    %v1843 = vmul.f32 %v1842, 1.442695
    %v1844 = vpow.pop %v1843
    %v1845 = vadd.f32 %v1844, 1.0
    %v1846 = vrcp.pop %v1845
    %v1847 = vmul.f32 %v1845, %v1846
    %v1848 = vsub.f32 1.0, %v1847
    %v1849 = vmul.f32 %v1846, %v1848
    %v1850 = vadd.f32 %v1846, %v1849
    %vm1851 = vweird.f32 %v1845
    %vm1852 = vweird.f32 %v1846
    %vm1853 = vmor %vm1851, %vm1852
    %v1854 = vsel %vm1853, %v1846, %v1850
    %v1855 = vand.u32 2147483647, %v1845
    %vm1856 = vcmp.eq.f32.partialorder %v1855, 8.507059e+37
    %v1857 = vand.u32 %v1845, 2147483648
    %v1858 = vor.u32 1.1754944e-38, %v1857
    %v1859 = vsel %vm1856, %v1858, %v1854
    %v1860 = vmul.f32 1.0, %v1859
    %v1861 = vtanh.pop %v1841
    %v1862 = vmul.f32 %v1860, %v1806
    %1864 = vrot.lane.b32.xlu0 %v1861, 64
    %v1865 = vpop.permute.xlu0 %1864
    %v1867 = vmul.f32 %v1860, %v1865
    %1869 = vrot.lane.b32.xlu0 %v1867, 32
    %v1870 = vpop.permute.xlu0 %1869
    %v1872 = vadd.f32 %v1862, %v1870
    %v1873 = vtanh.pop %v1872
    %1875 = vrot.lane.b32.xlu0 %v1873, 64
    %v1876 = vpop.permute.xlu0 %1875
    %v1878 = vmul.f32 %v1860, %v1876
    %1880 = vrot.lane.b32.xlu0 %v1878, 32
    %v1881 = vpop.permute.xlu0 %1880
    %1883 = vst.msk [vmem:[#allocation12 + $0x10] sm:$0x3] %vm228, %v1881
    %v1884 = vld [vmem:[#allocation2 + $0x12] sm:$0x3]
    %v1885 = vsel %vm158, %v1881, 0
    %1887 = vmatpush.msra.mxu0 0.0
    %1888 = vmatpush.msra.mxu0 0.0
    %1889 = vmatpush.msra.mxu0 0.0
    %1890 = vmatpush.msra.mxu0 0.0
    %1891 = vmatpush.msra.mxu0 0.0
    %1892 = vmatpush.msra.mxu0 0.0
    %1893 = vmatpush.msra.mxu0 0.0
    %1894 = vmatpush.msra.mxu0 0.0
    %1895 = vmatpush.msra.mxu0 0.0
    %1896 = vmatpush.msra.mxu0 0.0
    %1897 = vmatpush.msra.mxu0 0.0
    %1898 = vmatpush.msra.mxu0 0.0
    %1899 = vmatpush.msra.mxu0 %v1280
    %1900 = vmatpush.msra.mxu0 %v1279
    %1901 = vmatpush.msra.mxu0 %v1278
    %1902 = vmatpush.msra.mxu0 %v1277
    %1903 = vmatmul.f32.gmra.mxu0 %v1885
    %v1904 = vpop.f32.mrf.mxu0
    %v1905 = vadd.f32 0.0, %v1904
    %1906 = vdwg.mxu0
    %v1907 = vadd.f32 %v1884, %v1905
    %v1908 = vxor.u32 %v1907, 2147483648
    %v1909 = vmul.f32 %v1908, 1.442695
    %v1910 = vpow.pop %v1909
    %v1911 = vadd.f32 %v1910, 1.0
    %v1912 = vrcp.pop %v1911
    %v1913 = vmul.f32 %v1911, %v1912
    %v1914 = vsub.f32 1.0, %v1913
    %v1915 = vmul.f32 %v1912, %v1914
    %v1916 = vadd.f32 %v1912, %v1915
    %vm1917 = vweird.f32 %v1911
    %vm1918 = vweird.f32 %v1912
    %vm1919 = vmor %vm1917, %vm1918
    %v1920 = vsel %vm1919, %v1912, %v1916
    %v1921 = vand.u32 2147483647, %v1911
    %vm1922 = vcmp.eq.f32.partialorder %v1921, 8.507059e+37
    %v1923 = vand.u32 %v1911, 2147483648
    %v1924 = vor.u32 1.1754944e-38, %v1923
    %v1925 = vsel %vm1922, %v1924, %v1920
    %v1926 = vmul.f32 1.0, %v1925
    %v1927 = vtanh.pop %v1907
    %v1928 = vmul.f32 %v1926, %v1872
    %1930 = vrot.lane.b32.xlu0 %v1927, 64
    %v1931 = vpop.permute.xlu0 %1930
    %v1933 = vmul.f32 %v1926, %v1931
    %1935 = vrot.lane.b32.xlu0 %v1933, 32
    %v1936 = vpop.permute.xlu0 %1935
    %v1938 = vadd.f32 %v1928, %v1936
    %v1939 = vtanh.pop %v1938
    %1941 = vrot.lane.b32.xlu0 %v1939, 64
    %v1942 = vpop.permute.xlu0 %1941
    %v1944 = vmul.f32 %v1926, %v1942
    %1946 = vrot.lane.b32.xlu0 %v1944, 32
    %v1947 = vpop.permute.xlu0 %1946
    %1949 = vst.msk [vmem:[#allocation12 + $0x12] sm:$0x3] %vm228, %v1947
    %v1950 = vld [vmem:[#allocation2 + $0x14] sm:$0x3]
    %v1951 = vsel %vm158, %v1947, 0
    %1953 = vmatpush.msra.mxu0 0.0
    %1954 = vmatpush.msra.mxu0 0.0
    %1955 = vmatpush.msra.mxu0 0.0
    %1956 = vmatpush.msra.mxu0 0.0
    %1957 = vmatpush.msra.mxu0 0.0
    %1958 = vmatpush.msra.mxu0 0.0
    %1959 = vmatpush.msra.mxu0 0.0
    %1960 = vmatpush.msra.mxu0 0.0
    %1961 = vmatpush.msra.mxu0 0.0
    %1962 = vmatpush.msra.mxu0 0.0
    %1963 = vmatpush.msra.mxu0 0.0
    %1964 = vmatpush.msra.mxu0 0.0
    %1965 = vmatpush.msra.mxu0 %v1280
    %1966 = vmatpush.msra.mxu0 %v1279
    %1967 = vmatpush.msra.mxu0 %v1278
    %1968 = vmatpush.msra.mxu0 %v1277
    %1969 = vmatmul.f32.gmra.mxu0 %v1951
    %v1970 = vpop.f32.mrf.mxu0
    %v1971 = vadd.f32 0.0, %v1970
    %1972 = vdwg.mxu0
    %v1973 = vadd.f32 %v1950, %v1971
    %v1974 = vxor.u32 %v1973, 2147483648
    %v1975 = vmul.f32 %v1974, 1.442695
    %v1976 = vpow.pop %v1975
    %v1977 = vadd.f32 %v1976, 1.0
    %v1978 = vrcp.pop %v1977
    %v1979 = vmul.f32 %v1977, %v1978
    %v1980 = vsub.f32 1.0, %v1979
    %v1981 = vmul.f32 %v1978, %v1980
    %v1982 = vadd.f32 %v1978, %v1981
    %vm1983 = vweird.f32 %v1977
    %vm1984 = vweird.f32 %v1978
    %vm1985 = vmor %vm1983, %vm1984
    %v1986 = vsel %vm1985, %v1978, %v1982
    %v1987 = vand.u32 2147483647, %v1977
    %vm1988 = vcmp.eq.f32.partialorder %v1987, 8.507059e+37
    %v1989 = vand.u32 %v1977, 2147483648
    %v1990 = vor.u32 1.1754944e-38, %v1989
    %v1991 = vsel %vm1988, %v1990, %v1986
    %v1992 = vmul.f32 1.0, %v1991
    %v1993 = vtanh.pop %v1973
    %v1994 = vmul.f32 %v1992, %v1938
    %1996 = vrot.lane.b32.xlu0 %v1993, 64
    %v1997 = vpop.permute.xlu0 %1996
    %v1999 = vmul.f32 %v1992, %v1997
    %2001 = vrot.lane.b32.xlu0 %v1999, 32
    %v2002 = vpop.permute.xlu0 %2001
    %v2004 = vadd.f32 %v1994, %v2002
    %v2005 = vtanh.pop %v2004
    %2007 = vrot.lane.b32.xlu0 %v2005, 64
    %v2008 = vpop.permute.xlu0 %2007
    %v2010 = vmul.f32 %v1992, %v2008
    %2012 = vrot.lane.b32.xlu0 %v2010, 32
    %v2013 = vpop.permute.xlu0 %2012
    %2015 = vst.msk [vmem:[#allocation12 + $0x14] sm:$0x3] %vm228, %v2013
    %v2016 = vld [vmem:[#allocation2 + $0x16] sm:$0x3]
    %v2017 = vsel %vm158, %v2013, 0
    %2019 = vmatpush.msra.mxu0 0.0
    %2020 = vmatpush.msra.mxu0 0.0
    %2021 = vmatpush.msra.mxu0 0.0
    %2022 = vmatpush.msra.mxu0 0.0
    %2023 = vmatpush.msra.mxu0 0.0
    %2024 = vmatpush.msra.mxu0 0.0
    %2025 = vmatpush.msra.mxu0 0.0
    %2026 = vmatpush.msra.mxu0 0.0
    %2027 = vmatpush.msra.mxu0 0.0
    %2028 = vmatpush.msra.mxu0 0.0
    %2029 = vmatpush.msra.mxu0 0.0
    %2030 = vmatpush.msra.mxu0 0.0
    %2031 = vmatpush.msra.mxu0 %v1280
    %2032 = vmatpush.msra.mxu0 %v1279
    %2033 = vmatpush.msra.mxu0 %v1278
    %2034 = vmatpush.msra.mxu0 %v1277
    %2035 = vmatmul.f32.gmra.mxu0 %v2017
    %v2036 = vpop.f32.mrf.mxu0
    %v2037 = vadd.f32 0.0, %v2036
    %2038 = vdwg.mxu0
    %v2039 = vadd.f32 %v2016, %v2037
    %v2040 = vxor.u32 %v2039, 2147483648
    %v2041 = vmul.f32 %v2040, 1.442695
    %v2042 = vpow.pop %v2041
    %v2043 = vadd.f32 %v2042, 1.0
    %v2044 = vrcp.pop %v2043
    %v2045 = vmul.f32 %v2043, %v2044
    %v2046 = vsub.f32 1.0, %v2045
    %v2047 = vmul.f32 %v2044, %v2046
    %v2048 = vadd.f32 %v2044, %v2047
    %vm2049 = vweird.f32 %v2043
    %vm2050 = vweird.f32 %v2044
    %vm2051 = vmor %vm2049, %vm2050
    %v2052 = vsel %vm2051, %v2044, %v2048
    %v2053 = vand.u32 2147483647, %v2043
    %vm2054 = vcmp.eq.f32.partialorder %v2053, 8.507059e+37
    %v2055 = vand.u32 %v2043, 2147483648
    %v2056 = vor.u32 1.1754944e-38, %v2055
    %v2057 = vsel %vm2054, %v2056, %v2052
    %v2058 = vmul.f32 1.0, %v2057
    %v2059 = vtanh.pop %v2039
    %v2060 = vmul.f32 %v2058, %v2004
    %2062 = vrot.lane.b32.xlu0 %v2059, 64
    %v2063 = vpop.permute.xlu0 %2062
    %v2065 = vmul.f32 %v2058, %v2063
    %2067 = vrot.lane.b32.xlu0 %v2065, 32
    %v2068 = vpop.permute.xlu0 %2067
    %v2070 = vadd.f32 %v2060, %v2068
    %v2071 = vtanh.pop %v2070
    %2073 = vrot.lane.b32.xlu0 %v2071, 64
    %v2074 = vpop.permute.xlu0 %2073
    %v2076 = vmul.f32 %v2058, %v2074
    %2078 = vrot.lane.b32.xlu0 %v2076, 32
    %v2079 = vpop.permute.xlu0 %2078
    %2081 = vst.msk [vmem:[#allocation12 + $0x16] sm:$0x3] %vm228, %v2079
    %v2082 = vld [vmem:[#allocation2 + $0x18] sm:$0x3]
    %v2083 = vsel %vm158, %v2079, 0
    %2085 = vmatpush.msra.mxu0 0.0
    %2086 = vmatpush.msra.mxu0 0.0
    %2087 = vmatpush.msra.mxu0 0.0
    %2088 = vmatpush.msra.mxu0 0.0
    %2089 = vmatpush.msra.mxu0 0.0
    %2090 = vmatpush.msra.mxu0 0.0
    %2091 = vmatpush.msra.mxu0 0.0
    %2092 = vmatpush.msra.mxu0 0.0
    %2093 = vmatpush.msra.mxu0 0.0
    %2094 = vmatpush.msra.mxu0 0.0
    %2095 = vmatpush.msra.mxu0 0.0
    %2096 = vmatpush.msra.mxu0 0.0
    %2097 = vmatpush.msra.mxu0 %v1280
    %2098 = vmatpush.msra.mxu0 %v1279
    %2099 = vmatpush.msra.mxu0 %v1278
    %2100 = vmatpush.msra.mxu0 %v1277
    %2101 = vmatmul.f32.gmra.mxu0 %v2083
    %v2102 = vpop.f32.mrf.mxu0
    %v2103 = vadd.f32 0.0, %v2102
    %2104 = vdwg.mxu0
    %v2105 = vadd.f32 %v2082, %v2103
    %v2106 = vxor.u32 %v2105, 2147483648
    %v2107 = vmul.f32 %v2106, 1.442695
    %v2108 = vpow.pop %v2107
    %v2109 = vadd.f32 %v2108, 1.0
    %v2110 = vrcp.pop %v2109
    %v2111 = vmul.f32 %v2109, %v2110
    %v2112 = vsub.f32 1.0, %v2111
    %v2113 = vmul.f32 %v2110, %v2112
    %v2114 = vadd.f32 %v2110, %v2113
    %vm2115 = vweird.f32 %v2109
    %vm2116 = vweird.f32 %v2110
    %vm2117 = vmor %vm2115, %vm2116
    %v2118 = vsel %vm2117, %v2110, %v2114
    %v2119 = vand.u32 2147483647, %v2109
    %vm2120 = vcmp.eq.f32.partialorder %v2119, 8.507059e+37
    %v2121 = vand.u32 %v2109, 2147483648
    %v2122 = vor.u32 1.1754944e-38, %v2121
    %v2123 = vsel %vm2120, %v2122, %v2118
    %v2124 = vmul.f32 1.0, %v2123
    %v2125 = vtanh.pop %v2105
    %v2126 = vmul.f32 %v2124, %v2070
    %2128 = vrot.lane.b32.xlu0 %v2125, 64
    %v2129 = vpop.permute.xlu0 %2128
    %v2131 = vmul.f32 %v2124, %v2129
    %2133 = vrot.lane.b32.xlu0 %v2131, 32
    %v2134 = vpop.permute.xlu0 %2133
    %v2136 = vadd.f32 %v2126, %v2134
    %v2137 = vtanh.pop %v2136
    %2139 = vrot.lane.b32.xlu0 %v2137, 64
    %v2140 = vpop.permute.xlu0 %2139
    %v2142 = vmul.f32 %v2124, %v2140
    %2144 = vrot.lane.b32.xlu0 %v2142, 32
    %v2145 = vpop.permute.xlu0 %2144
    %2147 = vst.msk [vmem:[#allocation12 + $0x18] sm:$0x3] %vm228, %v2145
    %v2148 = vld [vmem:[#allocation2 + $0x1a] sm:$0x3]
    %v2149 = vsel %vm158, %v2145, 0
    %2151 = vmatpush.msra.mxu0 0.0
    %2152 = vmatpush.msra.mxu0 0.0
    %2153 = vmatpush.msra.mxu0 0.0
    %2154 = vmatpush.msra.mxu0 0.0
    %2155 = vmatpush.msra.mxu0 0.0
    %2156 = vmatpush.msra.mxu0 0.0
    %2157 = vmatpush.msra.mxu0 0.0
    %2158 = vmatpush.msra.mxu0 0.0
    %2159 = vmatpush.msra.mxu0 0.0
    %2160 = vmatpush.msra.mxu0 0.0
    %2161 = vmatpush.msra.mxu0 0.0
    %2162 = vmatpush.msra.mxu0 0.0
    %2163 = vmatpush.msra.mxu0 %v1280
    %2164 = vmatpush.msra.mxu0 %v1279
    %2165 = vmatpush.msra.mxu0 %v1278
    %2166 = vmatpush.msra.mxu0 %v1277
    %2167 = vmatmul.f32.gmra.mxu0 %v2149
    %v2168 = vpop.f32.mrf.mxu0
    %v2169 = vadd.f32 0.0, %v2168
    %2170 = vdwg.mxu0
    %v2171 = vadd.f32 %v2148, %v2169
    %v2172 = vxor.u32 %v2171, 2147483648
    %v2173 = vmul.f32 %v2172, 1.442695
    %v2174 = vpow.pop %v2173
    %v2175 = vadd.f32 %v2174, 1.0
    %v2176 = vrcp.pop %v2175
    %v2177 = vmul.f32 %v2175, %v2176
    %v2178 = vsub.f32 1.0, %v2177
    %v2179 = vmul.f32 %v2176, %v2178
    %v2180 = vadd.f32 %v2176, %v2179
    %vm2181 = vweird.f32 %v2175
    %vm2182 = vweird.f32 %v2176
    %vm2183 = vmor %vm2181, %vm2182
    %v2184 = vsel %vm2183, %v2176, %v2180
    %v2185 = vand.u32 2147483647, %v2175
    %vm2186 = vcmp.eq.f32.partialorder %v2185, 8.507059e+37
    %v2187 = vand.u32 %v2175, 2147483648
    %v2188 = vor.u32 1.1754944e-38, %v2187
    %v2189 = vsel %vm2186, %v2188, %v2184
    %v2190 = vmul.f32 1.0, %v2189
    %v2191 = vtanh.pop %v2171
    %v2192 = vmul.f32 %v2190, %v2136
    %2194 = vrot.lane.b32.xlu0 %v2191, 64
    %v2195 = vpop.permute.xlu0 %2194
    %v2197 = vmul.f32 %v2190, %v2195
    %2199 = vrot.lane.b32.xlu0 %v2197, 32
    %v2200 = vpop.permute.xlu0 %2199
    %v2202 = vadd.f32 %v2192, %v2200
    %v2203 = vtanh.pop %v2202
    %2205 = vrot.lane.b32.xlu0 %v2203, 64
    %v2206 = vpop.permute.xlu0 %2205
    %v2208 = vmul.f32 %v2190, %v2206
    %2210 = vrot.lane.b32.xlu0 %v2208, 32
    %v2211 = vpop.permute.xlu0 %2210
    %2213 = vst.msk [vmem:[#allocation12 + $0x1a] sm:$0x3] %vm228, %v2211
    %v2214 = vld [vmem:[#allocation2 + $0x1c] sm:$0x3]
    %v2215 = vsel %vm158, %v2211, 0
    %2217 = vmatpush.msra.mxu0 0.0
    %2218 = vmatpush.msra.mxu0 0.0
    %2219 = vmatpush.msra.mxu0 0.0
    %2220 = vmatpush.msra.mxu0 0.0
    %2221 = vmatpush.msra.mxu0 0.0
    %2222 = vmatpush.msra.mxu0 0.0
    %2223 = vmatpush.msra.mxu0 0.0
    %2224 = vmatpush.msra.mxu0 0.0
    %2225 = vmatpush.msra.mxu0 0.0
    %2226 = vmatpush.msra.mxu0 0.0
    %2227 = vmatpush.msra.mxu0 0.0
    %2228 = vmatpush.msra.mxu0 0.0
    %2229 = vmatpush.msra.mxu0 %v1280
    %2230 = vmatpush.msra.mxu0 %v1279
    %2231 = vmatpush.msra.mxu0 %v1278
    %2232 = vmatpush.msra.mxu0 %v1277
    %2233 = vmatmul.f32.gmra.mxu0 %v2215
    %v2234 = vpop.f32.mrf.mxu0
    %v2235 = vadd.f32 0.0, %v2234
    %2236 = vdwg.mxu0
    %v2237 = vadd.f32 %v2214, %v2235
    %v2238 = vxor.u32 %v2237, 2147483648
    %v2239 = vmul.f32 %v2238, 1.442695
    %v2240 = vpow.pop %v2239
    %v2241 = vadd.f32 %v2240, 1.0
    %v2242 = vrcp.pop %v2241
    %v2243 = vmul.f32 %v2241, %v2242
    %v2244 = vsub.f32 1.0, %v2243
    %v2245 = vmul.f32 %v2242, %v2244
    %v2246 = vadd.f32 %v2242, %v2245
    %vm2247 = vweird.f32 %v2241
    %vm2248 = vweird.f32 %v2242
    %vm2249 = vmor %vm2247, %vm2248
    %v2250 = vsel %vm2249, %v2242, %v2246
    %v2251 = vand.u32 2147483647, %v2241
    %vm2252 = vcmp.eq.f32.partialorder %v2251, 8.507059e+37
    %v2253 = vand.u32 %v2241, 2147483648
    %v2254 = vor.u32 1.1754944e-38, %v2253
    %v2255 = vsel %vm2252, %v2254, %v2250
    %v2256 = vmul.f32 1.0, %v2255
    %v2257 = vtanh.pop %v2237
    %v2258 = vmul.f32 %v2256, %v2202
    %2260 = vrot.lane.b32.xlu0 %v2257, 64
    %v2261 = vpop.permute.xlu0 %2260
    %v2263 = vmul.f32 %v2256, %v2261
    %2265 = vrot.lane.b32.xlu0 %v2263, 32
    %v2266 = vpop.permute.xlu0 %2265
    %v2268 = vadd.f32 %v2258, %v2266
    %v2269 = vtanh.pop %v2268
    %2271 = vrot.lane.b32.xlu0 %v2269, 64
    %v2272 = vpop.permute.xlu0 %2271
    %v2274 = vmul.f32 %v2256, %v2272
    %2276 = vrot.lane.b32.xlu0 %v2274, 32
    %v2277 = vpop.permute.xlu0 %2276
    %2279 = vst.msk [vmem:[#allocation12 + $0x1c] sm:$0x3] %vm228, %v2277
    %v2280 = vld [vmem:[#allocation2 + $0x1e] sm:$0x3]
    %v2281 = vsel %vm158, %v2277, 0
    %2283 = vmatpush.msra.mxu0 0.0
    %2284 = vmatpush.msra.mxu0 0.0
    %2285 = vmatpush.msra.mxu0 0.0
    %2286 = vmatpush.msra.mxu0 0.0
    %2287 = vmatpush.msra.mxu0 0.0
    %2288 = vmatpush.msra.mxu0 0.0
    %2289 = vmatpush.msra.mxu0 0.0
    %2290 = vmatpush.msra.mxu0 0.0
    %2291 = vmatpush.msra.mxu0 0.0
    %2292 = vmatpush.msra.mxu0 0.0
    %2293 = vmatpush.msra.mxu0 0.0
    %2294 = vmatpush.msra.mxu0 0.0
    %2295 = vmatpush.msra.mxu0 %v1280
    %2296 = vmatpush.msra.mxu0 %v1279
    %2297 = vmatpush.msra.mxu0 %v1278
    %2298 = vmatpush.msra.mxu0 %v1277
    %2299 = vmatmul.f32.gmra.mxu0 %v2281
    %v2300 = vpop.f32.mrf.mxu0
    %v2301 = vadd.f32 0.0, %v2300
    %2302 = vdwg.mxu0
    %v2303 = vadd.f32 %v2280, %v2301
    %v2304 = vxor.u32 %v2303, 2147483648
    %v2305 = vmul.f32 %v2304, 1.442695
    %v2306 = vpow.pop %v2305
    %v2307 = vadd.f32 %v2306, 1.0
    %v2308 = vrcp.pop %v2307
    %v2309 = vmul.f32 %v2307, %v2308
    %v2310 = vsub.f32 1.0, %v2309
    %v2311 = vmul.f32 %v2308, %v2310
    %v2312 = vadd.f32 %v2308, %v2311
    %vm2313 = vweird.f32 %v2307
    %vm2314 = vweird.f32 %v2308
    %vm2315 = vmor %vm2313, %vm2314
    %v2316 = vsel %vm2315, %v2308, %v2312
    %v2317 = vand.u32 2147483647, %v2307
    %vm2318 = vcmp.eq.f32.partialorder %v2317, 8.507059e+37
    %v2319 = vand.u32 %v2307, 2147483648
    %v2320 = vor.u32 1.1754944e-38, %v2319
    %v2321 = vsel %vm2318, %v2320, %v2316
    %v2322 = vmul.f32 1.0, %v2321
    %v2323 = vtanh.pop %v2303
    %v2324 = vmul.f32 %v2322, %v2268
    %2326 = vrot.lane.b32.xlu0 %v2323, 64
    %v2327 = vpop.permute.xlu0 %2326
    %v2329 = vmul.f32 %v2322, %v2327
    %2331 = vrot.lane.b32.xlu0 %v2329, 32
    %v2332 = vpop.permute.xlu0 %2331
    %v2334 = vadd.f32 %v2324, %v2332
    %v2335 = vtanh.pop %v2334
    %2337 = vrot.lane.b32.xlu0 %v2335, 64
    %v2338 = vpop.permute.xlu0 %2337
    %v2340 = vmul.f32 %v2322, %v2338
    %2342 = vrot.lane.b32.xlu0 %v2340, 32
    %v2343 = vpop.permute.xlu0 %2342
    %2345 = vst.msk [vmem:[#allocation12 + $0x1e] sm:$0x3] %vm228, %v2343
    // Predicated region
    $region54: #{tpu_custom_call.1} parent=1 // pred_check
      _
    $region55: #{tpu_custom_call.1} parent=1 // pred_check_branch
      %2347 = sbr.rel (0) target = $region57
    $region56: #{tpu_custom_call.1} parent=1 // pred_region
      %2349 = vsyncadd [#allocation6], 0
      %s2350 = sshll.u32 [#allocation12], 4
      %s2351 = int_to_ptr.vmem [resolvable:$true] %s2350
      %s2352 = sshll.u32 %s9, 4
      %s2353 = int_to_ptr.hbm [resolvable:$true] %s2352
      %2358 = dma.vmem_to_hbm [thread:$0]  %s2351, 512, %s2353, [#allocation6], 128, 128, 8
    $region57: #{tpu_custom_call.1} parent=1 // pred_fallthru
      _
    // Predicated region
    $region58: #{tpu_custom_call.1} parent=1 // pred_check
      _
    $region59: #{tpu_custom_call.1} parent=1 // pred_check_branch
      %2360 = sbr.rel (0) target = $region61
    $region60: #{tpu_custom_call.1} parent=1 // pred_region
      %2362 = dma.done [#allocation6], 512
    $region61: #{tpu_custom_call.1} parent=1 // pred_fallthru
      _
    %2363 = vsyncpa [#allocation5], 1
    %2364 = vsyncpa [#allocation8], 1
    %2365 = vsyncpa [#allocation11], 1
    %2366 = vsyncpa [#allocation6], 1

</llo_original>
